<compile_context>
chip_gen: v7x
topology: tpu7x:2x2x1
jax: 0.10.0
libtpu: 0.0.40
codegen_flags: <defaults>
</compile_context>

<pallas_src>
import jax
import jax.numpy as jnp
import numpy as np
from jax import lax
from jax.experimental import pallas as pl
from jax.experimental.pallas import tpu as pltpu

# NMF2D hyper-parameters (defaults of _MatrixDecomposition2DBase / NMF2D).
NMF_STEPS = 6        # nn.Module default is training=True -> train_steps = 6
EPS = 1e-6           # inv_t == 1 for NMF2D, so the softmax scale is dropped.


def _hamburger_kernel(x_ref, w_in_ref, b_in_ref, w_out_ref, b_out_ref,
                      bases_t_ref, out_ref):
    f32 = jnp.float32
    bf16 = jnp.bfloat16

    x = x_ref[...]            # (C, N) f32
    w_in = w_in_ref[...]      # (C, C) bf16 (pre-cast in wrapper)
    b_in = b_in_ref[...]      # (C, 1) f32
    w_out = w_out_ref[...]    # (C, C) bf16 (pre-cast in wrapper)
    b_out = b_out_ref[...]    # (C, 1) f32
    bt = bases_t_ref[...]     # (R, C) f32 == bases^T (lane-dense on C)

    # --- ham_in: 1x1 conv (+bias) + ReLU; bf16 MXU operands, f32 accumulate --
    e = jnp.dot(w_in, x.astype(bf16), preferred_element_type=f32) + b_in  # (C,N)
    e = jnp.maximum(e, 0.0)
    # Single bf16 copy of `enjoy` feeds every NMF matmul (half the VMEM, full
    # MXU throughput). The f32 copy is not used past this point.
    e16 = e.astype(bf16)
    # TODO(synk): on v7x only, w_in/w_out could additionally be stored as fp8
    # (e4m3) for ~2x conv MXU throughput; requires re-validation, so kept bf16.

    def recip(v):                       # EUP approximate reciprocal
        return pl.reciprocal(v + EPS, approx=True)

    def gram(a16):                      # a @ a^T for a:(R, K) bf16 -> (R, R) f32
        return lax.dot_general(a16, a16, (((1,), (1,)), ((), ())),
                               preferred_element_type=f32)

    # --- NMF2D.local_inference --------------------------------------------
    # State is held transposed & lane-dense: ct == coef^T (R, N), bt == bases^T
    # (R, C); f32 state, bf16 casts right before each MXU dot.
    bt16 = bt.astype(bf16)
    s0 = jnp.dot(bt16, e16, preferred_element_type=f32)            # (R, N)
    ct = jax.nn.softmax(s0, axis=0)                                 # (R, N)
    ct16 = ct.astype(bf16)

    for step in range(NMF_STEPS):       # statically unrolled (fixed 6 steps)
        # coef update: the first iteration reuses s0 (same bt as the softmax
        # initializer), saving one full (R,C)@(C,N) matmul.
        numer_c = s0 if step == 0 else jnp.dot(bt16, e16,
                                               preferred_element_type=f32)
        denom_c = jnp.dot(gram(bt16).astype(bf16), ct16,
                          preferred_element_type=f32)               # (R, N)
        ct = ct * numer_c * recip(denom_c)
        ct16 = ct.astype(bf16)
        # bases update: numer = ct @ e^T without materializing e^T.
        numer_b = lax.dot_general(ct16, e16, (((1,), (1,)), ((), ())),
                                  preferred_element_type=f32)       # (R, C)
        denom_b = jnp.dot(gram(ct16).astype(bf16), bt16,
                          preferred_element_type=f32)               # (R, C)
        bt = bt * numer_b * recip(denom_b)
        bt16 = bt.astype(bf16)

    # --- NMF2D.compute_coef --------------------------------------------------
    numer_c = jnp.dot(bt16, e16, preferred_element_type=f32)        # (R, N)
    denom_c = jnp.dot(gram(bt16).astype(bf16), ct16,
                      preferred_element_type=f32)                   # (R, N)
    ct = ct * numer_c * recip(denom_c)
    ct16 = ct.astype(bf16)

    # --- ham_out fused with the rank-R reconstruction -------------------------
    # w_out @ (bases @ coef^T) == (w_out @ bases^T) @ coef^T : the small (C, R)
    # intermediate avoids the (C, N) ham_x slab and a full (C,C)@(C,N) matmul.
    w_small = lax.dot_general(w_out, bt16, (((1,), (1,)), ((), ())),
                              preferred_element_type=f32)           # (C, R)
    out_conv = jnp.dot(w_small.astype(bf16), ct16,
                       preferred_element_type=f32) + b_out          # (C, N)

    # --- residual + ReLU -------------------------------------------------------
    out_ref[...] = jnp.maximum(x + out_conv, 0.0)


def _vmem_limit_bytes():
    """Generation-dependent VMEM budget: ~48 MiB on v7x (64 MiB physical),
    ~100 MiB on v5e/v6e (128 MiB physical). Falls back to the conservative
    48 MiB if the hardware query is unavailable."""
    cap = None
    try:
        cap = getattr(pltpu.get_tpu_info(), "vmem_capacity_bytes", None)
    except Exception:
        cap = None
    if cap is not None and cap >= 96 * 1024 * 1024:
        return 100 * 1024 * 1024
    return 48 * 1024 * 1024


def _const_spec(shape, single_buffer):
    """BlockSpec for grid-invariant operands (weights/biases). Their block
    index never changes across the batch grid, so a second pipeline buffer is
    wasted VMEM; request single buffering where supported."""
    index_map = lambda b: (0,) * len(shape)
    if single_buffer:
        try:
            return pl.BlockSpec(shape, index_map,
                                pipeline_mode=pl.Buffered(buffer_count=1))
        except Exception:
            pass
    return pl.BlockSpec(shape, index_map)


def hamburger_forward(x_nchw, w_in, b_in, w_out, b_out, bases,
                      single_buffer_consts=True):
    """x_nchw: (B, C, H, W); weights (C, C); biases (C,); bases (B, C, R)."""
    B, C, H, W = x_nchw.shape
    N = H * W
    R = bases.shape[-1]

    x = x_nchw.reshape(B, C, N).astype(jnp.float32)
    # Pre-cast weights to bf16 in the wrapper: halves weight DMA/VMEM and drops
    # the per-grid-step casts inside the kernel.
    w_in16 = w_in.astype(jnp.bfloat16)
    w_out16 = w_out.astype(jnp.bfloat16)
    b_in2 = b_in.reshape(C, 1).astype(jnp.float32)
    b_out2 = b_out.reshape(C, 1).astype(jnp.float32)
    # Transpose the (small) bases outside the kernel so the NMF state inside is
    # lane-dense (C on the 128-lane axis).
    bases_t = jnp.swapaxes(bases.astype(jnp.float32), 1, 2)        # (B, R, C)

    # Resident set at production sizes (C=512, N=4096):
    #   2x(x 8 MiB + out 8 MiB) pipeline buffers + e16 4 MiB + weights/ct/bt
    #   < 4 MiB  ~= 40 MiB  -> fits the 48 MiB v7x budget below.
    out = pl.pallas_call(
        _hamburger_kernel,
        out_shape=jax.ShapeDtypeStruct((B, C, N), jnp.float32),
        grid_spec=pltpu.PrefetchScalarGridSpec(
            num_scalar_prefetch=0,
            # Batch axis is "parallel": with B >= 2 (even) both v7x TensorCores
            # stay busy; v5e/v6e have a single TC so it is just a loop there.
            grid=(B,),
            in_specs=[
                pl.BlockSpec((None, C, N), lambda b: (b, 0, 0)),   # x (squeezed)
                _const_spec((C, C), single_buffer_consts),         # w_in (bf16)
                _const_spec((C, 1), single_buffer_consts),         # b_in
                _const_spec((C, C), single_buffer_consts),         # w_out (bf16)
                _const_spec((C, 1), single_buffer_consts),         # b_out
                pl.BlockSpec((None, R, C), lambda b: (b, 0, 0)),   # bases^T
            ],
            out_specs=pl.BlockSpec((None, C, N), lambda b: (b, 0, 0)),
        ),
        compiler_params=pltpu.CompilerParams(
            dimension_semantics=("parallel",),
            vmem_limit_bytes=_vmem_limit_bytes()),
    )(x, w_in16, b_in2, w_out16, b_out2, bases_t)

    return out.reshape(B, C, H, W)


def hamburger_reference(x_nchw, w_in, b_in, w_out, b_out, bases):
    """Pure-JAX reference mirroring the PyTorch forward. It uses the same bf16
    MXU-operand / f32-accumulate policy as the kernel for every matmul, but the
    ORIGINAL algebraic order (bases @ coef^T, then ham_out conv) and exact
    divisions — so it independently checks the kernel's ham_out re-association
    and its approximate reciprocals."""
    B, C, H, W = x_nchw.shape
    N = H * W
    f32, bf16 = jnp.float32, jnp.bfloat16
    x = x_nchw.reshape(B, C, N).astype(f32)

    def mm(a, b, eq):
        return jnp.einsum(eq, a.astype(bf16), b.astype(bf16),
                          preferred_element_type=f32)

    enjoy = mm(w_in, x, 'oc,bcn->bon') + b_in[None, :, None]
    enjoy = jnp.maximum(enjoy, 0.0)

    b_ = bases.astype(f32)
    coef = jax.nn.softmax(mm(enjoy, b_, 'bcn,bcr->bnr'), axis=-1)
    for _ in range(NMF_STEPS):
        numer = mm(enjoy, b_, 'bcn,bcr->bnr')
        denom = mm(coef, mm(b_, b_, 'bcr,bcs->brs'), 'bnr,brs->bns')
        coef = coef * numer / (denom + EPS)
        numer = mm(enjoy, coef, 'bcn,bnr->bcr')
        denom = mm(b_, mm(coef, coef, 'bnr,bns->brs'), 'bcr,brs->bcs')
        b_ = b_ * numer / (denom + EPS)
    numer = mm(enjoy, b_, 'bcn,bcr->bnr')
    denom = mm(coef, mm(b_, b_, 'bcr,bcs->brs'), 'bnr,brs->bns')
    coef = coef * numer / (denom + EPS)
    ham_x = mm(b_, coef, 'bcr,bnr->bcn')

    out_conv = mm(w_out, ham_x, 'oc,bcn->bon') + b_out[None, :, None]
    return jnp.maximum(x + out_conv, 0.0).reshape(B, C, H, W)


if __name__ == "__main__":
    # Small, NMF2D-consistent shapes: ham_channels=C, S=1, D=C, R=8.
    B, C, H, W = 2, 32, 16, 16     # B even so both v7x TensorCores are used
    R = 8

    key = jax.random.PRNGKey(0)
    kx, kwi, kbi, kwo, kbo, kbase = jax.random.split(key, 6)

    x = jax.random.normal(kx, (B, C, H, W), dtype=jnp.float32)

    # Deterministic "conv" parameters (1x1 convs == channel matmuls).
    w_in = jax.random.normal(kwi, (C, C), dtype=jnp.float32) * (1.0 / np.sqrt(C))
    b_in = jax.random.normal(kbi, (C,), dtype=jnp.float32) * 0.01
    w_out = jax.random.normal(kwo, (C, C), dtype=jnp.float32) * (1.0 / np.sqrt(C))
    b_out = jax.random.normal(kbo, (C,), dtype=jnp.float32) * 0.01

    # NMF2D._build_bases: uniform(0,1) (B*S, D, R), L2-normalized along D.
    bases0 = jax.random.uniform(kbase, (B, C, R), dtype=jnp.float32)
    norm = jnp.maximum(jnp.sqrt(jnp.sum(bases0 ** 2, axis=1, keepdims=True)),
                       1e-12)
    bases0 = bases0 / norm
    # TODO(synk): torch.rand uses a different RNG stream; bases are synthetic
    # but follow the same distribution/normalization as _build_bases.

    def _run(single_buffer_consts):
        o = hamburger_forward(x, w_in, b_in, w_out, b_out, bases0,
                              single_buffer_consts=single_buffer_consts)
        return jax.block_until_ready(o)

    try:
        out = _run(True)
    except Exception:
        # TODO(synk): pl.Buffered(1) single-buffering of grid-invariant
        # operands not supported on this jax version; fall back to defaults.
        out = _run(False)

    ref = hamburger_reference(x, w_in, b_in, w_out, b_out, bases0)
    # Tolerance note: the kernel uses pl.reciprocal(approx=True) (~2^-12 rel
    # error compounding over the 13 multiplicative updates) and the
    # re-associated ham_out (extra bf16 rounding on a (C,R) intermediate),
    # while the reference divides exactly and uses the original order.
    # Structural bugs would still produce O(1) errors, so this stays meaningful.
    np.testing.assert_allclose(np.asarray(out), np.asarray(ref),
                               rtol=4e-2, atol=4e-2)

    print("KERNEL_OK")
</pallas_src>

<mosaic_0001>
module attributes {stable_mosaic.version = 11 : i64} {
  func.func @_hamburger_kernel(%arg0: i32, %arg1: memref<1x32x256xf32, #tpu.memory_space<vmem>>, %arg2: memref<32x32xbf16, #tpu.memory_space<vmem>>, %arg3: memref<32x1xf32, #tpu.memory_space<vmem>>, %arg4: memref<32x32xbf16, #tpu.memory_space<vmem>>, %arg5: memref<32x1xf32, #tpu.memory_space<vmem>>, %arg6: memref<1x8x32xf32, #tpu.memory_space<vmem>>, %arg7: memref<1x32x256xf32, #tpu.memory_space<vmem>>) attributes {dimension_semantics = [#tpu.dimension_semantics<parallel>], iteration_bounds = array<i64: 2>, scalar_prefetch = 0 : i64, scratch_operands = 0 : i64, tpu.core_type = #tpu.core_type<tc>, window_params = [{transform_indices = @transform_0, window_bounds = array<i64: 1, 32, 256>}, {pipeline_mode = #tpu.pipeline_mode<synchronous>, transform_indices = @transform_1, window_bounds = array<i64: 32, 32>}, {pipeline_mode = #tpu.pipeline_mode<synchronous>, transform_indices = @transform_2, window_bounds = array<i64: 32, 1>}, {pipeline_mode = #tpu.pipeline_mode<synchronous>, transform_indices = @transform_3, window_bounds = array<i64: 32, 32>}, {pipeline_mode = #tpu.pipeline_mode<synchronous>, transform_indices = @transform_4, window_bounds = array<i64: 32, 1>}, {transform_indices = @transform_5, window_bounds = array<i64: 1, 8, 32>}, {transform_indices = @transform_6, window_bounds = array<i64: 1, 32, 256>}]} {
    %c0 = arith.constant 0 : index
    %c0_0 = arith.constant 0 : index
    %c0_1 = arith.constant 0 : index
    %0 = vector.load %arg1[%c0, %c0_0, %c0_1] : memref<1x32x256xf32, #tpu.memory_space<vmem>>, vector<1x32x256xf32>
    %1 = vector.shape_cast %0 : vector<1x32x256xf32> to vector<32x256xf32>
    %c0_2 = arith.constant 0 : index
    %c0_3 = arith.constant 0 : index
    %2 = vector.load %arg2[%c0_2, %c0_3] : memref<32x32xbf16, #tpu.memory_space<vmem>>, vector<32x32xbf16>
    %c0_4 = arith.constant 0 : index
    %c0_5 = arith.constant 0 : index
    %3 = vector.load %arg3[%c0_4, %c0_5] : memref<32x1xf32, #tpu.memory_space<vmem>>, vector<32x1xf32>
    %c0_6 = arith.constant 0 : index
    %c0_7 = arith.constant 0 : index
    %4 = vector.load %arg4[%c0_6, %c0_7] : memref<32x32xbf16, #tpu.memory_space<vmem>>, vector<32x32xbf16>
    %c0_8 = arith.constant 0 : index
    %c0_9 = arith.constant 0 : index
    %5 = vector.load %arg5[%c0_8, %c0_9] : memref<32x1xf32, #tpu.memory_space<vmem>>, vector<32x1xf32>
    %c0_10 = arith.constant 0 : index
    %c0_11 = arith.constant 0 : index
    %c0_12 = arith.constant 0 : index
    %6 = vector.load %arg6[%c0_10, %c0_11, %c0_12] : memref<1x8x32xf32, #tpu.memory_space<vmem>>, vector<1x8x32xf32>
    %7 = vector.shape_cast %6 : vector<1x8x32xf32> to vector<8x32xf32>
    %8 = arith.truncf %1 : vector<32x256xf32> to vector<32x256xbf16>
    %cst = arith.constant dense<0.000000e+00> : vector<32x256xf32>
    %9 = tpu.matmul %2, %8, %cst {dimension_numbers = #tpu.dot_dimension_numbers<[1], [0], [0], [1], [0, 0, 1, 1], [], []>} : vector<32x32xbf16>, vector<32x256xbf16>, vector<32x256xf32> -> vector<32x256xf32>
    %10 = vector.broadcast %3 : vector<32x1xf32> to vector<32x256xf32>
    %11 = arith.addf %9, %10 : vector<32x256xf32>
    %cst_13 = arith.constant 0.000000e+00 : f32
    %12 = vector.broadcast %cst_13 : f32 to vector<32x256xf32>
    %13 = arith.maximumf %11, %12 : vector<32x256xf32>
    %14 = arith.truncf %13 : vector<32x256xf32> to vector<32x256xbf16>
    %15 = arith.truncf %7 : vector<8x32xf32> to vector<8x32xbf16>
    %cst_14 = arith.constant dense<0.000000e+00> : vector<8x256xf32>
    %16 = tpu.matmul %15, %14, %cst_14 {dimension_numbers = #tpu.dot_dimension_numbers<[1], [0], [0], [1], [0, 0, 1, 1], [], []>} : vector<8x32xbf16>, vector<32x256xbf16>, vector<8x256xf32> -> vector<8x256xf32>
    %cst_15 = arith.constant dense<0xFF800000> : vector<256xf32>
    %17 = vector.multi_reduction <maximumf>, %16, %cst_15 [0] : vector<8x256xf32> to vector<256xf32>
    %cst_16 = arith.constant 0xFF800000 : f32
    %18 = vector.broadcast %cst_16 : f32 to vector<256xf32>
    %19 = arith.maximumf %18, %17 : vector<256xf32>
    %20 = vector.shape_cast %19 : vector<256xf32> to vector<1x256xf32>
    %21 = vector.broadcast %20 : vector<1x256xf32> to vector<8x256xf32>
    %22 = arith.subf %16, %21 : vector<8x256xf32>
    %23 = math.exp %22 : vector<8x256xf32>
    %cst_17 = arith.constant dense<0.000000e+00> : vector<256xf32>
    %24 = vector.multi_reduction <add>, %23, %cst_17 [0] : vector<8x256xf32> to vector<256xf32>
    %25 = vector.shape_cast %24 : vector<256xf32> to vector<1x256xf32>
    %26 = vector.broadcast %25 : vector<1x256xf32> to vector<8x256xf32>
    %27 = arith.divf %23, %26 : vector<8x256xf32>
    %28 = arith.truncf %27 : vector<8x256xf32> to vector<8x256xbf16>
    %cst_18 = arith.constant dense<0.000000e+00> : vector<8x8xf32>
    %29 = tpu.matmul %15, %15, %cst_18 {dimension_numbers = #tpu.dot_dimension_numbers<[1], [1], [0], [0], [0, 0, 1, 0], [], []>} : vector<8x32xbf16>, vector<8x32xbf16>, vector<8x8xf32> -> vector<8x8xf32>
    %30 = arith.truncf %29 : vector<8x8xf32> to vector<8x8xbf16>
    %cst_19 = arith.constant dense<0.000000e+00> : vector<8x256xf32>
    %31 = tpu.matmul %30, %28, %cst_19 {dimension_numbers = #tpu.dot_dimension_numbers<[1], [0], [0], [1], [0, 0, 1, 1], [], []>} : vector<8x8xbf16>, vector<8x256xbf16>, vector<8x256xf32> -> vector<8x256xf32>
    %32 = arith.mulf %27, %16 : vector<8x256xf32>
    %cst_20 = arith.constant 9.99999997E-7 : f32
    %33 = vector.broadcast %cst_20 : f32 to vector<8x256xf32>
    %34 = arith.addf %31, %33 : vector<8x256xf32>
    %35 = tpu.reciprocal %34 {approx = true} : vector<8x256xf32> -> vector<8x256xf32>
    %36 = arith.mulf %32, %35 : vector<8x256xf32>
    %37 = arith.truncf %36 : vector<8x256xf32> to vector<8x256xbf16>
    %cst_21 = arith.constant dense<0.000000e+00> : vector<8x32xf32>
    %38 = tpu.matmul %37, %14, %cst_21 {dimension_numbers = #tpu.dot_dimension_numbers<[1], [1], [0], [0], [0, 0, 1, 0], [], []>} : vector<8x256xbf16>, vector<32x256xbf16>, vector<8x32xf32> -> vector<8x32xf32>
    %cst_22 = arith.constant dense<0.000000e+00> : vector<8x8xf32>
    %39 = tpu.matmul %37, %37, %cst_22 {dimension_numbers = #tpu.dot_dimension_numbers<[1], [1], [0], [0], [0, 0, 1, 0], [], []>} : vector<8x256xbf16>, vector<8x256xbf16>, vector<8x8xf32> -> vector<8x8xf32>
    %40 = arith.truncf %39 : vector<8x8xf32> to vector<8x8xbf16>
    %cst_23 = arith.constant dense<0.000000e+00> : vector<8x32xf32>
    %41 = tpu.matmul %40, %15, %cst_23 {dimension_numbers = #tpu.dot_dimension_numbers<[1], [0], [0], [1], [0, 0, 1, 1], [], []>} : vector<8x8xbf16>, vector<8x32xbf16>, vector<8x32xf32> -> vector<8x32xf32>
    %42 = arith.mulf %7, %38 : vector<8x32xf32>
    %cst_24 = arith.constant 9.99999997E-7 : f32
    %43 = vector.broadcast %cst_24 : f32 to vector<8x32xf32>
    %44 = arith.addf %41, %43 : vector<8x32xf32>
    %45 = tpu.reciprocal %44 {approx = true} : vector<8x32xf32> -> vector<8x32xf32>
    %46 = arith.mulf %42, %45 : vector<8x32xf32>
    %47 = arith.truncf %46 : vector<8x32xf32> to vector<8x32xbf16>
    %cst_25 = arith.constant dense<0.000000e+00> : vector<8x256xf32>
    %48 = tpu.matmul %47, %14, %cst_25 {dimension_numbers = #tpu.dot_dimension_numbers<[1], [0], [0], [1], [0, 0, 1, 1], [], []>} : vector<8x32xbf16>, vector<32x256xbf16>, vector<8x256xf32> -> vector<8x256xf32>
    %cst_26 = arith.constant dense<0.000000e+00> : vector<8x8xf32>
    %49 = tpu.matmul %47, %47, %cst_26 {dimension_numbers = #tpu.dot_dimension_numbers<[1], [1], [0], [0], [0, 0, 1, 0], [], []>} : vector<8x32xbf16>, vector<8x32xbf16>, vector<8x8xf32> -> vector<8x8xf32>
    %50 = arith.truncf %49 : vector<8x8xf32> to vector<8x8xbf16>
    %cst_27 = arith.constant dense<0.000000e+00> : vector<8x256xf32>
    %51 = tpu.matmul %50, %37, %cst_27 {dimension_numbers = #tpu.dot_dimension_numbers<[1], [0], [0], [1], [0, 0, 1, 1], [], []>} : vector<8x8xbf16>, vector<8x256xbf16>, vector<8x256xf32> -> vector<8x256xf32>
    %52 = arith.mulf %36, %48 : vector<8x256xf32>
    %cst_28 = arith.constant 9.99999997E-7 : f32
    %53 = vector.broadcast %cst_28 : f32 to vector<8x256xf32>
    %54 = arith.addf %51, %53 : vector<8x256xf32>
    %55 = tpu.reciprocal %54 {approx = true} : vector<8x256xf32> -> vector<8x256xf32>
    %56 = arith.mulf %52, %55 : vector<8x256xf32>
    %57 = arith.truncf %56 : vector<8x256xf32> to vector<8x256xbf16>
    %cst_29 = arith.constant dense<0.000000e+00> : vector<8x32xf32>
    %58 = tpu.matmul %57, %14, %cst_29 {dimension_numbers = #tpu.dot_dimension_numbers<[1], [1], [0], [0], [0, 0, 1, 0], [], []>} : vector<8x256xbf16>, vector<32x256xbf16>, vector<8x32xf32> -> vector<8x32xf32>
    %cst_30 = arith.constant dense<0.000000e+00> : vector<8x8xf32>
    %59 = tpu.matmul %57, %57, %cst_30 {dimension_numbers = #tpu.dot_dimension_numbers<[1], [1], [0], [0], [0, 0, 1, 0], [], []>} : vector<8x256xbf16>, vector<8x256xbf16>, vector<8x8xf32> -> vector<8x8xf32>
    %60 = arith.truncf %59 : vector<8x8xf32> to vector<8x8xbf16>
    %cst_31 = arith.constant dense<0.000000e+00> : vector<8x32xf32>
    %61 = tpu.matmul %60, %47, %cst_31 {dimension_numbers = #tpu.dot_dimension_numbers<[1], [0], [0], [1], [0, 0, 1, 1], [], []>} : vector<8x8xbf16>, vector<8x32xbf16>, vector<8x32xf32> -> vector<8x32xf32>
    %62 = arith.mulf %46, %58 : vector<8x32xf32>
    %cst_32 = arith.constant 9.99999997E-7 : f32
    %63 = vector.broadcast %cst_32 : f32 to vector<8x32xf32>
    %64 = arith.addf %61, %63 : vector<8x32xf32>
    %65 = tpu.reciprocal %64 {approx = true} : vector<8x32xf32> -> vector<8x32xf32>
    %66 = arith.mulf %62, %65 : vector<8x32xf32>
    %67 = arith.truncf %66 : vector<8x32xf32> to vector<8x32xbf16>
    %cst_33 = arith.constant dense<0.000000e+00> : vector<8x256xf32>
    %68 = tpu.matmul %67, %14, %cst_33 {dimension_numbers = #tpu.dot_dimension_numbers<[1], [0], [0], [1], [0, 0, 1, 1], [], []>} : vector<8x32xbf16>, vector<32x256xbf16>, vector<8x256xf32> -> vector<8x256xf32>
    %cst_34 = arith.constant dense<0.000000e+00> : vector<8x8xf32>
    %69 = tpu.matmul %67, %67, %cst_34 {dimension_numbers = #tpu.dot_dimension_numbers<[1], [1], [0], [0], [0, 0, 1, 0], [], []>} : vector<8x32xbf16>, vector<8x32xbf16>, vector<8x8xf32> -> vector<8x8xf32>
    %70 = arith.truncf %69 : vector<8x8xf32> to vector<8x8xbf16>
    %cst_35 = arith.constant dense<0.000000e+00> : vector<8x256xf32>
    %71 = tpu.matmul %70, %57, %cst_35 {dimension_numbers = #tpu.dot_dimension_numbers<[1], [0], [0], [1], [0, 0, 1, 1], [], []>} : vector<8x8xbf16>, vector<8x256xbf16>, vector<8x256xf32> -> vector<8x256xf32>
    %72 = arith.mulf %56, %68 : vector<8x256xf32>
    %cst_36 = arith.constant 9.99999997E-7 : f32
    %73 = vector.broadcast %cst_36 : f32 to vector<8x256xf32>
    %74 = arith.addf %71, %73 : vector<8x256xf32>
    %75 = tpu.reciprocal %74 {approx = true} : vector<8x256xf32> -> vector<8x256xf32>
    %76 = arith.mulf %72, %75 : vector<8x256xf32>
    %77 = arith.truncf %76 : vector<8x256xf32> to vector<8x256xbf16>
    %cst_37 = arith.constant dense<0.000000e+00> : vector<8x32xf32>
    %78 = tpu.matmul %77, %14, %cst_37 {dimension_numbers = #tpu.dot_dimension_numbers<[1], [1], [0], [0], [0, 0, 1, 0], [], []>} : vector<8x256xbf16>, vector<32x256xbf16>, vector<8x32xf32> -> vector<8x32xf32>
    %cst_38 = arith.constant dense<0.000000e+00> : vector<8x8xf32>
    %79 = tpu.matmul %77, %77, %cst_38 {dimension_numbers = #tpu.dot_dimension_numbers<[1], [1], [0], [0], [0, 0, 1, 0], [], []>} : vector<8x256xbf16>, vector<8x256xbf16>, vector<8x8xf32> -> vector<8x8xf32>
    %80 = arith.truncf %79 : vector<8x8xf32> to vector<8x8xbf16>
    %cst_39 = arith.constant dense<0.000000e+00> : vector<8x32xf32>
    %81 = tpu.matmul %80, %67, %cst_39 {dimension_numbers = #tpu.dot_dimension_numbers<[1], [0], [0], [1], [0, 0, 1, 1], [], []>} : vector<8x8xbf16>, vector<8x32xbf16>, vector<8x32xf32> -> vector<8x32xf32>
    %82 = arith.mulf %66, %78 : vector<8x32xf32>
    %cst_40 = arith.constant 9.99999997E-7 : f32
    %83 = vector.broadcast %cst_40 : f32 to vector<8x32xf32>
    %84 = arith.addf %81, %83 : vector<8x32xf32>
    %85 = tpu.reciprocal %84 {approx = true} : vector<8x32xf32> -> vector<8x32xf32>
    %86 = arith.mulf %82, %85 : vector<8x32xf32>
    %87 = arith.truncf %86 : vector<8x32xf32> to vector<8x32xbf16>
    %cst_41 = arith.constant dense<0.000000e+00> : vector<8x256xf32>
    %88 = tpu.matmul %87, %14, %cst_41 {dimension_numbers = #tpu.dot_dimension_numbers<[1], [0], [0], [1], [0, 0, 1, 1], [], []>} : vector<8x32xbf16>, vector<32x256xbf16>, vector<8x256xf32> -> vector<8x256xf32>
    %cst_42 = arith.constant dense<0.000000e+00> : vector<8x8xf32>
    %89 = tpu.matmul %87, %87, %cst_42 {dimension_numbers = #tpu.dot_dimension_numbers<[1], [1], [0], [0], [0, 0, 1, 0], [], []>} : vector<8x32xbf16>, vector<8x32xbf16>, vector<8x8xf32> -> vector<8x8xf32>
    %90 = arith.truncf %89 : vector<8x8xf32> to vector<8x8xbf16>
    %cst_43 = arith.constant dense<0.000000e+00> : vector<8x256xf32>
    %91 = tpu.matmul %90, %77, %cst_43 {dimension_numbers = #tpu.dot_dimension_numbers<[1], [0], [0], [1], [0, 0, 1, 1], [], []>} : vector<8x8xbf16>, vector<8x256xbf16>, vector<8x256xf32> -> vector<8x256xf32>
    %92 = arith.mulf %76, %88 : vector<8x256xf32>
    %cst_44 = arith.constant 9.99999997E-7 : f32
    %93 = vector.broadcast %cst_44 : f32 to vector<8x256xf32>
    %94 = arith.addf %91, %93 : vector<8x256xf32>
    %95 = tpu.reciprocal %94 {approx = true} : vector<8x256xf32> -> vector<8x256xf32>
    %96 = arith.mulf %92, %95 : vector<8x256xf32>
    %97 = arith.truncf %96 : vector<8x256xf32> to vector<8x256xbf16>
    %cst_45 = arith.constant dense<0.000000e+00> : vector<8x32xf32>
    %98 = tpu.matmul %97, %14, %cst_45 {dimension_numbers = #tpu.dot_dimension_numbers<[1], [1], [0], [0], [0, 0, 1, 0], [], []>} : vector<8x256xbf16>, vector<32x256xbf16>, vector<8x32xf32> -> vector<8x32xf32>
    %cst_46 = arith.constant dense<0.000000e+00> : vector<8x8xf32>
    %99 = tpu.matmul %97, %97, %cst_46 {dimension_numbers = #tpu.dot_dimension_numbers<[1], [1], [0], [0], [0, 0, 1, 0], [], []>} : vector<8x256xbf16>, vector<8x256xbf16>, vector<8x8xf32> -> vector<8x8xf32>
    %100 = arith.truncf %99 : vector<8x8xf32> to vector<8x8xbf16>
    %cst_47 = arith.constant dense<0.000000e+00> : vector<8x32xf32>
    %101 = tpu.matmul %100, %87, %cst_47 {dimension_numbers = #tpu.dot_dimension_numbers<[1], [0], [0], [1], [0, 0, 1, 1], [], []>} : vector<8x8xbf16>, vector<8x32xbf16>, vector<8x32xf32> -> vector<8x32xf32>
    %102 = arith.mulf %86, %98 : vector<8x32xf32>
    %cst_48 = arith.constant 9.99999997E-7 : f32
    %103 = vector.broadcast %cst_48 : f32 to vector<8x32xf32>
    %104 = arith.addf %101, %103 : vector<8x32xf32>
    %105 = tpu.reciprocal %104 {approx = true} : vector<8x32xf32> -> vector<8x32xf32>
    %106 = arith.mulf %102, %105 : vector<8x32xf32>
    %107 = arith.truncf %106 : vector<8x32xf32> to vector<8x32xbf16>
    %cst_49 = arith.constant dense<0.000000e+00> : vector<8x256xf32>
    %108 = tpu.matmul %107, %14, %cst_49 {dimension_numbers = #tpu.dot_dimension_numbers<[1], [0], [0], [1], [0, 0, 1, 1], [], []>} : vector<8x32xbf16>, vector<32x256xbf16>, vector<8x256xf32> -> vector<8x256xf32>
    %cst_50 = arith.constant dense<0.000000e+00> : vector<8x8xf32>
    %109 = tpu.matmul %107, %107, %cst_50 {dimension_numbers = #tpu.dot_dimension_numbers<[1], [1], [0], [0], [0, 0, 1, 0], [], []>} : vector<8x32xbf16>, vector<8x32xbf16>, vector<8x8xf32> -> vector<8x8xf32>
    %110 = arith.truncf %109 : vector<8x8xf32> to vector<8x8xbf16>
    %cst_51 = arith.constant dense<0.000000e+00> : vector<8x256xf32>
    %111 = tpu.matmul %110, %97, %cst_51 {dimension_numbers = #tpu.dot_dimension_numbers<[1], [0], [0], [1], [0, 0, 1, 1], [], []>} : vector<8x8xbf16>, vector<8x256xbf16>, vector<8x256xf32> -> vector<8x256xf32>
    %112 = arith.mulf %96, %108 : vector<8x256xf32>
    %cst_52 = arith.constant 9.99999997E-7 : f32
    %113 = vector.broadcast %cst_52 : f32 to vector<8x256xf32>
    %114 = arith.addf %111, %113 : vector<8x256xf32>
    %115 = tpu.reciprocal %114 {approx = true} : vector<8x256xf32> -> vector<8x256xf32>
    %116 = arith.mulf %112, %115 : vector<8x256xf32>
    %117 = arith.truncf %116 : vector<8x256xf32> to vector<8x256xbf16>
    %cst_53 = arith.constant dense<0.000000e+00> : vector<8x32xf32>
    %118 = tpu.matmul %117, %14, %cst_53 {dimension_numbers = #tpu.dot_dimension_numbers<[1], [1], [0], [0], [0, 0, 1, 0], [], []>} : vector<8x256xbf16>, vector<32x256xbf16>, vector<8x32xf32> -> vector<8x32xf32>
    %cst_54 = arith.constant dense<0.000000e+00> : vector<8x8xf32>
    %119 = tpu.matmul %117, %117, %cst_54 {dimension_numbers = #tpu.dot_dimension_numbers<[1], [1], [0], [0], [0, 0, 1, 0], [], []>} : vector<8x256xbf16>, vector<8x256xbf16>, vector<8x8xf32> -> vector<8x8xf32>
    %120 = arith.truncf %119 : vector<8x8xf32> to vector<8x8xbf16>
    %cst_55 = arith.constant dense<0.000000e+00> : vector<8x32xf32>
    %121 = tpu.matmul %120, %107, %cst_55 {dimension_numbers = #tpu.dot_dimension_numbers<[1], [0], [0], [1], [0, 0, 1, 1], [], []>} : vector<8x8xbf16>, vector<8x32xbf16>, vector<8x32xf32> -> vector<8x32xf32>
    %122 = arith.mulf %106, %118 : vector<8x32xf32>
    %cst_56 = arith.constant 9.99999997E-7 : f32
    %123 = vector.broadcast %cst_56 : f32 to vector<8x32xf32>
    %124 = arith.addf %121, %123 : vector<8x32xf32>
    %125 = tpu.reciprocal %124 {approx = true} : vector<8x32xf32> -> vector<8x32xf32>
    %126 = arith.mulf %122, %125 : vector<8x32xf32>
    %127 = arith.truncf %126 : vector<8x32xf32> to vector<8x32xbf16>
    %cst_57 = arith.constant dense<0.000000e+00> : vector<8x256xf32>
    %128 = tpu.matmul %127, %14, %cst_57 {dimension_numbers = #tpu.dot_dimension_numbers<[1], [0], [0], [1], [0, 0, 1, 1], [], []>} : vector<8x32xbf16>, vector<32x256xbf16>, vector<8x256xf32> -> vector<8x256xf32>
    %cst_58 = arith.constant dense<0.000000e+00> : vector<8x8xf32>
    %129 = tpu.matmul %127, %127, %cst_58 {dimension_numbers = #tpu.dot_dimension_numbers<[1], [1], [0], [0], [0, 0, 1, 0], [], []>} : vector<8x32xbf16>, vector<8x32xbf16>, vector<8x8xf32> -> vector<8x8xf32>
    %130 = arith.truncf %129 : vector<8x8xf32> to vector<8x8xbf16>
    %cst_59 = arith.constant dense<0.000000e+00> : vector<8x256xf32>
    %131 = tpu.matmul %130, %117, %cst_59 {dimension_numbers = #tpu.dot_dimension_numbers<[1], [0], [0], [1], [0, 0, 1, 1], [], []>} : vector<8x8xbf16>, vector<8x256xbf16>, vector<8x256xf32> -> vector<8x256xf32>
    %132 = arith.mulf %116, %128 : vector<8x256xf32>
    %cst_60 = arith.constant 9.99999997E-7 : f32
    %133 = vector.broadcast %cst_60 : f32 to vector<8x256xf32>
    %134 = arith.addf %131, %133 : vector<8x256xf32>
    %135 = tpu.reciprocal %134 {approx = true} : vector<8x256xf32> -> vector<8x256xf32>
    %136 = arith.mulf %132, %135 : vector<8x256xf32>
    %137 = arith.truncf %136 : vector<8x256xf32> to vector<8x256xbf16>
    %cst_61 = arith.constant dense<0.000000e+00> : vector<8x32xf32>
    %138 = tpu.matmul %137, %14, %cst_61 {dimension_numbers = #tpu.dot_dimension_numbers<[1], [1], [0], [0], [0, 0, 1, 0], [], []>} : vector<8x256xbf16>, vector<32x256xbf16>, vector<8x32xf32> -> vector<8x32xf32>
    %cst_62 = arith.constant dense<0.000000e+00> : vector<8x8xf32>
    %139 = tpu.matmul %137, %137, %cst_62 {dimension_numbers = #tpu.dot_dimension_numbers<[1], [1], [0], [0], [0, 0, 1, 0], [], []>} : vector<8x256xbf16>, vector<8x256xbf16>, vector<8x8xf32> -> vector<8x8xf32>
    %140 = arith.truncf %139 : vector<8x8xf32> to vector<8x8xbf16>
    %cst_63 = arith.constant dense<0.000000e+00> : vector<8x32xf32>
    %141 = tpu.matmul %140, %127, %cst_63 {dimension_numbers = #tpu.dot_dimension_numbers<[1], [0], [0], [1], [0, 0, 1, 1], [], []>} : vector<8x8xbf16>, vector<8x32xbf16>, vector<8x32xf32> -> vector<8x32xf32>
    %142 = arith.mulf %126, %138 : vector<8x32xf32>
    %cst_64 = arith.constant 9.99999997E-7 : f32
    %143 = vector.broadcast %cst_64 : f32 to vector<8x32xf32>
    %144 = arith.addf %141, %143 : vector<8x32xf32>
    %145 = tpu.reciprocal %144 {approx = true} : vector<8x32xf32> -> vector<8x32xf32>
    %146 = arith.mulf %142, %145 : vector<8x32xf32>
    %147 = arith.truncf %146 : vector<8x32xf32> to vector<8x32xbf16>
    %cst_65 = arith.constant dense<0.000000e+00> : vector<8x256xf32>
    %148 = tpu.matmul %147, %14, %cst_65 {dimension_numbers = #tpu.dot_dimension_numbers<[1], [0], [0], [1], [0, 0, 1, 1], [], []>} : vector<8x32xbf16>, vector<32x256xbf16>, vector<8x256xf32> -> vector<8x256xf32>
    %cst_66 = arith.constant dense<0.000000e+00> : vector<8x8xf32>
    %149 = tpu.matmul %147, %147, %cst_66 {dimension_numbers = #tpu.dot_dimension_numbers<[1], [1], [0], [0], [0, 0, 1, 0], [], []>} : vector<8x32xbf16>, vector<8x32xbf16>, vector<8x8xf32> -> vector<8x8xf32>
    %150 = arith.truncf %149 : vector<8x8xf32> to vector<8x8xbf16>
    %cst_67 = arith.constant dense<0.000000e+00> : vector<8x256xf32>
    %151 = tpu.matmul %150, %137, %cst_67 {dimension_numbers = #tpu.dot_dimension_numbers<[1], [0], [0], [1], [0, 0, 1, 1], [], []>} : vector<8x8xbf16>, vector<8x256xbf16>, vector<8x256xf32> -> vector<8x256xf32>
    %152 = arith.mulf %136, %148 : vector<8x256xf32>
    %cst_68 = arith.constant 9.99999997E-7 : f32
    %153 = vector.broadcast %cst_68 : f32 to vector<8x256xf32>
    %154 = arith.addf %151, %153 : vector<8x256xf32>
    %155 = tpu.reciprocal %154 {approx = true} : vector<8x256xf32> -> vector<8x256xf32>
    %156 = arith.mulf %152, %155 : vector<8x256xf32>
    %157 = arith.truncf %156 : vector<8x256xf32> to vector<8x256xbf16>
    %cst_69 = arith.constant dense<0.000000e+00> : vector<32x8xf32>
    %158 = tpu.matmul %4, %147, %cst_69 {dimension_numbers = #tpu.dot_dimension_numbers<[1], [1], [0], [0], [0, 0, 1, 0], [], []>} : vector<32x32xbf16>, vector<8x32xbf16>, vector<32x8xf32> -> vector<32x8xf32>
    %159 = arith.truncf %158 : vector<32x8xf32> to vector<32x8xbf16>
    %cst_70 = arith.constant dense<0.000000e+00> : vector<32x256xf32>
    %160 = tpu.matmul %159, %157, %cst_70 {dimension_numbers = #tpu.dot_dimension_numbers<[1], [0], [0], [1], [0, 0, 1, 1], [], []>} : vector<32x8xbf16>, vector<8x256xbf16>, vector<32x256xf32> -> vector<32x256xf32>
    %161 = vector.broadcast %5 : vector<32x1xf32> to vector<32x256xf32>
    %162 = arith.addf %160, %161 : vector<32x256xf32>
    %163 = arith.addf %1, %162 : vector<32x256xf32>
    %cst_71 = arith.constant 0.000000e+00 : f32
    %164 = vector.broadcast %cst_71 : f32 to vector<32x256xf32>
    %165 = arith.maximumf %163, %164 : vector<32x256xf32>
    %c0_72 = arith.constant 0 : index
    %c0_73 = arith.constant 0 : index
    %c0_74 = arith.constant 0 : index
    %166 = vector.load %arg7[%c0_72, %c0_73, %c0_74] : memref<1x32x256xf32, #tpu.memory_space<vmem>>, vector<1x32x256xf32>
    %167 = vector.shape_cast %166 : vector<1x32x256xf32> to vector<32x256xf32>
    %168 = vector.shape_cast %165 : vector<32x256xf32> to vector<1x32x256xf32>
    tpu.vector_store %arg7[%c0_72, %c0_73, %c0_74], %168 {strides = array<i32>} : memref<1x32x256xf32, #tpu.memory_space<vmem>>, vector<1x32x256xf32>,
    return
  }
  func.func @transform_0(%arg0: i32) -> (i32, i32, i32) {
    %c0_i32 = arith.constant 0 : i32
    %c0_i32_0 = arith.constant 0 : i32
    %c0_i32_1 = arith.constant 0 : i32
    return %arg0, %c0_i32, %c0_i32_0 : i32, i32, i32
  }
  func.func @transform_1(%arg0: i32) -> (i32, i32) {
    %c0_i32 = arith.constant 0 : i32
    %c0_i32_0 = arith.constant 0 : i32
    %c0_i32_1 = arith.constant 0 : i32
    return %c0_i32, %c0_i32_0 : i32, i32
  }
  func.func @transform_2(%arg0: i32) -> (i32, i32) {
    %c0_i32 = arith.constant 0 : i32
    %c0_i32_0 = arith.constant 0 : i32
    %c0_i32_1 = arith.constant 0 : i32
    return %c0_i32, %c0_i32_0 : i32, i32
  }
  func.func @transform_3(%arg0: i32) -> (i32, i32) {
    %c0_i32 = arith.constant 0 : i32
    %c0_i32_0 = arith.constant 0 : i32
    %c0_i32_1 = arith.constant 0 : i32
    return %c0_i32, %c0_i32_0 : i32, i32
  }
  func.func @transform_4(%arg0: i32) -> (i32, i32) {
    %c0_i32 = arith.constant 0 : i32
    %c0_i32_0 = arith.constant 0 : i32
    %c0_i32_1 = arith.constant 0 : i32
    return %c0_i32, %c0_i32_0 : i32, i32
  }
  func.func @transform_5(%arg0: i32) -> (i32, i32, i32) {
    %c0_i32 = arith.constant 0 : i32
    %c0_i32_0 = arith.constant 0 : i32
    %c0_i32_1 = arith.constant 0 : i32
    return %arg0, %c0_i32, %c0_i32_0 : i32, i32, i32
  }
  func.func @transform_6(%arg0: i32) -> (i32, i32, i32) {
    %c0_i32 = arith.constant 0 : i32
    %c0_i32_0 = arith.constant 0 : i32
    %c0_i32_1 = arith.constant 0 : i32
    return %arg0, %c0_i32, %c0_i32_0 : i32, i32, i32
  }
}

module attributes {stable_mosaic.version = 11 : i64} {
  func.func @_hamburger_kernel(%arg0: i32, %arg1: memref<1x32x256xf32, #tpu.memory_space<vmem>>, %arg2: memref<32x32xbf16, #tpu.memory_space<vmem>>, %arg3: memref<32x1xf32, #tpu.memory_space<vmem>>, %arg4: memref<32x32xbf16, #tpu.memory_space<vmem>>, %arg5: memref<32x1xf32, #tpu.memory_space<vmem>>, %arg6: memref<1x8x32xf32, #tpu.memory_space<vmem>>, %arg7: memref<1x32x256xf32, #tpu.memory_space<vmem>>) attributes {dimension_semantics = [#tpu.dimension_semantics<parallel>], iteration_bounds = array<i64: 2>, scalar_prefetch = 0 : i64, scratch_operands = 0 : i64, tpu.core_type = #tpu.core_type<tc>, window_params = [{transform_indices = @transform_0, window_bounds = array<i64: 1, 32, 256>}, {pipeline_mode = #tpu.pipeline_mode<synchronous>, transform_indices = @transform_1, window_bounds = array<i64: 32, 32>}, {pipeline_mode = #tpu.pipeline_mode<synchronous>, transform_indices = @transform_2, window_bounds = array<i64: 32, 1>}, {pipeline_mode = #tpu.pipeline_mode<synchronous>, transform_indices = @transform_3, window_bounds = array<i64: 32, 32>}, {pipeline_mode = #tpu.pipeline_mode<synchronous>, transform_indices = @transform_4, window_bounds = array<i64: 32, 1>}, {transform_indices = @transform_5, window_bounds = array<i64: 1, 8, 32>}, {transform_indices = @transform_6, window_bounds = array<i64: 1, 32, 256>}]} {
    %c0 = arith.constant 0 : index
    %c0_0 = arith.constant 0 : index
    %c0_1 = arith.constant 0 : index
    %0 = vector.load %arg1[%c0, %c0_0, %c0_1] : memref<1x32x256xf32, #tpu.memory_space<vmem>>, vector<1x32x256xf32>
    %1 = vector.shape_cast %0 : vector<1x32x256xf32> to vector<32x256xf32>
    %c0_2 = arith.constant 0 : index
    %c0_3 = arith.constant 0 : index
    %2 = vector.load %arg2[%c0_2, %c0_3] : memref<32x32xbf16, #tpu.memory_space<vmem>>, vector<32x32xbf16>
    %c0_4 = arith.constant 0 : index
    %c0_5 = arith.constant 0 : index
    %3 = vector.load %arg3[%c0_4, %c0_5] : memref<32x1xf32, #tpu.memory_space<vmem>>, vector<32x1xf32>
    %c0_6 = arith.constant 0 : index
    %c0_7 = arith.constant 0 : index
    %4 = vector.load %arg4[%c0_6, %c0_7] : memref<32x32xbf16, #tpu.memory_space<vmem>>, vector<32x32xbf16>
    %c0_8 = arith.constant 0 : index
    %c0_9 = arith.constant 0 : index
    %5 = vector.load %arg5[%c0_8, %c0_9] : memref<32x1xf32, #tpu.memory_space<vmem>>, vector<32x1xf32>
    %c0_10 = arith.constant 0 : index
    %c0_11 = arith.constant 0 : index
    %c0_12 = arith.constant 0 : index
    %6 = vector.load %arg6[%c0_10, %c0_11, %c0_12] : memref<1x8x32xf32, #tpu.memory_space<vmem>>, vector<1x8x32xf32>
    %7 = vector.shape_cast %6 : vector<1x8x32xf32> to vector<8x32xf32>
    %8 = arith.truncf %1 : vector<32x256xf32> to vector<32x256xbf16>
    %cst = arith.constant dense<0.000000e+00> : vector<32x256xf32>
    %9 = tpu.matmul %2, %8, %cst {dimension_numbers = #tpu.dot_dimension_numbers<[1], [0], [0], [1], [0, 0, 1, 1], [], []>} : vector<32x32xbf16>, vector<32x256xbf16>, vector<32x256xf32> -> vector<32x256xf32>
    %10 = vector.broadcast %3 : vector<32x1xf32> to vector<32x256xf32>
    %11 = arith.addf %9, %10 : vector<32x256xf32>
    %cst_13 = arith.constant 0.000000e+00 : f32
    %12 = vector.broadcast %cst_13 : f32 to vector<32x256xf32>
    %13 = arith.maximumf %11, %12 : vector<32x256xf32>
    %14 = arith.truncf %13 : vector<32x256xf32> to vector<32x256xbf16>
    %15 = arith.truncf %7 : vector<8x32xf32> to vector<8x32xbf16>
    %cst_14 = arith.constant dense<0.000000e+00> : vector<8x256xf32>
    %16 = tpu.matmul %15, %14, %cst_14 {dimension_numbers = #tpu.dot_dimension_numbers<[1], [0], [0], [1], [0, 0, 1, 1], [], []>} : vector<8x32xbf16>, vector<32x256xbf16>, vector<8x256xf32> -> vector<8x256xf32>
    %cst_15 = arith.constant dense<0xFF800000> : vector<256xf32>
    %17 = vector.multi_reduction <maximumf>, %16, %cst_15 [0] : vector<8x256xf32> to vector<256xf32>
    %cst_16 = arith.constant 0xFF800000 : f32
    %18 = vector.broadcast %cst_16 : f32 to vector<256xf32>
    %19 = arith.maximumf %18, %17 : vector<256xf32>
    %20 = vector.shape_cast %19 : vector<256xf32> to vector<1x256xf32>
    %21 = vector.broadcast %20 : vector<1x256xf32> to vector<8x256xf32>
    %22 = arith.subf %16, %21 : vector<8x256xf32>
    %23 = math.exp %22 : vector<8x256xf32>
    %cst_17 = arith.constant dense<0.000000e+00> : vector<256xf32>
    %24 = vector.multi_reduction <add>, %23, %cst_17 [0] : vector<8x256xf32> to vector<256xf32>
    %25 = vector.shape_cast %24 : vector<256xf32> to vector<1x256xf32>
    %26 = vector.broadcast %25 : vector<1x256xf32> to vector<8x256xf32>
    %27 = arith.divf %23, %26 : vector<8x256xf32>
    %28 = arith.truncf %27 : vector<8x256xf32> to vector<8x256xbf16>
    %cst_18 = arith.constant dense<0.000000e+00> : vector<8x8xf32>
    %29 = tpu.matmul %15, %15, %cst_18 {dimension_numbers = #tpu.dot_dimension_numbers<[1], [1], [0], [0], [0, 0, 1, 0], [], []>} : vector<8x32xbf16>, vector<8x32xbf16>, vector<8x8xf32> -> vector<8x8xf32>
    %30 = arith.truncf %29 : vector<8x8xf32> to vector<8x8xbf16>
    %cst_19 = arith.constant dense<0.000000e+00> : vector<8x256xf32>
    %31 = tpu.matmul %30, %28, %cst_19 {dimension_numbers = #tpu.dot_dimension_numbers<[1], [0], [0], [1], [0, 0, 1, 1], [], []>} : vector<8x8xbf16>, vector<8x256xbf16>, vector<8x256xf32> -> vector<8x256xf32>
    %32 = arith.mulf %27, %16 : vector<8x256xf32>
    %cst_20 = arith.constant 9.99999997E-7 : f32
    %33 = vector.broadcast %cst_20 : f32 to vector<8x256xf32>
    %34 = arith.addf %31, %33 : vector<8x256xf32>
    %35 = tpu.reciprocal %34 {approx = true} : vector<8x256xf32> -> vector<8x256xf32>
    %36 = arith.mulf %32, %35 : vector<8x256xf32>
    %37 = arith.truncf %36 : vector<8x256xf32> to vector<8x256xbf16>
    %cst_21 = arith.constant dense<0.000000e+00> : vector<8x32xf32>
    %38 = tpu.matmul %37, %14, %cst_21 {dimension_numbers = #tpu.dot_dimension_numbers<[1], [1], [0], [0], [0, 0, 1, 0], [], []>} : vector<8x256xbf16>, vector<32x256xbf16>, vector<8x32xf32> -> vector<8x32xf32>
    %cst_22 = arith.constant dense<0.000000e+00> : vector<8x8xf32>
    %39 = tpu.matmul %37, %37, %cst_22 {dimension_numbers = #tpu.dot_dimension_numbers<[1], [1], [0], [0], [0, 0, 1, 0], [], []>} : vector<8x256xbf16>, vector<8x256xbf16>, vector<8x8xf32> -> vector<8x8xf32>
    %40 = arith.truncf %39 : vector<8x8xf32> to vector<8x8xbf16>
    %cst_23 = arith.constant dense<0.000000e+00> : vector<8x32xf32>
    %41 = tpu.matmul %40, %15, %cst_23 {dimension_numbers = #tpu.dot_dimension_numbers<[1], [0], [0], [1], [0, 0, 1, 1], [], []>} : vector<8x8xbf16>, vector<8x32xbf16>, vector<8x32xf32> -> vector<8x32xf32>
    %42 = arith.mulf %7, %38 : vector<8x32xf32>
    %cst_24 = arith.constant 9.99999997E-7 : f32
    %43 = vector.broadcast %cst_24 : f32 to vector<8x32xf32>
    %44 = arith.addf %41, %43 : vector<8x32xf32>
    %45 = tpu.reciprocal %44 {approx = true} : vector<8x32xf32> -> vector<8x32xf32>
    %46 = arith.mulf %42, %45 : vector<8x32xf32>
    %47 = arith.truncf %46 : vector<8x32xf32> to vector<8x32xbf16>
    %cst_25 = arith.constant dense<0.000000e+00> : vector<8x256xf32>
    %48 = tpu.matmul %47, %14, %cst_25 {dimension_numbers = #tpu.dot_dimension_numbers<[1], [0], [0], [1], [0, 0, 1, 1], [], []>} : vector<8x32xbf16>, vector<32x256xbf16>, vector<8x256xf32> -> vector<8x256xf32>
    %cst_26 = arith.constant dense<0.000000e+00> : vector<8x8xf32>
    %49 = tpu.matmul %47, %47, %cst_26 {dimension_numbers = #tpu.dot_dimension_numbers<[1], [1], [0], [0], [0, 0, 1, 0], [], []>} : vector<8x32xbf16>, vector<8x32xbf16>, vector<8x8xf32> -> vector<8x8xf32>
    %50 = arith.truncf %49 : vector<8x8xf32> to vector<8x8xbf16>
    %cst_27 = arith.constant dense<0.000000e+00> : vector<8x256xf32>
    %51 = tpu.matmul %50, %37, %cst_27 {dimension_numbers = #tpu.dot_dimension_numbers<[1], [0], [0], [1], [0, 0, 1, 1], [], []>} : vector<8x8xbf16>, vector<8x256xbf16>, vector<8x256xf32> -> vector<8x256xf32>
    %52 = arith.mulf %36, %48 : vector<8x256xf32>
    %cst_28 = arith.constant 9.99999997E-7 : f32
    %53 = vector.broadcast %cst_28 : f32 to vector<8x256xf32>
    %54 = arith.addf %51, %53 : vector<8x256xf32>
    %55 = tpu.reciprocal %54 {approx = true} : vector<8x256xf32> -> vector<8x256xf32>
    %56 = arith.mulf %52, %55 : vector<8x256xf32>
    %57 = arith.truncf %56 : vector<8x256xf32> to vector<8x256xbf16>
    %cst_29 = arith.constant dense<0.000000e+00> : vector<8x32xf32>
    %58 = tpu.matmul %57, %14, %cst_29 {dimension_numbers = #tpu.dot_dimension_numbers<[1], [1], [0], [0], [0, 0, 1, 0], [], []>} : vector<8x256xbf16>, vector<32x256xbf16>, vector<8x32xf32> -> vector<8x32xf32>
    %cst_30 = arith.constant dense<0.000000e+00> : vector<8x8xf32>
    %59 = tpu.matmul %57, %57, %cst_30 {dimension_numbers = #tpu.dot_dimension_numbers<[1], [1], [0], [0], [0, 0, 1, 0], [], []>} : vector<8x256xbf16>, vector<8x256xbf16>, vector<8x8xf32> -> vector<8x8xf32>
    %60 = arith.truncf %59 : vector<8x8xf32> to vector<8x8xbf16>
    %cst_31 = arith.constant dense<0.000000e+00> : vector<8x32xf32>
    %61 = tpu.matmul %60, %47, %cst_31 {dimension_numbers = #tpu.dot_dimension_numbers<[1], [0], [0], [1], [0, 0, 1, 1], [], []>} : vector<8x8xbf16>, vector<8x32xbf16>, vector<8x32xf32> -> vector<8x32xf32>
    %62 = arith.mulf %46, %58 : vector<8x32xf32>
    %cst_32 = arith.constant 9.99999997E-7 : f32
    %63 = vector.broadcast %cst_32 : f32 to vector<8x32xf32>
    %64 = arith.addf %61, %63 : vector<8x32xf32>
    %65 = tpu.reciprocal %64 {approx = true} : vector<8x32xf32> -> vector<8x32xf32>
    %66 = arith.mulf %62, %65 : vector<8x32xf32>
    %67 = arith.truncf %66 : vector<8x32xf32> to vector<8x32xbf16>
    %cst_33 = arith.constant dense<0.000000e+00> : vector<8x256xf32>
    %68 = tpu.matmul %67, %14, %cst_33 {dimension_numbers = #tpu.dot_dimension_numbers<[1], [0], [0], [1], [0, 0, 1, 1], [], []>} : vector<8x32xbf16>, vector<32x256xbf16>, vector<8x256xf32> -> vector<8x256xf32>
    %cst_34 = arith.constant dense<0.000000e+00> : vector<8x8xf32>
    %69 = tpu.matmul %67, %67, %cst_34 {dimension_numbers = #tpu.dot_dimension_numbers<[1], [1], [0], [0], [0, 0, 1, 0], [], []>} : vector<8x32xbf16>, vector<8x32xbf16>, vector<8x8xf32> -> vector<8x8xf32>
    %70 = arith.truncf %69 : vector<8x8xf32> to vector<8x8xbf16>
    %cst_35 = arith.constant dense<0.000000e+00> : vector<8x256xf32>
    %71 = tpu.matmul %70, %57, %cst_35 {dimension_numbers = #tpu.dot_dimension_numbers<[1], [0], [0], [1], [0, 0, 1, 1], [], []>} : vector<8x8xbf16>, vector<8x256xbf16>, vector<8x256xf32> -> vector<8x256xf32>
    %72 = arith.mulf %56, %68 : vector<8x256xf32>
    %cst_36 = arith.constant 9.99999997E-7 : f32
    %73 = vector.broadcast %cst_36 : f32 to vector<8x256xf32>
    %74 = arith.addf %71, %73 : vector<8x256xf32>
    %75 = tpu.reciprocal %74 {approx = true} : vector<8x256xf32> -> vector<8x256xf32>
    %76 = arith.mulf %72, %75 : vector<8x256xf32>
    %77 = arith.truncf %76 : vector<8x256xf32> to vector<8x256xbf16>
    %cst_37 = arith.constant dense<0.000000e+00> : vector<8x32xf32>
    %78 = tpu.matmul %77, %14, %cst_37 {dimension_numbers = #tpu.dot_dimension_numbers<[1], [1], [0], [0], [0, 0, 1, 0], [], []>} : vector<8x256xbf16>, vector<32x256xbf16>, vector<8x32xf32> -> vector<8x32xf32>
    %cst_38 = arith.constant dense<0.000000e+00> : vector<8x8xf32>
    %79 = tpu.matmul %77, %77, %cst_38 {dimension_numbers = #tpu.dot_dimension_numbers<[1], [1], [0], [0], [0, 0, 1, 0], [], []>} : vector<8x256xbf16>, vector<8x256xbf16>, vector<8x8xf32> -> vector<8x8xf32>
    %80 = arith.truncf %79 : vector<8x8xf32> to vector<8x8xbf16>
    %cst_39 = arith.constant dense<0.000000e+00> : vector<8x32xf32>
    %81 = tpu.matmul %80, %67, %cst_39 {dimension_numbers = #tpu.dot_dimension_numbers<[1], [0], [0], [1], [0, 0, 1, 1], [], []>} : vector<8x8xbf16>, vector<8x32xbf16>, vector<8x32xf32> -> vector<8x32xf32>
    %82 = arith.mulf %66, %78 : vector<8x32xf32>
    %cst_40 = arith.constant 9.99999997E-7 : f32
    %83 = vector.broadcast %cst_40 : f32 to vector<8x32xf32>
    %84 = arith.addf %81, %83 : vector<8x32xf32>
    %85 = tpu.reciprocal %84 {approx = true} : vector<8x32xf32> -> vector<8x32xf32>
    %86 = arith.mulf %82, %85 : vector<8x32xf32>
    %87 = arith.truncf %86 : vector<8x32xf32> to vector<8x32xbf16>
    %cst_41 = arith.constant dense<0.000000e+00> : vector<8x256xf32>
    %88 = tpu.matmul %87, %14, %cst_41 {dimension_numbers = #tpu.dot_dimension_numbers<[1], [0], [0], [1], [0, 0, 1, 1], [], []>} : vector<8x32xbf16>, vector<32x256xbf16>, vector<8x256xf32> -> vector<8x256xf32>
    %cst_42 = arith.constant dense<0.000000e+00> : vector<8x8xf32>
    %89 = tpu.matmul %87, %87, %cst_42 {dimension_numbers = #tpu.dot_dimension_numbers<[1], [1], [0], [0], [0, 0, 1, 0], [], []>} : vector<8x32xbf16>, vector<8x32xbf16>, vector<8x8xf32> -> vector<8x8xf32>
    %90 = arith.truncf %89 : vector<8x8xf32> to vector<8x8xbf16>
    %cst_43 = arith.constant dense<0.000000e+00> : vector<8x256xf32>
    %91 = tpu.matmul %90, %77, %cst_43 {dimension_numbers = #tpu.dot_dimension_numbers<[1], [0], [0], [1], [0, 0, 1, 1], [], []>} : vector<8x8xbf16>, vector<8x256xbf16>, vector<8x256xf32> -> vector<8x256xf32>
    %92 = arith.mulf %76, %88 : vector<8x256xf32>
    %cst_44 = arith.constant 9.99999997E-7 : f32
    %93 = vector.broadcast %cst_44 : f32 to vector<8x256xf32>
    %94 = arith.addf %91, %93 : vector<8x256xf32>
    %95 = tpu.reciprocal %94 {approx = true} : vector<8x256xf32> -> vector<8x256xf32>
    %96 = arith.mulf %92, %95 : vector<8x256xf32>
    %97 = arith.truncf %96 : vector<8x256xf32> to vector<8x256xbf16>
    %cst_45 = arith.constant dense<0.000000e+00> : vector<8x32xf32>
    %98 = tpu.matmul %97, %14, %cst_45 {dimension_numbers = #tpu.dot_dimension_numbers<[1], [1], [0], [0], [0, 0, 1, 0], [], []>} : vector<8x256xbf16>, vector<32x256xbf16>, vector<8x32xf32> -> vector<8x32xf32>
    %cst_46 = arith.constant dense<0.000000e+00> : vector<8x8xf32>
    %99 = tpu.matmul %97, %97, %cst_46 {dimension_numbers = #tpu.dot_dimension_numbers<[1], [1], [0], [0], [0, 0, 1, 0], [], []>} : vector<8x256xbf16>, vector<8x256xbf16>, vector<8x8xf32> -> vector<8x8xf32>
    %100 = arith.truncf %99 : vector<8x8xf32> to vector<8x8xbf16>
    %cst_47 = arith.constant dense<0.000000e+00> : vector<8x32xf32>
    %101 = tpu.matmul %100, %87, %cst_47 {dimension_numbers = #tpu.dot_dimension_numbers<[1], [0], [0], [1], [0, 0, 1, 1], [], []>} : vector<8x8xbf16>, vector<8x32xbf16>, vector<8x32xf32> -> vector<8x32xf32>
    %102 = arith.mulf %86, %98 : vector<8x32xf32>
    %cst_48 = arith.constant 9.99999997E-7 : f32
    %103 = vector.broadcast %cst_48 : f32 to vector<8x32xf32>
    %104 = arith.addf %101, %103 : vector<8x32xf32>
    %105 = tpu.reciprocal %104 {approx = true} : vector<8x32xf32> -> vector<8x32xf32>
    %106 = arith.mulf %102, %105 : vector<8x32xf32>
    %107 = arith.truncf %106 : vector<8x32xf32> to vector<8x32xbf16>
    %cst_49 = arith.constant dense<0.000000e+00> : vector<8x256xf32>
    %108 = tpu.matmul %107, %14, %cst_49 {dimension_numbers = #tpu.dot_dimension_numbers<[1], [0], [0], [1], [0, 0, 1, 1], [], []>} : vector<8x32xbf16>, vector<32x256xbf16>, vector<8x256xf32> -> vector<8x256xf32>
    %cst_50 = arith.constant dense<0.000000e+00> : vector<8x8xf32>
    %109 = tpu.matmul %107, %107, %cst_50 {dimension_numbers = #tpu.dot_dimension_numbers<[1], [1], [0], [0], [0, 0, 1, 0], [], []>} : vector<8x32xbf16>, vector<8x32xbf16>, vector<8x8xf32> -> vector<8x8xf32>
    %110 = arith.truncf %109 : vector<8x8xf32> to vector<8x8xbf16>
    %cst_51 = arith.constant dense<0.000000e+00> : vector<8x256xf32>
    %111 = tpu.matmul %110, %97, %cst_51 {dimension_numbers = #tpu.dot_dimension_numbers<[1], [0], [0], [1], [0, 0, 1, 1], [], []>} : vector<8x8xbf16>, vector<8x256xbf16>, vector<8x256xf32> -> vector<8x256xf32>
    %112 = arith.mulf %96, %108 : vector<8x256xf32>
    %cst_52 = arith.constant 9.99999997E-7 : f32
    %113 = vector.broadcast %cst_52 : f32 to vector<8x256xf32>
    %114 = arith.addf %111, %113 : vector<8x256xf32>
    %115 = tpu.reciprocal %114 {approx = true} : vector<8x256xf32> -> vector<8x256xf32>
    %116 = arith.mulf %112, %115 : vector<8x256xf32>
    %117 = arith.truncf %116 : vector<8x256xf32> to vector<8x256xbf16>
    %cst_53 = arith.constant dense<0.000000e+00> : vector<8x32xf32>
    %118 = tpu.matmul %117, %14, %cst_53 {dimension_numbers = #tpu.dot_dimension_numbers<[1], [1], [0], [0], [0, 0, 1, 0], [], []>} : vector<8x256xbf16>, vector<32x256xbf16>, vector<8x32xf32> -> vector<8x32xf32>
    %cst_54 = arith.constant dense<0.000000e+00> : vector<8x8xf32>
    %119 = tpu.matmul %117, %117, %cst_54 {dimension_numbers = #tpu.dot_dimension_numbers<[1], [1], [0], [0], [0, 0, 1, 0], [], []>} : vector<8x256xbf16>, vector<8x256xbf16>, vector<8x8xf32> -> vector<8x8xf32>
    %120 = arith.truncf %119 : vector<8x8xf32> to vector<8x8xbf16>
    %cst_55 = arith.constant dense<0.000000e+00> : vector<8x32xf32>
    %121 = tpu.matmul %120, %107, %cst_55 {dimension_numbers = #tpu.dot_dimension_numbers<[1], [0], [0], [1], [0, 0, 1, 1], [], []>} : vector<8x8xbf16>, vector<8x32xbf16>, vector<8x32xf32> -> vector<8x32xf32>
    %122 = arith.mulf %106, %118 : vector<8x32xf32>
    %cst_56 = arith.constant 9.99999997E-7 : f32
    %123 = vector.broadcast %cst_56 : f32 to vector<8x32xf32>
    %124 = arith.addf %121, %123 : vector<8x32xf32>
    %125 = tpu.reciprocal %124 {approx = true} : vector<8x32xf32> -> vector<8x32xf32>
    %126 = arith.mulf %122, %125 : vector<8x32xf32>
    %127 = arith.truncf %126 : vector<8x32xf32> to vector<8x32xbf16>
    %cst_57 = arith.constant dense<0.000000e+00> : vector<8x256xf32>
    %128 = tpu.matmul %127, %14, %cst_57 {dimension_numbers = #tpu.dot_dimension_numbers<[1], [0], [0], [1], [0, 0, 1, 1], [], []>} : vector<8x32xbf16>, vector<32x256xbf16>, vector<8x256xf32> -> vector<8x256xf32>
    %cst_58 = arith.constant dense<0.000000e+00> : vector<8x8xf32>
    %129 = tpu.matmul %127, %127, %cst_58 {dimension_numbers = #tpu.dot_dimension_numbers<[1], [1], [0], [0], [0, 0, 1, 0], [], []>} : vector<8x32xbf16>, vector<8x32xbf16>, vector<8x8xf32> -> vector<8x8xf32>
    %130 = arith.truncf %129 : vector<8x8xf32> to vector<8x8xbf16>
    %cst_59 = arith.constant dense<0.000000e+00> : vector<8x256xf32>
    %131 = tpu.matmul %130, %117, %cst_59 {dimension_numbers = #tpu.dot_dimension_numbers<[1], [0], [0], [1], [0, 0, 1, 1], [], []>} : vector<8x8xbf16>, vector<8x256xbf16>, vector<8x256xf32> -> vector<8x256xf32>
    %132 = arith.mulf %116, %128 : vector<8x256xf32>
    %cst_60 = arith.constant 9.99999997E-7 : f32
    %133 = vector.broadcast %cst_60 : f32 to vector<8x256xf32>
    %134 = arith.addf %131, %133 : vector<8x256xf32>
    %135 = tpu.reciprocal %134 {approx = true} : vector<8x256xf32> -> vector<8x256xf32>
    %136 = arith.mulf %132, %135 : vector<8x256xf32>
    %137 = arith.truncf %136 : vector<8x256xf32> to vector<8x256xbf16>
    %cst_61 = arith.constant dense<0.000000e+00> : vector<8x32xf32>
    %138 = tpu.matmul %137, %14, %cst_61 {dimension_numbers = #tpu.dot_dimension_numbers<[1], [1], [0], [0], [0, 0, 1, 0], [], []>} : vector<8x256xbf16>, vector<32x256xbf16>, vector<8x32xf32> -> vector<8x32xf32>
    %cst_62 = arith.constant dense<0.000000e+00> : vector<8x8xf32>
    %139 = tpu.matmul %137, %137, %cst_62 {dimension_numbers = #tpu.dot_dimension_numbers<[1], [1], [0], [0], [0, 0, 1, 0], [], []>} : vector<8x256xbf16>, vector<8x256xbf16>, vector<8x8xf32> -> vector<8x8xf32>
    %140 = arith.truncf %139 : vector<8x8xf32> to vector<8x8xbf16>
    %cst_63 = arith.constant dense<0.000000e+00> : vector<8x32xf32>
    %141 = tpu.matmul %140, %127, %cst_63 {dimension_numbers = #tpu.dot_dimension_numbers<[1], [0], [0], [1], [0, 0, 1, 1], [], []>} : vector<8x8xbf16>, vector<8x32xbf16>, vector<8x32xf32> -> vector<8x32xf32>
    %142 = arith.mulf %126, %138 : vector<8x32xf32>
    %cst_64 = arith.constant 9.99999997E-7 : f32
    %143 = vector.broadcast %cst_64 : f32 to vector<8x32xf32>
    %144 = arith.addf %141, %143 : vector<8x32xf32>
    %145 = tpu.reciprocal %144 {approx = true} : vector<8x32xf32> -> vector<8x32xf32>
    %146 = arith.mulf %142, %145 : vector<8x32xf32>
    %147 = arith.truncf %146 : vector<8x32xf32> to vector<8x32xbf16>
    %cst_65 = arith.constant dense<0.000000e+00> : vector<8x256xf32>
    %148 = tpu.matmul %147, %14, %cst_65 {dimension_numbers = #tpu.dot_dimension_numbers<[1], [0], [0], [1], [0, 0, 1, 1], [], []>} : vector<8x32xbf16>, vector<32x256xbf16>, vector<8x256xf32> -> vector<8x256xf32>
    %cst_66 = arith.constant dense<0.000000e+00> : vector<8x8xf32>
    %149 = tpu.matmul %147, %147, %cst_66 {dimension_numbers = #tpu.dot_dimension_numbers<[1], [1], [0], [0], [0, 0, 1, 0], [], []>} : vector<8x32xbf16>, vector<8x32xbf16>, vector<8x8xf32> -> vector<8x8xf32>
    %150 = arith.truncf %149 : vector<8x8xf32> to vector<8x8xbf16>
    %cst_67 = arith.constant dense<0.000000e+00> : vector<8x256xf32>
    %151 = tpu.matmul %150, %137, %cst_67 {dimension_numbers = #tpu.dot_dimension_numbers<[1], [0], [0], [1], [0, 0, 1, 1], [], []>} : vector<8x8xbf16>, vector<8x256xbf16>, vector<8x256xf32> -> vector<8x256xf32>
    %152 = arith.mulf %136, %148 : vector<8x256xf32>
    %cst_68 = arith.constant 9.99999997E-7 : f32
    %153 = vector.broadcast %cst_68 : f32 to vector<8x256xf32>
    %154 = arith.addf %151, %153 : vector<8x256xf32>
    %155 = tpu.reciprocal %154 {approx = true} : vector<8x256xf32> -> vector<8x256xf32>
    %156 = arith.mulf %152, %155 : vector<8x256xf32>
    %157 = arith.truncf %156 : vector<8x256xf32> to vector<8x256xbf16>
    %cst_69 = arith.constant dense<0.000000e+00> : vector<32x8xf32>
    %158 = tpu.matmul %4, %147, %cst_69 {dimension_numbers = #tpu.dot_dimension_numbers<[1], [1], [0], [0], [0, 0, 1, 0], [], []>} : vector<32x32xbf16>, vector<8x32xbf16>, vector<32x8xf32> -> vector<32x8xf32>
    %159 = arith.truncf %158 : vector<32x8xf32> to vector<32x8xbf16>
    %cst_70 = arith.constant dense<0.000000e+00> : vector<32x256xf32>
    %160 = tpu.matmul %159, %157, %cst_70 {dimension_numbers = #tpu.dot_dimension_numbers<[1], [0], [0], [1], [0, 0, 1, 1], [], []>} : vector<32x8xbf16>, vector<8x256xbf16>, vector<32x256xf32> -> vector<32x256xf32>
    %161 = vector.broadcast %5 : vector<32x1xf32> to vector<32x256xf32>
    %162 = arith.addf %160, %161 : vector<32x256xf32>
    %163 = arith.addf %1, %162 : vector<32x256xf32>
    %cst_71 = arith.constant 0.000000e+00 : f32
    %164 = vector.broadcast %cst_71 : f32 to vector<32x256xf32>
    %165 = arith.maximumf %163, %164 : vector<32x256xf32>
    %c0_72 = arith.constant 0 : index
    %c0_73 = arith.constant 0 : index
    %c0_74 = arith.constant 0 : index
    %166 = vector.load %arg7[%c0_72, %c0_73, %c0_74] : memref<1x32x256xf32, #tpu.memory_space<vmem>>, vector<1x32x256xf32>
    %167 = vector.shape_cast %166 : vector<1x32x256xf32> to vector<32x256xf32>
    %168 = vector.shape_cast %165 : vector<32x256xf32> to vector<1x32x256xf32>
    tpu.vector_store %arg7[%c0_72, %c0_73, %c0_74], %168 {strides = array<i32>} : memref<1x32x256xf32, #tpu.memory_space<vmem>>, vector<1x32x256xf32>,
    return
  }
  func.func @transform_0(%arg0: i32) -> (i32, i32, i32) {
    %c0_i32 = arith.constant 0 : i32
    %c0_i32_0 = arith.constant 0 : i32
    %c0_i32_1 = arith.constant 0 : i32
    return %arg0, %c0_i32, %c0_i32_0 : i32, i32, i32
  }
  func.func @transform_1(%arg0: i32) -> (i32, i32) {
    %c0_i32 = arith.constant 0 : i32
    %c0_i32_0 = arith.constant 0 : i32
    %c0_i32_1 = arith.constant 0 : i32
    return %c0_i32, %c0_i32_0 : i32, i32
  }
  func.func @transform_2(%arg0: i32) -> (i32, i32) {
    %c0_i32 = arith.constant 0 : i32
    %c0_i32_0 = arith.constant 0 : i32
    %c0_i32_1 = arith.constant 0 : i32
    return %c0_i32, %c0_i32_0 : i32, i32
  }
  func.func @transform_3(%arg0: i32) -> (i32, i32) {
    %c0_i32 = arith.constant 0 : i32
    %c0_i32_0 = arith.constant 0 : i32
    %c0_i32_1 = arith.constant 0 : i32
    return %c0_i32, %c0_i32_0 : i32, i32
  }
  func.func @transform_4(%arg0: i32) -> (i32, i32) {
    %c0_i32 = arith.constant 0 : i32
    %c0_i32_0 = arith.constant 0 : i32
    %c0_i32_1 = arith.constant 0 : i32
    return %c0_i32, %c0_i32_0 : i32, i32
  }
  func.func @transform_5(%arg0: i32) -> (i32, i32, i32) {
    %c0_i32 = arith.constant 0 : i32
    %c0_i32_0 = arith.constant 0 : i32
    %c0_i32_1 = arith.constant 0 : i32
    return %arg0, %c0_i32, %c0_i32_0 : i32, i32, i32
  }
  func.func @transform_6(%arg0: i32) -> (i32, i32, i32) {
    %c0_i32 = arith.constant 0 : i32
    %c0_i32_0 = arith.constant 0 : i32
    %c0_i32_1 = arith.constant 0 : i32
    return %arg0, %c0_i32, %c0_i32_0 : i32, i32, i32
  }
}

</mosaic_0001>

<llo_original>
// kernel: tpu_custom_call.1
$region0: #{tpu_custom_call.1}
  #allocation0 [shape = 'u32[]', space=smem, size = 0x4, offset = 0x4, fixed_abs, tag = 'smem constant byte address 0x4 - core index']
  #allocation1 [shape = 'u32[144,128]{1,0:T(1,128)}', space=vmem, size = 0x12000, scoped, tag = 'internal scratch']
  %s0 = inlined_call_operand.hbm [shape: f32[2,32,256], index: 0, kind: input, shape index: {}]
  %s1 = inlined_call_operand.vmem [shape: bf16[32,32], index: 1, kind: input, shape index: {}]
  %s2 = inlined_call_operand.vmem [shape: f32[32,1], index: 2, kind: input, shape index: {}]
  %s3 = inlined_call_operand.vmem [shape: bf16[32,32], index: 3, kind: input, shape index: {}]
  %s4 = inlined_call_operand.vmem [shape: f32[32,1], index: 4, kind: input, shape index: {}]
  %s5 = inlined_call_operand.vmem [shape: f32[2,8,32], index: 5, kind: input, shape index: {}]
  %s6 = inlined_call_operand.hbm [shape: f32[2,32,256], index: 6, kind: output, shape index: {}]
  %s7 = sld [smem:[#allocation0]]
  $region61: #{tpu_custom_call.1} parent=0
    _
  %s9 = ssub.s32 1, %s7
  %s10 = scalar_select 0, %s9, %s7
  $region1: #{tpu_custom_call.1} parent=0
    #allocation2 [shape = 'u8[65536]{0}', space=vmem, size = 0x10000, scoped, tag = 'input window, operand 0']
    #allocation3 [shape = 's32[2]{0}', space=sflag, size = 0x8, scoped, tag = 'scoped memory for tpu_custom_call.1']
    #allocation4 [shape = 's32[2]{0}', space=sflag, size = 0x8, scoped, tag = 'scoped memory for tpu_custom_call.1']
    #allocation5 [shape = 'u8[65536]{0}', space=vmem, size = 0x10000, scoped, tag = 'output window, operand 0']
    %11 = vsyncpa [#allocation3], 0
    %s12 = scalar_lea.sflag [#allocation3], 1
    %13 = vsyncpa %s12, 0
    %14 = vsyncpa [#allocation4], 0
    %s15 = scalar_lea.sflag [#allocation4], 1
    %16 = vsyncpa %s15, 0
    loop: start=0, step=1, limit=4
    $region2: #{tpu_custom_call.1} parent=1 // loop_pre_header
      _
    $region3: #{tpu_custom_call.1} parent=1 // loop_header
      %s18 = sphi 0, %s22
      %p19 = scmp.ge.s32.totalorder %s18, 4
      %s28 = sphi 0, %s30
      %s31 = sphi 0, %s28
      %s32 = sphi 0, %s31
      %s48 = sphi 0, %s32
      %s52 = sphi 0, %s52
      %s54 = sphi 0, %s52
      %s55 = sphi 0, %s54
      %s69 = sphi 0, %s55
      %s73 = sphi 0, %s73
      %s75 = sphi 0, %s73
      %s76 = sphi 0, %s75
      %s90 = sphi 0, %s76
      %s94 = sphi 0, %s94
      %s96 = sphi 0, %s94
      %s97 = sphi 0, %s96
      %s111 = sphi 0, %s97
      %s115 = sphi 0, %s115
      %s117 = sphi 0, %s115
      %s118 = sphi 0, %s117
      %s132 = sphi 0, %s118
      %s138 = sphi 0, %s140
      %s141 = sphi 0, %s138
      %s142 = sphi 0, %s141
      %s158 = sphi 0, %s142
      %s164 = sphi 0, %s166
      %s167 = sphi 0, %s164
      %s168 = sphi 0, %s167
      %s184 = sphi 0, %s168
    $region4: #{tpu_custom_call.1} parent=1 // loop_header_branch
      %21 = sbr.rel (%p19) target = $region8
    $region5: #{tpu_custom_call.1} parent=1 // loop_body
      %s23 = ssub.s32 %s18, 1
      %s24 = ssub.s32 %s18, 2
      %s25 = sadd.s32 %s18, 1
      %s26 = ssub.s32 %s18, %s25
      %p27 = scmp.eq.s32.totalorder %s26, 0
      %s29 = sadd.s32 %s28, 1
      %s30 = scalar_select %p27, %s28, %s29
      %p33 = pneg %p27
      %p34 = scmp.eq.s32.totalorder %s18, 1
      %p35 = por %p33, %p34
      %p36 = scmp.ne.s32.totalorder %s28, %s31
      %p37 = scmp.eq.s32.totalorder %s18, 0
      %p38 = por %p36, %p37
      %p39 = scmp.ne.s32.totalorder %s28, %s31
      %p40 = scmp.eq.s32.totalorder %s23, 1
      %p41 = por %p39, %p40
      %p42 = scmp.ne.s32.totalorder %s31, %s32
      %p43 = scmp.eq.s32.totalorder %s23, 0
      %p44 = por %p42, %p43
      %p45 = scmp.ne.s32.totalorder %s31, %s32
      %p46 = scmp.eq.s32.totalorder %s24, 1
      %p47 = por %p45, %p46
      %p49 = scmp.ne.s32.totalorder %s32, %s48
      %p50 = scmp.eq.s32.totalorder %s24, 0
      %p51 = por %p49, %p50
      %s53 = sadd.s32 %s52, 1
      %p56 = scmp.eq.s32.totalorder %s18, 1
      %p57 = scmp.ne.s32.totalorder %s52, %s54
      %p58 = scmp.eq.s32.totalorder %s18, 0
      %p59 = por %p57, %p58
      %p60 = scmp.ne.s32.totalorder %s52, %s54
      %p61 = scmp.eq.s32.totalorder %s23, 1
      %p62 = por %p60, %p61
      %p63 = scmp.ne.s32.totalorder %s54, %s55
      %p64 = scmp.eq.s32.totalorder %s23, 0
      %p65 = por %p63, %p64
      %p66 = scmp.ne.s32.totalorder %s54, %s55
      %p67 = scmp.eq.s32.totalorder %s24, 1
      %p68 = por %p66, %p67
      %p70 = scmp.ne.s32.totalorder %s55, %s69
      %p71 = scmp.eq.s32.totalorder %s24, 0
      %p72 = por %p70, %p71
      %s74 = sadd.s32 %s73, 1
      %p77 = scmp.eq.s32.totalorder %s18, 1
      %p78 = scmp.ne.s32.totalorder %s73, %s75
      %p79 = scmp.eq.s32.totalorder %s18, 0
      %p80 = por %p78, %p79
      %p81 = scmp.ne.s32.totalorder %s73, %s75
      %p82 = scmp.eq.s32.totalorder %s23, 1
      %p83 = por %p81, %p82
      %p84 = scmp.ne.s32.totalorder %s75, %s76
      %p85 = scmp.eq.s32.totalorder %s23, 0
      %p86 = por %p84, %p85
      %p87 = scmp.ne.s32.totalorder %s75, %s76
      %p88 = scmp.eq.s32.totalorder %s24, 1
      %p89 = por %p87, %p88
      %p91 = scmp.ne.s32.totalorder %s76, %s90
      %p92 = scmp.eq.s32.totalorder %s24, 0
      %p93 = por %p91, %p92
      %s95 = sadd.s32 %s94, 1
      %p98 = scmp.eq.s32.totalorder %s18, 1
      %p99 = scmp.ne.s32.totalorder %s94, %s96
      %p100 = scmp.eq.s32.totalorder %s18, 0
      %p101 = por %p99, %p100
      %p102 = scmp.ne.s32.totalorder %s94, %s96
      %p103 = scmp.eq.s32.totalorder %s23, 1
      %p104 = por %p102, %p103
      %p105 = scmp.ne.s32.totalorder %s96, %s97
      %p106 = scmp.eq.s32.totalorder %s23, 0
      %p107 = por %p105, %p106
      %p108 = scmp.ne.s32.totalorder %s96, %s97
      %p109 = scmp.eq.s32.totalorder %s24, 1
      %p110 = por %p108, %p109
      %p112 = scmp.ne.s32.totalorder %s97, %s111
      %p113 = scmp.eq.s32.totalorder %s24, 0
      %p114 = por %p112, %p113
      %s116 = sadd.s32 %s115, 1
      %p119 = scmp.eq.s32.totalorder %s18, 1
      %p120 = scmp.ne.s32.totalorder %s115, %s117
      %p121 = scmp.eq.s32.totalorder %s18, 0
      %p122 = por %p120, %p121
      %p123 = scmp.ne.s32.totalorder %s115, %s117
      %p124 = scmp.eq.s32.totalorder %s23, 1
      %p125 = por %p123, %p124
      %p126 = scmp.ne.s32.totalorder %s117, %s118
      %p127 = scmp.eq.s32.totalorder %s23, 0
      %p128 = por %p126, %p127
      %p129 = scmp.ne.s32.totalorder %s117, %s118
      %p130 = scmp.eq.s32.totalorder %s24, 1
      %p131 = por %p129, %p130
      %p133 = scmp.ne.s32.totalorder %s118, %s132
      %p134 = scmp.eq.s32.totalorder %s24, 0
      %p135 = por %p133, %p134
      %s136 = ssub.s32 %s18, %s25
      %p137 = scmp.eq.s32.totalorder %s136, 0
      %s139 = sadd.s32 %s138, 1
      %s140 = scalar_select %p137, %s138, %s139
      %p143 = pneg %p137
      %p144 = scmp.eq.s32.totalorder %s18, 1
      %p145 = por %p143, %p144
      %p146 = scmp.ne.s32.totalorder %s138, %s141
      %p147 = scmp.eq.s32.totalorder %s18, 0
      %p148 = por %p146, %p147
      %p149 = scmp.ne.s32.totalorder %s138, %s141
      %p150 = scmp.eq.s32.totalorder %s23, 1
      %p151 = por %p149, %p150
      %p152 = scmp.ne.s32.totalorder %s141, %s142
      %p153 = scmp.eq.s32.totalorder %s23, 0
      %p154 = por %p152, %p153
      %p155 = scmp.ne.s32.totalorder %s141, %s142
      %p156 = scmp.eq.s32.totalorder %s24, 1
      %p157 = por %p155, %p156
      %p159 = scmp.ne.s32.totalorder %s142, %s158
      %p160 = scmp.eq.s32.totalorder %s24, 0
      %p161 = por %p159, %p160
      %s162 = ssub.s32 %s18, %s25
      %p163 = scmp.eq.s32.totalorder %s162, 0
      %s165 = sadd.s32 %s164, 1
      %s166 = scalar_select %p163, %s164, %s165
      %p169 = pneg %p163
      %p170 = scmp.eq.s32.totalorder %s18, 1
      %p171 = por %p169, %p170
      %p172 = scmp.ne.s32.totalorder %s164, %s167
      %p173 = scmp.eq.s32.totalorder %s18, 0
      %p174 = por %p172, %p173
      %p175 = scmp.ne.s32.totalorder %s164, %s167
      %p176 = scmp.eq.s32.totalorder %s23, 1
      %p177 = por %p175, %p176
      %p178 = scmp.ne.s32.totalorder %s167, %s168
      %p179 = scmp.eq.s32.totalorder %s23, 0
      %p180 = por %p178, %p179
      %p181 = scmp.ne.s32.totalorder %s167, %s168
      %p182 = scmp.eq.s32.totalorder %s24, 1
      %p183 = por %p181, %p182
      %p185 = scmp.ne.s32.totalorder %s168, %s184
      %p186 = scmp.eq.s32.totalorder %s24, 0
      %p187 = por %p185, %p186
      %p188 = scmp.le.s32.totalorder 1, %s18
      %p189 = scmp.lt.s32.totalorder %s18, 3
      %p190 = pnand %p188, %p189
      %p191 = pneg %p190
      // Predicated region
      $region9: #{tpu_custom_call.1} parent=5 // pred_check
        _
      $region10: #{tpu_custom_call.1} parent=5 // pred_check_branch
        %193 = sbr.rel (%p190) target = $region12
      $region11: #{tpu_custom_call.1} parent=5 // pred_region
        %s194 = ssub.s32 %s18, 1
        // Predicated region
        $region13: #{tpu_custom_call.1} parent=11 // pred_check
          %p195 = pneg %p65
        $region14: #{tpu_custom_call.1} parent=11 // pred_check_branch
          %197 = sbr.rel (%p195) target = $region16
        $region15: #{tpu_custom_call.1} parent=11 // pred_region
          _
        $region16: #{tpu_custom_call.1} parent=11 // pred_fallthru
          _
        // Predicated region
        $region17: #{tpu_custom_call.1} parent=11 // pred_check
          %p198 = pneg %p86
        $region18: #{tpu_custom_call.1} parent=11 // pred_check_branch
          %200 = sbr.rel (%p198) target = $region20
        $region19: #{tpu_custom_call.1} parent=11 // pred_region
          _
        $region20: #{tpu_custom_call.1} parent=11 // pred_fallthru
          _
        // Predicated region
        $region21: #{tpu_custom_call.1} parent=11 // pred_check
          %p201 = pneg %p107
        $region22: #{tpu_custom_call.1} parent=11 // pred_check_branch
          %203 = sbr.rel (%p201) target = $region24
        $region23: #{tpu_custom_call.1} parent=11 // pred_region
          _
        $region24: #{tpu_custom_call.1} parent=11 // pred_fallthru
          _
        // Predicated region
        $region25: #{tpu_custom_call.1} parent=11 // pred_check
          %p204 = pneg %p128
        $region26: #{tpu_custom_call.1} parent=11 // pred_check_branch
          %206 = sbr.rel (%p204) target = $region28
        $region27: #{tpu_custom_call.1} parent=11 // pred_region
          _
        $region28: #{tpu_custom_call.1} parent=11 // pred_fallthru
          _
      $region12: #{tpu_custom_call.1} parent=5 // pred_fallthru
        _
      %p207 = scmp.lt.s32.totalorder %s18, 2
      // Predicated region
      $region29: #{tpu_custom_call.1} parent=5 // pred_check
        %p208 = pneg %p207
      $region30: #{tpu_custom_call.1} parent=5 // pred_check_branch
        %210 = sbr.rel (%p208) target = $region32
      $region31: #{tpu_custom_call.1} parent=5 // pred_region
        // Predicated region
        $region33: #{tpu_custom_call.1} parent=31 // pred_check
          %p211 = pneg %p38
        $region34: #{tpu_custom_call.1} parent=31 // pred_check_branch
          %213 = sbr.rel (%p211) target = $region36
        $region35: #{tpu_custom_call.1} parent=31 // pred_region
          %s214 = sand.u32 %s28, 1
          %s215 = scalar_lea.sflag [#allocation3], %s214
          %s216 = sand.u32 %s28, 1
          %s217 = smul.addr %s216, 64
          %s218 = scalar_lea.vmem [#allocation2], %s217
          %s220 = ssub.s32 1024, 1024
          %221 = vsyncadd %s215, %s220
          %s222 = smul.addr %s18, 8
          %s223 = smul.addr %s222, 128
          %s224 = scalar_lea.hbm %s0, %s223
          %s225 = sshll.u32 %s218, 4
          %s226 = int_to_ptr.vmem [resolvable:$true] %s225
          %231 = dma.hbm_to_vmem [thread:$0]  %s224, 1024, %s226, %s215, 256, 256, 16
        $region36: #{tpu_custom_call.1} parent=31 // pred_fallthru
          _
        // Predicated region
        $region37: #{tpu_custom_call.1} parent=31 // pred_check
          %p232 = pneg %p148
        $region38: #{tpu_custom_call.1} parent=31 // pred_check_branch
          %234 = sbr.rel (%p232) target = $region40
        $region39: #{tpu_custom_call.1} parent=31 // pred_region
          %p235 = scmp.lt.s32.totalorder %s18, 1
          %s236 = scalar_select %p235, %s18, 1
          %s237 = smul.addr %s236, 8
          %s238 = scalar_lea.vmem %s5, %s237
        $region40: #{tpu_custom_call.1} parent=31 // pred_fallthru
          _
      $region32: #{tpu_custom_call.1} parent=5 // pred_fallthru
        _
      %p239 = scmp.le.s32.totalorder 1, %s18
      %p240 = scmp.lt.s32.totalorder %s18, 3
      %p241 = pnand %p239, %p240
      %p242 = pneg %p241
      // Predicated region
      $region41: #{tpu_custom_call.1} parent=5 // pred_check
        _
      $region42: #{tpu_custom_call.1} parent=5 // pred_check_branch
        %244 = sbr.rel (%p241) target = $region44
      $region43: #{tpu_custom_call.1} parent=5 // pred_region
        %s245 = ssub.s32 %s18, 1
        %s246 = sand.u32 %s31, 1
        %s247 = scalar_lea.sflag [#allocation3], %s246
        %s248 = sand.u32 %s31, 1
        %s249 = smul.addr %s248, 64
        %s250 = scalar_lea.vmem [#allocation2], %s249
        // Predicated region
        $region45: #{tpu_custom_call.1} parent=43 // pred_check
          %p251 = pneg %p44
        $region46: #{tpu_custom_call.1} parent=43 // pred_check_branch
          %253 = sbr.rel (%p251) target = $region48
        $region47: #{tpu_custom_call.1} parent=43 // pred_region
          %254 = dma.done %s247, 1024
        $region48: #{tpu_custom_call.1} parent=43 // pred_fallthru
          _
        %s255 = sand.u32 %s31, 1
        %s256 = scalar_lea.sflag [#allocation3], %s255
        %s257 = sand.u32 %s31, 1
        %s258 = smul.addr %s257, 64
        %s259 = scalar_lea.vmem [#allocation2], %s258
        %p260 = pneg %p44
        %p261 = pneg %p41
        %p262 = pneg %p65
        %p263 = pneg %p62
        %p264 = pneg %p86
        %p265 = pneg %p83
        %p266 = pneg %p107
        %p267 = pneg %p104
        %p268 = pneg %p128
        %p269 = pneg %p125
        %p270 = scmp.lt.s32.totalorder %s23, 1
        %s271 = scalar_select %p270, %s23, 1
        %s272 = smul.addr %s271, 8
        %s273 = scalar_lea.vmem %s5, %s272
        %p274 = pneg %p154
        %p275 = pneg %p151
        %p276 = pneg %p180
        %p277 = pneg %p177
        %s278 = sand.u32 %s167, 1
        %s279 = scalar_lea.sflag [#allocation4], %s278
        %s280 = sand.u32 %s167, 1
        %s281 = smul.addr %s280, 64
        %s282 = scalar_lea.vmem [#allocation5], %s281
        %p283 = scmp.lt.s32.totalorder %s23, 1
        %s284 = scalar_select %p283, %s23, 1
        %s285 = smul.addr %s284, 8
        %s286 = scalar_lea.vmem %s5, %s285
        %v288 = vld [vmem:[%s250] sm:$0xff]
        %v289 = vld [vmem:[%s250 + $0x8] sm:$0xff]
        %v290 = vld [vmem:[%s250 + $0x10] sm:$0xff]
        %v291 = vld [vmem:[%s250 + $0x18] sm:$0xff]
        %v292 = vld [vmem:[%s250 + $0x20] sm:$0xff]
        %v293 = vld [vmem:[%s250 + $0x28] sm:$0xff]
        %v294 = vld [vmem:[%s250 + $0x30] sm:$0xff]
        %v295 = vld [vmem:[%s250 + $0x38] sm:$0xff]
        %v296 = vld [vmem:[%s1] sm:$0xf]
        %v297 = vld [vmem:[%s1 + $0x4] sm:$0xf]
        %v298 = vld [vmem:[%s1 + $0x8] sm:$0xf]
        %v299 = vld [vmem:[%s1 + $0xc] sm:$0xf]
        %v300 = vld [vmem:[%s2] sm:$0xff]
        %v301 = vld [vmem:[%s2 + $0x8] sm:$0xff]
        %v302 = vld [vmem:[%s2 + $0x10] sm:$0xff]
        %v303 = vld [vmem:[%s2 + $0x18] sm:$0xff]
        %v304 = vld [vmem:[%s3] sm:$0xf]
        %v305 = vld [vmem:[%s3 + $0x4] sm:$0xf]
        %v306 = vld [vmem:[%s3 + $0x8] sm:$0xf]
        %v307 = vld [vmem:[%s3 + $0xc] sm:$0xf]
        %v308 = vld [vmem:[%s4] sm:$0xff]
        %v309 = vld [vmem:[%s4 + $0x8] sm:$0xff]
        %v310 = vld [vmem:[%s4 + $0x10] sm:$0xff]
        %v311 = vld [vmem:[%s4 + $0x18] sm:$0xff]
        %v312 = vld [vmem:[%s286] sm:$0xff]
        %v313 = vpack.c.bf16 %v290, %v288
        %v314 = vpack.c.bf16 %v291, %v289
        %v315 = vpack.c.bf16 %v294, %v292
        %v316 = vpack.c.bf16 %v295, %v293
        %318 = vset.pattern.permute.xlu0 0
        %319 = vperm.xlu0 %318, %v300
        %v320 = vpop.permute.xlu0 %319
        %323 = vset.pattern.permute.xlu0 0
        %324 = vperm.xlu0 %323, %v301
        %v325 = vpop.permute.xlu0 %324
        %328 = vset.pattern.permute.xlu0 0
        %329 = vperm.xlu0 %328, %v302
        %v330 = vpop.permute.xlu0 %329
        %333 = vset.pattern.permute.xlu0 0
        %334 = vperm.xlu0 %333, %v303
        %v335 = vpop.permute.xlu0 %334
        %v341 = vunpack.c.l.b16 %v296
        %v342 = vunpack.c.l.b16 %v297
        %v343 = vunpack.c.l.b16 %v298
        %v344 = vunpack.c.l.b16 %v299
        %v345 = vpack.c.b16 %v342, %v341
        %v346 = vpack.c.b16 %v344, %v343
        %vm347 = vcmask 261120
        %v349 = vsel %vm347, %v345, 0
        %v352 = vsel %vm347, %v346, 0
        %354 = vmatprep.subr.bf16.mxu0 %v314
        %355 = vmatpush1.bf16.msra.mxu0 %v313
        %356 = vmatprep.subr.bf16.mxu0 %v316
        %357 = vmatpush1.bf16.msra.mxu0 %v315
        %358 = vmatprep.subr.bf16.mxu0 0
        %359 = vmatpush1.bf16.msra.mxu0 0
        %360 = vmatprep.subr.bf16.mxu0 0
        %361 = vmatpush1.bf16.msra.mxu0 0
        %362 = vmatprep.subr.bf16.mxu0 0
        %363 = vmatpush1.bf16.msra.mxu0 0
        %364 = vmatprep.subr.bf16.mxu0 0
        %365 = vmatpush1.bf16.msra.mxu0 0
        %366 = vmatprep.subr.bf16.mxu0 0
        %367 = vmatpush1.bf16.msra.mxu0 0
        %368 = vmatprep.subr.bf16.mxu0 0
        %369 = vmatpush1.bf16.msra.mxu0 0
        %370 = vmatprep.subr.bf16.mxu0 0
        %371 = vmatpush1.bf16.msra.mxu0 0
        %372 = vmatprep.subr.bf16.mxu0 0
        %373 = vmatpush1.bf16.msra.mxu0 0
        %374 = vmatprep.subr.bf16.mxu0 0
        %375 = vmatpush1.bf16.msra.mxu0 0
        %376 = vmatprep.subr.bf16.mxu0 0
        %377 = vmatpush1.bf16.msra.mxu0 0
        %378 = vmatprep.subr.bf16.mxu0 0
        %379 = vmatpush1.bf16.msra.mxu0 0
        %380 = vmatprep.subr.bf16.mxu0 0
        %381 = vmatpush1.bf16.msra.mxu0 0
        %382 = vmatprep.subr.bf16.mxu0 0
        %383 = vmatpush1.bf16.msra.mxu0 0
        %384 = vmatprep.subr.bf16.mxu0 0
        %385 = vmatpush1.bf16.msra.mxu0 0
        %386 = vmatprep.mubr.bf16.mxu0 0
        %387 = vmatmul.mubr.bf16.gmra.mrb[0].mxu0 %v349
        %v388 = vpop.f32.mrb[0].mxu0
        %v389 = vadd.f32 %v320, %v388
        %v390 = vpop.f32.mrb[0].mxu0
        %v391 = vadd.f32 %v320, %v390
        %v392 = vpop.f32.mrb[0].mxu0
        %v393 = vadd.f32 %v325, %v392
        %v394 = vpop.f32.mrb[0].mxu0
        %v395 = vadd.f32 %v325, %v394
        %396 = vmatprep.mubr.bf16.mxu0 0
        %397 = vmatmul.mubr.bf16.gmra.mrb[0].mxu0 %v352
        %v398 = vpop.f32.mrb[0].mxu0
        %v399 = vadd.f32 %v330, %v398
        %v400 = vpop.f32.mrb[0].mxu0
        %v401 = vadd.f32 %v330, %v400
        %v402 = vpop.f32.mrb[0].mxu0
        %v403 = vadd.f32 %v335, %v402
        %v404 = vpop.f32.mrb[0].mxu0
        %v405 = vadd.f32 %v335, %v404
        %406 = vdwg.mxu0
        %v407 = vmax.f32 %v389, 0.0
        %v408 = vmax.f32 %v391, 0.0
        %v409 = vmax.f32 %v393, 0.0
        %v410 = vmax.f32 %v395, 0.0
        %v411 = vmax.f32 %v399, 0.0
        %v412 = vmax.f32 %v401, 0.0
        %v413 = vmax.f32 %v403, 0.0
        %v414 = vmax.f32 %v405, 0.0
        %v415 = vpack.c.bf16 %v409, %v407
        %v416 = vpack.c.bf16 %v410, %v408
        %v417 = vpack.c.bf16 %v413, %v411
        %v418 = vpack.c.bf16 %v414, %v412
        %v419 = vpack.c.bf16 %v312, %v312
        %v421 = vsel %vm347, %v419, 0
        %423 = vmatprep.subr.bf16.mxu0 %v416
        %424 = vmatpush1.bf16.msra.mxu0 %v415
        %425 = vmatprep.subr.bf16.mxu0 %v418
        %426 = vmatpush1.bf16.msra.mxu0 %v417
        %427 = vmatprep.subr.bf16.mxu0 0
        %428 = vmatpush1.bf16.msra.mxu0 0
        %429 = vmatprep.subr.bf16.mxu0 0
        %430 = vmatpush1.bf16.msra.mxu0 0
        %431 = vmatprep.subr.bf16.mxu0 0
        %432 = vmatpush1.bf16.msra.mxu0 0
        %433 = vmatprep.subr.bf16.mxu0 0
        %434 = vmatpush1.bf16.msra.mxu0 0
        %435 = vmatprep.subr.bf16.mxu0 0
        %436 = vmatpush1.bf16.msra.mxu0 0
        %437 = vmatprep.subr.bf16.mxu0 0
        %438 = vmatpush1.bf16.msra.mxu0 0
        %439 = vmatprep.subr.bf16.mxu0 0
        %440 = vmatpush1.bf16.msra.mxu0 0
        %441 = vmatprep.subr.bf16.mxu0 0
        %442 = vmatpush1.bf16.msra.mxu0 0
        %443 = vmatprep.subr.bf16.mxu0 0
        %444 = vmatpush1.bf16.msra.mxu0 0
        %445 = vmatprep.subr.bf16.mxu0 0
        %446 = vmatpush1.bf16.msra.mxu0 0
        %447 = vmatprep.subr.bf16.mxu0 0
        %448 = vmatpush1.bf16.msra.mxu0 0
        %449 = vmatprep.subr.bf16.mxu0 0
        %450 = vmatpush1.bf16.msra.mxu0 0
        %451 = vmatprep.subr.bf16.mxu0 0
        %452 = vmatpush1.bf16.msra.mxu0 0
        %453 = vmatprep.subr.bf16.mxu0 0
        %454 = vmatpush1.bf16.msra.mxu0 0
        %455 = vmatprep.mubr.bf16.mxu0 0
        %456 = vmatmul.mubr.bf16.gmra.mrb[0].mxu0 %v421
        %v457 = vpop.f32.mrb[0].mxu0
        %v458 = vadd.f32 0.0, %v457
        %v459 = vpop.f32.mrb[0].mxu0
        %v460 = vadd.f32 0.0, %v459
        %v461 = vpop.f32.mrb[0].mxu0
        %v462 = vpop.f32.mrb[0].mxu0
        %463 = vdwg.mxu0
        %v464 = vrot.slane %v458, 4
        %v465 = vmax.f32 %v458, %v464
        %v466 = vrot.slane %v465, 2
        %v467 = vmax.f32 %v465, %v466
        %v468 = vrot.slane %v467, 1
        %v469 = vmax.f32 %v467, %v468
        %v470 = vrot.slane %v460, 4
        %v471 = vmax.f32 %v460, %v470
        %v472 = vrot.slane %v471, 2
        %v473 = vmax.f32 %v471, %v472
        %v474 = vrot.slane %v473, 1
        %v475 = vmax.f32 %v473, %v474
        %v476 = vsub.f32 %v458, %v469
        %v477 = vsub.f32 %v460, %v475
        %v478 = vmul.f32 %v476, 1.442695
        %v479 = vpow.pop %v478
        %v480 = vmul.f32 %v477, 1.442695
        %v481 = vpow.pop %v480
        %v482 = vrot.slane %v479, 4
        %v483 = vadd.f32 %v479, %v482
        %v484 = vrot.slane %v483, 2
        %v485 = vadd.f32 %v483, %v484
        %v486 = vrot.slane %v485, 1
        %v487 = vadd.f32 %v485, %v486
        %v488 = vrot.slane %v481, 4
        %v489 = vadd.f32 %v481, %v488
        %v490 = vrot.slane %v489, 2
        %v491 = vadd.f32 %v489, %v490
        %v492 = vrot.slane %v491, 1
        %v493 = vadd.f32 %v491, %v492
        %v494 = vrcp.pop %v487
        %v495 = vmul.f32 %v479, %v494
        %v496 = vrcp.pop %v493
        %v497 = vmul.f32 %v481, %v496
        %v498 = vpack.c.bf16 %v495, %v495
        %v499 = vpack.c.bf16 %v497, %v497
        %500 = vmatprep.subr.bf16.mxu0 0
        %501 = vmatpush1.bf16.xpose.msra.mxu0 %v421
        %502 = vmatprep.subr.bf16.mxu0 0
        %503 = vmatpush1.bf16.xpose.msra.mxu0 0
        %504 = vmatprep.subr.bf16.mxu0 0
        %505 = vmatpush1.bf16.xpose.msra.mxu0 0
        %506 = vmatprep.subr.bf16.mxu0 0
        %507 = vmatpush1.bf16.xpose.msra.mxu0 0
        %508 = vmatprep.subr.bf16.mxu0 0
        %509 = vmatpush1.bf16.xpose.msra.mxu0 0
        %510 = vmatprep.subr.bf16.mxu0 0
        %511 = vmatpush1.bf16.xpose.msra.mxu0 0
        %512 = vmatprep.subr.bf16.mxu0 0
        %513 = vmatpush1.bf16.xpose.msra.mxu0 0
        %514 = vmatprep.subr.bf16.mxu0 0
        %515 = vmatpush1.bf16.xpose.msra.mxu0 0
        %516 = vmatprep.subr.bf16.mxu0 0
        %517 = vmatpush1.bf16.xpose.msra.mxu0 0
        %518 = vmatprep.subr.bf16.mxu0 0
        %519 = vmatpush1.bf16.xpose.msra.mxu0 0
        %520 = vmatprep.subr.bf16.mxu0 0
        %521 = vmatpush1.bf16.xpose.msra.mxu0 0
        %522 = vmatprep.subr.bf16.mxu0 0
        %523 = vmatpush1.bf16.xpose.msra.mxu0 0
        %524 = vmatprep.subr.bf16.mxu0 0
        %525 = vmatpush1.bf16.xpose.msra.mxu0 0
        %526 = vmatprep.subr.bf16.mxu0 0
        %527 = vmatpush1.bf16.xpose.msra.mxu0 0
        %528 = vmatprep.subr.bf16.mxu0 0
        %529 = vmatpush1.bf16.xpose.msra.mxu0 0
        %530 = vmatprep.subr.bf16.mxu0 0
        %531 = vmatpush1.bf16.xpose.msra.mxu0 0
        %532 = vmatprep.mubr.bf16.mxu0 0
        %533 = vmatmul.mubr.bf16.gmra.mrb[0].mxu0 %v421
        %v534 = vpop.f32.mrb[0].mxu0
        %v535 = vadd.f32 0.0, %v534
        %v536 = vpop.f32.mrb[0].mxu0
        %v537 = vpop.f32.mrb[0].mxu0
        %v538 = vpop.f32.mrb[0].mxu0
        %539 = vdwg.mxu0
        %v540 = vpack.c.bf16 %v535, %v535
        %v541 = vmul.f32 %v495, %v458
        %v542 = vmul.f32 %v497, %v460
        %vm543 = vcmask 64512
        %v545 = vsel %vm543, %v540, 0
        %vm547 = vcmask 1043456
        %v549 = vsel %vm547, %v498, 0
        %v552 = vsel %vm547, %v499, 0
        %554 = vmatprep.subr.bf16.mxu0 %v552
        %555 = vmatpush1.bf16.msra.mxu0 %v549
        %556 = vmatprep.subr.bf16.mxu0 0
        %557 = vmatpush1.bf16.msra.mxu0 0
        %558 = vmatprep.subr.bf16.mxu0 0
        %559 = vmatpush1.bf16.msra.mxu0 0
        %560 = vmatprep.subr.bf16.mxu0 0
        %561 = vmatpush1.bf16.msra.mxu0 0
        %562 = vmatprep.subr.bf16.mxu0 0
        %563 = vmatpush1.bf16.msra.mxu0 0
        %564 = vmatprep.subr.bf16.mxu0 0
        %565 = vmatpush1.bf16.msra.mxu0 0
        %566 = vmatprep.subr.bf16.mxu0 0
        %567 = vmatpush1.bf16.msra.mxu0 0
        %568 = vmatprep.subr.bf16.mxu0 0
        %569 = vmatpush1.bf16.msra.mxu0 0
        %570 = vmatprep.subr.bf16.mxu0 0
        %571 = vmatpush1.bf16.msra.mxu0 0
        %572 = vmatprep.subr.bf16.mxu0 0
        %573 = vmatpush1.bf16.msra.mxu0 0
        %574 = vmatprep.subr.bf16.mxu0 0
        %575 = vmatpush1.bf16.msra.mxu0 0
        %576 = vmatprep.subr.bf16.mxu0 0
        %577 = vmatpush1.bf16.msra.mxu0 0
        %578 = vmatprep.subr.bf16.mxu0 0
        %579 = vmatpush1.bf16.msra.mxu0 0
        %580 = vmatprep.subr.bf16.mxu0 0
        %581 = vmatpush1.bf16.msra.mxu0 0
        %582 = vmatprep.subr.bf16.mxu0 0
        %583 = vmatpush1.bf16.msra.mxu0 0
        %584 = vmatprep.subr.bf16.mxu0 0
        %585 = vmatpush1.bf16.msra.mxu0 0
        %586 = vmatprep.mubr.bf16.mxu0 0
        %587 = vmatmul.mubr.bf16.gmra.mrb[0].mxu0 %v545
        %v588 = vpop.f32.mrb[0].mxu0
        %v589 = vadd.f32 1e-06, %v588
        %v590 = vpop.f32.mrb[0].mxu0
        %v591 = vadd.f32 1e-06, %v590
        %v592 = vpop.f32.mrb[0].mxu0
        %v593 = vpop.f32.mrb[0].mxu0
        %594 = vdwg.mxu0
        %v595 = vrcp.pop %v589
        %v596 = vrcp.pop %v591
        %v597 = vmul.f32 %v541, %v595
        %v598 = vmul.f32 %v542, %v596
        %v599 = vpack.c.bf16 %v597, %v597
        %v600 = vpack.c.bf16 %v598, %v598
        %601 = vmatprep.subr.bf16.mxu0 %v416
        %602 = vmatpush1.bf16.xpose.msra.mxu0 %v415
        %603 = vmatprep.subr.bf16.mxu0 %v418
        %604 = vmatpush1.bf16.xpose.msra.mxu0 %v417
        %605 = vmatprep.subr.bf16.mxu0 0
        %606 = vmatpush1.bf16.xpose.msra.mxu0 0
        %607 = vmatprep.subr.bf16.mxu0 0
        %608 = vmatpush1.bf16.xpose.msra.mxu0 0
        %609 = vmatprep.subr.bf16.mxu0 0
        %610 = vmatpush1.bf16.xpose.msra.mxu0 0
        %611 = vmatprep.subr.bf16.mxu0 0
        %612 = vmatpush1.bf16.xpose.msra.mxu0 0
        %613 = vmatprep.subr.bf16.mxu0 0
        %614 = vmatpush1.bf16.xpose.msra.mxu0 0
        %615 = vmatprep.subr.bf16.mxu0 0
        %616 = vmatpush1.bf16.xpose.msra.mxu0 0
        %617 = vmatprep.subr.bf16.mxu0 0
        %618 = vmatpush1.bf16.xpose.msra.mxu0 0
        %619 = vmatprep.subr.bf16.mxu0 0
        %620 = vmatpush1.bf16.xpose.msra.mxu0 0
        %621 = vmatprep.subr.bf16.mxu0 0
        %622 = vmatpush1.bf16.xpose.msra.mxu0 0
        %623 = vmatprep.subr.bf16.mxu0 0
        %624 = vmatpush1.bf16.xpose.msra.mxu0 0
        %625 = vmatprep.subr.bf16.mxu0 0
        %626 = vmatpush1.bf16.xpose.msra.mxu0 0
        %627 = vmatprep.subr.bf16.mxu0 0
        %628 = vmatpush1.bf16.xpose.msra.mxu0 0
        %629 = vmatprep.subr.bf16.mxu0 0
        %630 = vmatpush1.bf16.xpose.msra.mxu0 0
        %631 = vmatprep.subr.bf16.mxu0 0
        %632 = vmatpush1.bf16.xpose.msra.mxu0 0
        %633 = vmatprep.mubr.bf16.mxu0 %v600
        %634 = vmatmul.mubr.bf16.gmra.mrb[0].mxu0 %v599
        %v635 = vpop.f32.mrb[0].mxu0
        %v636 = vadd.f32 0.0, %v635
        %v637 = vpop.f32.mrb[0].mxu0
        %v638 = vpop.f32.mrb[0].mxu0
        %v639 = vpop.f32.mrb[0].mxu0
        %640 = vdwg.mxu0
        %641 = vmatprep.subr.bf16.mxu0 %v600
        %642 = vmatpush1.bf16.xpose.msra.mxu0 %v599
        %643 = vmatprep.subr.bf16.mxu0 0
        %644 = vmatpush1.bf16.xpose.msra.mxu0 0
        %645 = vmatprep.subr.bf16.mxu0 0
        %646 = vmatpush1.bf16.xpose.msra.mxu0 0
        %647 = vmatprep.subr.bf16.mxu0 0
        %648 = vmatpush1.bf16.xpose.msra.mxu0 0
        %649 = vmatprep.subr.bf16.mxu0 0
        %650 = vmatpush1.bf16.xpose.msra.mxu0 0
        %651 = vmatprep.subr.bf16.mxu0 0
        %652 = vmatpush1.bf16.xpose.msra.mxu0 0
        %653 = vmatprep.subr.bf16.mxu0 0
        %654 = vmatpush1.bf16.xpose.msra.mxu0 0
        %655 = vmatprep.subr.bf16.mxu0 0
        %656 = vmatpush1.bf16.xpose.msra.mxu0 0
        %657 = vmatprep.subr.bf16.mxu0 0
        %658 = vmatpush1.bf16.xpose.msra.mxu0 0
        %659 = vmatprep.subr.bf16.mxu0 0
        %660 = vmatpush1.bf16.xpose.msra.mxu0 0
        %661 = vmatprep.subr.bf16.mxu0 0
        %662 = vmatpush1.bf16.xpose.msra.mxu0 0
        %663 = vmatprep.subr.bf16.mxu0 0
        %664 = vmatpush1.bf16.xpose.msra.mxu0 0
        %665 = vmatprep.subr.bf16.mxu0 0
        %666 = vmatpush1.bf16.xpose.msra.mxu0 0
        %667 = vmatprep.subr.bf16.mxu0 0
        %668 = vmatpush1.bf16.xpose.msra.mxu0 0
        %669 = vmatprep.subr.bf16.mxu0 0
        %670 = vmatpush1.bf16.xpose.msra.mxu0 0
        %671 = vmatprep.subr.bf16.mxu0 0
        %672 = vmatpush1.bf16.xpose.msra.mxu0 0
        %673 = vmatprep.mubr.bf16.mxu0 %v600
        %674 = vmatmul.mubr.bf16.gmra.mrb[0].mxu0 %v599
        %v675 = vpop.f32.mrb[0].mxu0
        %v676 = vadd.f32 0.0, %v675
        %v677 = vpop.f32.mrb[0].mxu0
        %v678 = vpop.f32.mrb[0].mxu0
        %v679 = vpop.f32.mrb[0].mxu0
        %680 = vdwg.mxu0
        %v681 = vpack.c.bf16 %v676, %v676
        %v682 = vmul.f32 %v312, %v636
        %v684 = vsel %vm543, %v681, 0
        %v686 = vsel %vm547, %v419, 0
        %688 = vmatprep.subr.bf16.mxu0 0
        %689 = vmatpush1.bf16.msra.mxu0 %v686
        %690 = vmatprep.subr.bf16.mxu0 0
        %691 = vmatpush1.bf16.msra.mxu0 0
        %692 = vmatprep.subr.bf16.mxu0 0
        %693 = vmatpush1.bf16.msra.mxu0 0
        %694 = vmatprep.subr.bf16.mxu0 0
        %695 = vmatpush1.bf16.msra.mxu0 0
        %696 = vmatprep.subr.bf16.mxu0 0
        %697 = vmatpush1.bf16.msra.mxu0 0
        %698 = vmatprep.subr.bf16.mxu0 0
        %699 = vmatpush1.bf16.msra.mxu0 0
        %700 = vmatprep.subr.bf16.mxu0 0
        %701 = vmatpush1.bf16.msra.mxu0 0
        %702 = vmatprep.subr.bf16.mxu0 0
        %703 = vmatpush1.bf16.msra.mxu0 0
        %704 = vmatprep.subr.bf16.mxu0 0
        %705 = vmatpush1.bf16.msra.mxu0 0
        %706 = vmatprep.subr.bf16.mxu0 0
        %707 = vmatpush1.bf16.msra.mxu0 0
        %708 = vmatprep.subr.bf16.mxu0 0
        %709 = vmatpush1.bf16.msra.mxu0 0
        %710 = vmatprep.subr.bf16.mxu0 0
        %711 = vmatpush1.bf16.msra.mxu0 0
        %712 = vmatprep.subr.bf16.mxu0 0
        %713 = vmatpush1.bf16.msra.mxu0 0
        %714 = vmatprep.subr.bf16.mxu0 0
        %715 = vmatpush1.bf16.msra.mxu0 0
        %716 = vmatprep.subr.bf16.mxu0 0
        %717 = vmatpush1.bf16.msra.mxu0 0
        %718 = vmatprep.subr.bf16.mxu0 0
        %719 = vmatpush1.bf16.msra.mxu0 0
        %720 = vmatprep.mubr.bf16.mxu0 0
        %721 = vmatmul.mubr.bf16.gmra.mrb[0].mxu0 %v684
        %v722 = vpop.f32.mrb[0].mxu0
        %v723 = vadd.f32 1e-06, %v722
        %v724 = vpop.f32.mrb[0].mxu0
        %v725 = vpop.f32.mrb[0].mxu0
        %v726 = vpop.f32.mrb[0].mxu0
        %727 = vdwg.mxu0
        %v728 = vrcp.pop %v723
        %v729 = vmul.f32 %v682, %v728
        %v730 = vpack.c.bf16 %v729, %v729
        %v732 = vsel %vm347, %v730, 0
        %734 = vmatprep.subr.bf16.mxu0 %v416
        %735 = vmatpush1.bf16.msra.mxu0 %v415
        %736 = vmatprep.subr.bf16.mxu0 %v418
        %737 = vmatpush1.bf16.msra.mxu0 %v417
        %738 = vmatprep.subr.bf16.mxu0 0
        %739 = vmatpush1.bf16.msra.mxu0 0
        %740 = vmatprep.subr.bf16.mxu0 0
        %741 = vmatpush1.bf16.msra.mxu0 0
        %742 = vmatprep.subr.bf16.mxu0 0
        %743 = vmatpush1.bf16.msra.mxu0 0
        %744 = vmatprep.subr.bf16.mxu0 0
        %745 = vmatpush1.bf16.msra.mxu0 0
        %746 = vmatprep.subr.bf16.mxu0 0
        %747 = vmatpush1.bf16.msra.mxu0 0
        %748 = vmatprep.subr.bf16.mxu0 0
        %749 = vmatpush1.bf16.msra.mxu0 0
        %750 = vmatprep.subr.bf16.mxu0 0
        %751 = vmatpush1.bf16.msra.mxu0 0
        %752 = vmatprep.subr.bf16.mxu0 0
        %753 = vmatpush1.bf16.msra.mxu0 0
        %754 = vmatprep.subr.bf16.mxu0 0
        %755 = vmatpush1.bf16.msra.mxu0 0
        %756 = vmatprep.subr.bf16.mxu0 0
        %757 = vmatpush1.bf16.msra.mxu0 0
        %758 = vmatprep.subr.bf16.mxu0 0
        %759 = vmatpush1.bf16.msra.mxu0 0
        %760 = vmatprep.subr.bf16.mxu0 0
        %761 = vmatpush1.bf16.msra.mxu0 0
        %762 = vmatprep.subr.bf16.mxu0 0
        %763 = vmatpush1.bf16.msra.mxu0 0
        %764 = vmatprep.subr.bf16.mxu0 0
        %765 = vmatpush1.bf16.msra.mxu0 0
        %766 = vmatprep.mubr.bf16.mxu0 0
        %767 = vmatmul.mubr.bf16.gmra.mrb[0].mxu0 %v732
        %v768 = vpop.f32.mrb[0].mxu0
        %v769 = vadd.f32 0.0, %v768
        %v770 = vpop.f32.mrb[0].mxu0
        %v771 = vadd.f32 0.0, %v770
        %v772 = vpop.f32.mrb[0].mxu0
        %v773 = vpop.f32.mrb[0].mxu0
        %774 = vdwg.mxu0
        %775 = vmatprep.subr.bf16.mxu0 0
        %776 = vmatpush1.bf16.xpose.msra.mxu0 %v732
        %777 = vmatprep.subr.bf16.mxu0 0
        %778 = vmatpush1.bf16.xpose.msra.mxu0 0
        %779 = vmatprep.subr.bf16.mxu0 0
        %780 = vmatpush1.bf16.xpose.msra.mxu0 0
        %781 = vmatprep.subr.bf16.mxu0 0
        %782 = vmatpush1.bf16.xpose.msra.mxu0 0
        %783 = vmatprep.subr.bf16.mxu0 0
        %784 = vmatpush1.bf16.xpose.msra.mxu0 0
        %785 = vmatprep.subr.bf16.mxu0 0
        %786 = vmatpush1.bf16.xpose.msra.mxu0 0
        %787 = vmatprep.subr.bf16.mxu0 0
        %788 = vmatpush1.bf16.xpose.msra.mxu0 0
        %789 = vmatprep.subr.bf16.mxu0 0
        %790 = vmatpush1.bf16.xpose.msra.mxu0 0
        %791 = vmatprep.subr.bf16.mxu0 0
        %792 = vmatpush1.bf16.xpose.msra.mxu0 0
        %793 = vmatprep.subr.bf16.mxu0 0
        %794 = vmatpush1.bf16.xpose.msra.mxu0 0
        %795 = vmatprep.subr.bf16.mxu0 0
        %796 = vmatpush1.bf16.xpose.msra.mxu0 0
        %797 = vmatprep.subr.bf16.mxu0 0
        %798 = vmatpush1.bf16.xpose.msra.mxu0 0
        %799 = vmatprep.subr.bf16.mxu0 0
        %800 = vmatpush1.bf16.xpose.msra.mxu0 0
        %801 = vmatprep.subr.bf16.mxu0 0
        %802 = vmatpush1.bf16.xpose.msra.mxu0 0
        %803 = vmatprep.subr.bf16.mxu0 0
        %804 = vmatpush1.bf16.xpose.msra.mxu0 0
        %805 = vmatprep.subr.bf16.mxu0 0
        %806 = vmatpush1.bf16.xpose.msra.mxu0 0
        %807 = vmatprep.mubr.bf16.mxu0 0
        %808 = vmatmul.mubr.bf16.gmra.mrb[0].mxu0 %v732
        %v809 = vpop.f32.mrb[0].mxu0
        %v810 = vadd.f32 0.0, %v809
        %v811 = vpop.f32.mrb[0].mxu0
        %v812 = vpop.f32.mrb[0].mxu0
        %v813 = vpop.f32.mrb[0].mxu0
        %814 = vdwg.mxu0
        %v815 = vpack.c.bf16 %v810, %v810
        %v816 = vmul.f32 %v597, %v769
        %v817 = vmul.f32 %v598, %v771
        %v819 = vsel %vm543, %v815, 0
        %v822 = vsel %vm547, %v599, 0
        %v825 = vsel %vm547, %v600, 0
        %827 = vmatprep.subr.bf16.mxu0 %v825
        %828 = vmatpush1.bf16.msra.mxu0 %v822
        %829 = vmatprep.subr.bf16.mxu0 0
        %830 = vmatpush1.bf16.msra.mxu0 0
        %831 = vmatprep.subr.bf16.mxu0 0
        %832 = vmatpush1.bf16.msra.mxu0 0
        %833 = vmatprep.subr.bf16.mxu0 0
        %834 = vmatpush1.bf16.msra.mxu0 0
        %835 = vmatprep.subr.bf16.mxu0 0
        %836 = vmatpush1.bf16.msra.mxu0 0
        %837 = vmatprep.subr.bf16.mxu0 0
        %838 = vmatpush1.bf16.msra.mxu0 0
        %839 = vmatprep.subr.bf16.mxu0 0
        %840 = vmatpush1.bf16.msra.mxu0 0
        %841 = vmatprep.subr.bf16.mxu0 0
        %842 = vmatpush1.bf16.msra.mxu0 0
        %843 = vmatprep.subr.bf16.mxu0 0
        %844 = vmatpush1.bf16.msra.mxu0 0
        %845 = vmatprep.subr.bf16.mxu0 0
        %846 = vmatpush1.bf16.msra.mxu0 0
        %847 = vmatprep.subr.bf16.mxu0 0
        %848 = vmatpush1.bf16.msra.mxu0 0
        %849 = vmatprep.subr.bf16.mxu0 0
        %850 = vmatpush1.bf16.msra.mxu0 0
        %851 = vmatprep.subr.bf16.mxu0 0
        %852 = vmatpush1.bf16.msra.mxu0 0
        %853 = vmatprep.subr.bf16.mxu0 0
        %854 = vmatpush1.bf16.msra.mxu0 0
        %855 = vmatprep.subr.bf16.mxu0 0
        %856 = vmatpush1.bf16.msra.mxu0 0
        %857 = vmatprep.subr.bf16.mxu0 0
        %858 = vmatpush1.bf16.msra.mxu0 0
        %859 = vmatprep.mubr.bf16.mxu0 0
        %860 = vmatmul.mubr.bf16.gmra.mrb[0].mxu0 %v819
        %v861 = vpop.f32.mrb[0].mxu0
        %v862 = vadd.f32 1e-06, %v861
        %v863 = vpop.f32.mrb[0].mxu0
        %v864 = vadd.f32 1e-06, %v863
        %v865 = vpop.f32.mrb[0].mxu0
        %v866 = vpop.f32.mrb[0].mxu0
        %867 = vdwg.mxu0
        %v868 = vrcp.pop %v862
        %v869 = vrcp.pop %v864
        %v870 = vmul.f32 %v816, %v868
        %v871 = vmul.f32 %v817, %v869
        %v872 = vpack.c.bf16 %v870, %v870
        %v873 = vpack.c.bf16 %v871, %v871
        %874 = vmatprep.subr.bf16.mxu0 %v416
        %875 = vmatpush1.bf16.xpose.msra.mxu0 %v415
        %876 = vmatprep.subr.bf16.mxu0 %v418
        %877 = vmatpush1.bf16.xpose.msra.mxu0 %v417
        %878 = vmatprep.subr.bf16.mxu0 0
        %879 = vmatpush1.bf16.xpose.msra.mxu0 0
        %880 = vmatprep.subr.bf16.mxu0 0
        %881 = vmatpush1.bf16.xpose.msra.mxu0 0
        %882 = vmatprep.subr.bf16.mxu0 0
        %883 = vmatpush1.bf16.xpose.msra.mxu0 0
        %884 = vmatprep.subr.bf16.mxu0 0
        %885 = vmatpush1.bf16.xpose.msra.mxu0 0
        %886 = vmatprep.subr.bf16.mxu0 0
        %887 = vmatpush1.bf16.xpose.msra.mxu0 0
        %888 = vmatprep.subr.bf16.mxu0 0
        %889 = vmatpush1.bf16.xpose.msra.mxu0 0
        %890 = vmatprep.subr.bf16.mxu0 0
        %891 = vmatpush1.bf16.xpose.msra.mxu0 0
        %892 = vmatprep.subr.bf16.mxu0 0
        %893 = vmatpush1.bf16.xpose.msra.mxu0 0
        %894 = vmatprep.subr.bf16.mxu0 0
        %895 = vmatpush1.bf16.xpose.msra.mxu0 0
        %896 = vmatprep.subr.bf16.mxu0 0
        %897 = vmatpush1.bf16.xpose.msra.mxu0 0
        %898 = vmatprep.subr.bf16.mxu0 0
        %899 = vmatpush1.bf16.xpose.msra.mxu0 0
        %900 = vmatprep.subr.bf16.mxu0 0
        %901 = vmatpush1.bf16.xpose.msra.mxu0 0
        %902 = vmatprep.subr.bf16.mxu0 0
        %903 = vmatpush1.bf16.xpose.msra.mxu0 0
        %904 = vmatprep.subr.bf16.mxu0 0
        %905 = vmatpush1.bf16.xpose.msra.mxu0 0
        %906 = vmatprep.mubr.bf16.mxu0 %v873
        %907 = vmatmul.mubr.bf16.gmra.mrb[0].mxu0 %v872
        %v908 = vpop.f32.mrb[0].mxu0
        %v909 = vadd.f32 0.0, %v908
        %v910 = vpop.f32.mrb[0].mxu0
        %v911 = vpop.f32.mrb[0].mxu0
        %v912 = vpop.f32.mrb[0].mxu0
        %913 = vdwg.mxu0
        %914 = vmatprep.subr.bf16.mxu0 %v873
        %915 = vmatpush1.bf16.xpose.msra.mxu0 %v872
        %916 = vmatprep.subr.bf16.mxu0 0
        %917 = vmatpush1.bf16.xpose.msra.mxu0 0
        %918 = vmatprep.subr.bf16.mxu0 0
        %919 = vmatpush1.bf16.xpose.msra.mxu0 0
        %920 = vmatprep.subr.bf16.mxu0 0
        %921 = vmatpush1.bf16.xpose.msra.mxu0 0
        %922 = vmatprep.subr.bf16.mxu0 0
        %923 = vmatpush1.bf16.xpose.msra.mxu0 0
        %924 = vmatprep.subr.bf16.mxu0 0
        %925 = vmatpush1.bf16.xpose.msra.mxu0 0
        %926 = vmatprep.subr.bf16.mxu0 0
        %927 = vmatpush1.bf16.xpose.msra.mxu0 0
        %928 = vmatprep.subr.bf16.mxu0 0
        %929 = vmatpush1.bf16.xpose.msra.mxu0 0
        %930 = vmatprep.subr.bf16.mxu0 0
        %931 = vmatpush1.bf16.xpose.msra.mxu0 0
        %932 = vmatprep.subr.bf16.mxu0 0
        %933 = vmatpush1.bf16.xpose.msra.mxu0 0
        %934 = vmatprep.subr.bf16.mxu0 0
        %935 = vmatpush1.bf16.xpose.msra.mxu0 0
        %936 = vmatprep.subr.bf16.mxu0 0
        %937 = vmatpush1.bf16.xpose.msra.mxu0 0
        %938 = vmatprep.subr.bf16.mxu0 0
        %939 = vmatpush1.bf16.xpose.msra.mxu0 0
        %940 = vmatprep.subr.bf16.mxu0 0
        %941 = vmatpush1.bf16.xpose.msra.mxu0 0
        %942 = vmatprep.subr.bf16.mxu0 0
        %943 = vmatpush1.bf16.xpose.msra.mxu0 0
        %944 = vmatprep.subr.bf16.mxu0 0
        %945 = vmatpush1.bf16.xpose.msra.mxu0 0
        %946 = vmatprep.mubr.bf16.mxu0 %v873
        %947 = vmatmul.mubr.bf16.gmra.mrb[0].mxu0 %v872
        %v948 = vpop.f32.mrb[0].mxu0
        %v949 = vadd.f32 0.0, %v948
        %v950 = vpop.f32.mrb[0].mxu0
        %v951 = vpop.f32.mrb[0].mxu0
        %v952 = vpop.f32.mrb[0].mxu0
        %953 = vdwg.mxu0
        %v954 = vpack.c.bf16 %v949, %v949
        %v955 = vmul.f32 %v729, %v909
        %v957 = vsel %vm543, %v954, 0
        %v959 = vsel %vm547, %v730, 0
        %961 = vmatprep.subr.bf16.mxu0 0
        %962 = vmatpush1.bf16.msra.mxu0 %v959
        %963 = vmatprep.subr.bf16.mxu0 0
        %964 = vmatpush1.bf16.msra.mxu0 0
        %965 = vmatprep.subr.bf16.mxu0 0
        %966 = vmatpush1.bf16.msra.mxu0 0
        %967 = vmatprep.subr.bf16.mxu0 0
        %968 = vmatpush1.bf16.msra.mxu0 0
        %969 = vmatprep.subr.bf16.mxu0 0
        %970 = vmatpush1.bf16.msra.mxu0 0
        %971 = vmatprep.subr.bf16.mxu0 0
        %972 = vmatpush1.bf16.msra.mxu0 0
        %973 = vmatprep.subr.bf16.mxu0 0
        %974 = vmatpush1.bf16.msra.mxu0 0
        %975 = vmatprep.subr.bf16.mxu0 0
        %976 = vmatpush1.bf16.msra.mxu0 0
        %977 = vmatprep.subr.bf16.mxu0 0
        %978 = vmatpush1.bf16.msra.mxu0 0
        %979 = vmatprep.subr.bf16.mxu0 0
        %980 = vmatpush1.bf16.msra.mxu0 0
        %981 = vmatprep.subr.bf16.mxu0 0
        %982 = vmatpush1.bf16.msra.mxu0 0
        %983 = vmatprep.subr.bf16.mxu0 0
        %984 = vmatpush1.bf16.msra.mxu0 0
        %985 = vmatprep.subr.bf16.mxu0 0
        %986 = vmatpush1.bf16.msra.mxu0 0
        %987 = vmatprep.subr.bf16.mxu0 0
        %988 = vmatpush1.bf16.msra.mxu0 0
        %989 = vmatprep.subr.bf16.mxu0 0
        %990 = vmatpush1.bf16.msra.mxu0 0
        %991 = vmatprep.subr.bf16.mxu0 0
        %992 = vmatpush1.bf16.msra.mxu0 0
        %993 = vmatprep.mubr.bf16.mxu0 0
        %994 = vmatmul.mubr.bf16.gmra.mrb[0].mxu0 %v957
        %v995 = vpop.f32.mrb[0].mxu0
        %v996 = vadd.f32 1e-06, %v995
        %v997 = vpop.f32.mrb[0].mxu0
        %v998 = vpop.f32.mrb[0].mxu0
        %v999 = vpop.f32.mrb[0].mxu0
        %1000 = vdwg.mxu0
        %v1001 = vrcp.pop %v996
        %v1002 = vmul.f32 %v955, %v1001
        %v1003 = vpack.c.bf16 %v1002, %v1002
        %v1005 = vsel %vm347, %v1003, 0
        %1007 = vmatprep.subr.bf16.mxu0 %v416
        %1008 = vmatpush1.bf16.msra.mxu0 %v415
        %1009 = vmatprep.subr.bf16.mxu0 %v418
        %1010 = vmatpush1.bf16.msra.mxu0 %v417
        %1011 = vmatprep.subr.bf16.mxu0 0
        %1012 = vmatpush1.bf16.msra.mxu0 0
        %1013 = vmatprep.subr.bf16.mxu0 0
        %1014 = vmatpush1.bf16.msra.mxu0 0
        %1015 = vmatprep.subr.bf16.mxu0 0
        %1016 = vmatpush1.bf16.msra.mxu0 0
        %1017 = vmatprep.subr.bf16.mxu0 0
        %1018 = vmatpush1.bf16.msra.mxu0 0
        %1019 = vmatprep.subr.bf16.mxu0 0
        %1020 = vmatpush1.bf16.msra.mxu0 0
        %1021 = vmatprep.subr.bf16.mxu0 0
        %1022 = vmatpush1.bf16.msra.mxu0 0
        %1023 = vmatprep.subr.bf16.mxu0 0
        %1024 = vmatpush1.bf16.msra.mxu0 0
        %1025 = vmatprep.subr.bf16.mxu0 0
        %1026 = vmatpush1.bf16.msra.mxu0 0
        %1027 = vmatprep.subr.bf16.mxu0 0
        %1028 = vmatpush1.bf16.msra.mxu0 0
        %1029 = vmatprep.subr.bf16.mxu0 0
        %1030 = vmatpush1.bf16.msra.mxu0 0
        %1031 = vmatprep.subr.bf16.mxu0 0
        %1032 = vmatpush1.bf16.msra.mxu0 0
        %1033 = vmatprep.subr.bf16.mxu0 0
        %1034 = vmatpush1.bf16.msra.mxu0 0
        %1035 = vmatprep.subr.bf16.mxu0 0
        %1036 = vmatpush1.bf16.msra.mxu0 0
        %1037 = vmatprep.subr.bf16.mxu0 0
        %1038 = vmatpush1.bf16.msra.mxu0 0
        %1039 = vmatprep.mubr.bf16.mxu0 0
        %1040 = vmatmul.mubr.bf16.gmra.mrb[0].mxu0 %v1005
        %v1041 = vpop.f32.mrb[0].mxu0
        %v1042 = vadd.f32 0.0, %v1041
        %v1043 = vpop.f32.mrb[0].mxu0
        %v1044 = vadd.f32 0.0, %v1043
        %v1045 = vpop.f32.mrb[0].mxu0
        %v1046 = vpop.f32.mrb[0].mxu0
        %1047 = vdwg.mxu0
        %1048 = vmatprep.subr.bf16.mxu0 0
        %1049 = vmatpush1.bf16.xpose.msra.mxu0 %v1005
        %1050 = vmatprep.subr.bf16.mxu0 0
        %1051 = vmatpush1.bf16.xpose.msra.mxu0 0
        %1052 = vmatprep.subr.bf16.mxu0 0
        %1053 = vmatpush1.bf16.xpose.msra.mxu0 0
        %1054 = vmatprep.subr.bf16.mxu0 0
        %1055 = vmatpush1.bf16.xpose.msra.mxu0 0
        %1056 = vmatprep.subr.bf16.mxu0 0
        %1057 = vmatpush1.bf16.xpose.msra.mxu0 0
        %1058 = vmatprep.subr.bf16.mxu0 0
        %1059 = vmatpush1.bf16.xpose.msra.mxu0 0
        %1060 = vmatprep.subr.bf16.mxu0 0
        %1061 = vmatpush1.bf16.xpose.msra.mxu0 0
        %1062 = vmatprep.subr.bf16.mxu0 0
        %1063 = vmatpush1.bf16.xpose.msra.mxu0 0
        %1064 = vmatprep.subr.bf16.mxu0 0
        %1065 = vmatpush1.bf16.xpose.msra.mxu0 0
        %1066 = vmatprep.subr.bf16.mxu0 0
        %1067 = vmatpush1.bf16.xpose.msra.mxu0 0
        %1068 = vmatprep.subr.bf16.mxu0 0
        %1069 = vmatpush1.bf16.xpose.msra.mxu0 0
        %1070 = vmatprep.subr.bf16.mxu0 0
        %1071 = vmatpush1.bf16.xpose.msra.mxu0 0
        %1072 = vmatprep.subr.bf16.mxu0 0
        %1073 = vmatpush1.bf16.xpose.msra.mxu0 0
        %1074 = vmatprep.subr.bf16.mxu0 0
        %1075 = vmatpush1.bf16.xpose.msra.mxu0 0
        %1076 = vmatprep.subr.bf16.mxu0 0
        %1077 = vmatpush1.bf16.xpose.msra.mxu0 0
        %1078 = vmatprep.subr.bf16.mxu0 0
        %1079 = vmatpush1.bf16.xpose.msra.mxu0 0
        %1080 = vmatprep.mubr.bf16.mxu0 0
        %1081 = vmatmul.mubr.bf16.gmra.mrb[0].mxu0 %v1005
        %v1082 = vpop.f32.mrb[0].mxu0
        %v1083 = vadd.f32 0.0, %v1082
        %v1084 = vpop.f32.mrb[0].mxu0
        %v1085 = vpop.f32.mrb[0].mxu0
        %v1086 = vpop.f32.mrb[0].mxu0
        %1087 = vdwg.mxu0
        %v1088 = vpack.c.bf16 %v1083, %v1083
        %v1089 = vmul.f32 %v870, %v1042
        %v1090 = vmul.f32 %v871, %v1044
        %v1092 = vsel %vm543, %v1088, 0
        %v1095 = vsel %vm547, %v872, 0
        %v1098 = vsel %vm547, %v873, 0
        %1100 = vmatprep.subr.bf16.mxu0 %v1098
        %1101 = vmatpush1.bf16.msra.mxu0 %v1095
        %1102 = vmatprep.subr.bf16.mxu0 0
        %1103 = vmatpush1.bf16.msra.mxu0 0
        %1104 = vmatprep.subr.bf16.mxu0 0
        %1105 = vmatpush1.bf16.msra.mxu0 0
        %1106 = vmatprep.subr.bf16.mxu0 0
        %1107 = vmatpush1.bf16.msra.mxu0 0
        %1108 = vmatprep.subr.bf16.mxu0 0
        %1109 = vmatpush1.bf16.msra.mxu0 0
        %1110 = vmatprep.subr.bf16.mxu0 0
        %1111 = vmatpush1.bf16.msra.mxu0 0
        %1112 = vmatprep.subr.bf16.mxu0 0
        %1113 = vmatpush1.bf16.msra.mxu0 0
        %1114 = vmatprep.subr.bf16.mxu0 0
        %1115 = vmatpush1.bf16.msra.mxu0 0
        %1116 = vmatprep.subr.bf16.mxu0 0
        %1117 = vmatpush1.bf16.msra.mxu0 0
        %1118 = vmatprep.subr.bf16.mxu0 0
        %1119 = vmatpush1.bf16.msra.mxu0 0
        %1120 = vmatprep.subr.bf16.mxu0 0
        %1121 = vmatpush1.bf16.msra.mxu0 0
        %1122 = vmatprep.subr.bf16.mxu0 0
        %1123 = vmatpush1.bf16.msra.mxu0 0
        %1124 = vmatprep.subr.bf16.mxu0 0
        %1125 = vmatpush1.bf16.msra.mxu0 0
        %1126 = vmatprep.subr.bf16.mxu0 0
        %1127 = vmatpush1.bf16.msra.mxu0 0
        %1128 = vmatprep.subr.bf16.mxu0 0
        %1129 = vmatpush1.bf16.msra.mxu0 0
        %1130 = vmatprep.subr.bf16.mxu0 0
        %1131 = vmatpush1.bf16.msra.mxu0 0
        %1132 = vmatprep.mubr.bf16.mxu0 0
        %1133 = vmatmul.mubr.bf16.gmra.mrb[0].mxu0 %v1092
        %v1134 = vpop.f32.mrb[0].mxu0
        %v1135 = vadd.f32 1e-06, %v1134
        %v1136 = vpop.f32.mrb[0].mxu0
        %v1137 = vadd.f32 1e-06, %v1136
        %v1138 = vpop.f32.mrb[0].mxu0
        %v1139 = vpop.f32.mrb[0].mxu0
        %1140 = vdwg.mxu0
        %v1141 = vrcp.pop %v1135
        %v1142 = vrcp.pop %v1137
        %v1143 = vmul.f32 %v1089, %v1141
        %v1144 = vmul.f32 %v1090, %v1142
        %v1145 = vpack.c.bf16 %v1143, %v1143
        %v1146 = vpack.c.bf16 %v1144, %v1144
        %1147 = vmatprep.subr.bf16.mxu0 %v416
        %1148 = vmatpush1.bf16.xpose.msra.mxu0 %v415
        %1149 = vmatprep.subr.bf16.mxu0 %v418
        %1150 = vmatpush1.bf16.xpose.msra.mxu0 %v417
        %1151 = vmatprep.subr.bf16.mxu0 0
        %1152 = vmatpush1.bf16.xpose.msra.mxu0 0
        %1153 = vmatprep.subr.bf16.mxu0 0
        %1154 = vmatpush1.bf16.xpose.msra.mxu0 0
        %1155 = vmatprep.subr.bf16.mxu0 0
        %1156 = vmatpush1.bf16.xpose.msra.mxu0 0
        %1157 = vmatprep.subr.bf16.mxu0 0
        %1158 = vmatpush1.bf16.xpose.msra.mxu0 0
        %1159 = vmatprep.subr.bf16.mxu0 0
        %1160 = vmatpush1.bf16.xpose.msra.mxu0 0
        %1161 = vmatprep.subr.bf16.mxu0 0
        %1162 = vmatpush1.bf16.xpose.msra.mxu0 0
        %1163 = vmatprep.subr.bf16.mxu0 0
        %1164 = vmatpush1.bf16.xpose.msra.mxu0 0
        %1165 = vmatprep.subr.bf16.mxu0 0
        %1166 = vmatpush1.bf16.xpose.msra.mxu0 0
        %1167 = vmatprep.subr.bf16.mxu0 0
        %1168 = vmatpush1.bf16.xpose.msra.mxu0 0
        %1169 = vmatprep.subr.bf16.mxu0 0
        %1170 = vmatpush1.bf16.xpose.msra.mxu0 0
        %1171 = vmatprep.subr.bf16.mxu0 0
        %1172 = vmatpush1.bf16.xpose.msra.mxu0 0
        %1173 = vmatprep.subr.bf16.mxu0 0
        %1174 = vmatpush1.bf16.xpose.msra.mxu0 0
        %1175 = vmatprep.subr.bf16.mxu0 0
        %1176 = vmatpush1.bf16.xpose.msra.mxu0 0
        %1177 = vmatprep.subr.bf16.mxu0 0
        %1178 = vmatpush1.bf16.xpose.msra.mxu0 0
        %1179 = vmatprep.mubr.bf16.mxu0 %v1146
        %1180 = vmatmul.mubr.bf16.gmra.mrb[0].mxu0 %v1145
        %v1181 = vpop.f32.mrb[0].mxu0
        %v1182 = vadd.f32 0.0, %v1181
        %v1183 = vpop.f32.mrb[0].mxu0
        %v1184 = vpop.f32.mrb[0].mxu0
        %v1185 = vpop.f32.mrb[0].mxu0
        %1186 = vdwg.mxu0
        %1187 = vmatprep.subr.bf16.mxu0 %v1146
        %1188 = vmatpush1.bf16.xpose.msra.mxu0 %v1145
        %1189 = vmatprep.subr.bf16.mxu0 0
        %1190 = vmatpush1.bf16.xpose.msra.mxu0 0
        %1191 = vmatprep.subr.bf16.mxu0 0
        %1192 = vmatpush1.bf16.xpose.msra.mxu0 0
        %1193 = vmatprep.subr.bf16.mxu0 0
        %1194 = vmatpush1.bf16.xpose.msra.mxu0 0
        %1195 = vmatprep.subr.bf16.mxu0 0
        %1196 = vmatpush1.bf16.xpose.msra.mxu0 0
        %1197 = vmatprep.subr.bf16.mxu0 0
        %1198 = vmatpush1.bf16.xpose.msra.mxu0 0
        %1199 = vmatprep.subr.bf16.mxu0 0
        %1200 = vmatpush1.bf16.xpose.msra.mxu0 0
        %1201 = vmatprep.subr.bf16.mxu0 0
        %1202 = vmatpush1.bf16.xpose.msra.mxu0 0
        %1203 = vmatprep.subr.bf16.mxu0 0
        %1204 = vmatpush1.bf16.xpose.msra.mxu0 0
        %1205 = vmatprep.subr.bf16.mxu0 0
        %1206 = vmatpush1.bf16.xpose.msra.mxu0 0
        %1207 = vmatprep.subr.bf16.mxu0 0
        %1208 = vmatpush1.bf16.xpose.msra.mxu0 0
        %1209 = vmatprep.subr.bf16.mxu0 0
        %1210 = vmatpush1.bf16.xpose.msra.mxu0 0
        %1211 = vmatprep.subr.bf16.mxu0 0
        %1212 = vmatpush1.bf16.xpose.msra.mxu0 0
        %1213 = vmatprep.subr.bf16.mxu0 0
        %1214 = vmatpush1.bf16.xpose.msra.mxu0 0
        %1215 = vmatprep.subr.bf16.mxu0 0
        %1216 = vmatpush1.bf16.xpose.msra.mxu0 0
        %1217 = vmatprep.subr.bf16.mxu0 0
        %1218 = vmatpush1.bf16.xpose.msra.mxu0 0
        %1219 = vmatprep.mubr.bf16.mxu0 %v1146
        %1220 = vmatmul.mubr.bf16.gmra.mrb[0].mxu0 %v1145
        %v1221 = vpop.f32.mrb[0].mxu0
        %v1222 = vadd.f32 0.0, %v1221
        %v1223 = vpop.f32.mrb[0].mxu0
        %v1224 = vpop.f32.mrb[0].mxu0
        %v1225 = vpop.f32.mrb[0].mxu0
        %1226 = vdwg.mxu0
        %v1227 = vpack.c.bf16 %v1222, %v1222
        %v1228 = vmul.f32 %v1002, %v1182
        %v1230 = vsel %vm543, %v1227, 0
        %v1232 = vsel %vm547, %v1003, 0
        %1234 = vmatprep.subr.bf16.mxu0 0
        %1235 = vmatpush1.bf16.msra.mxu0 %v1232
        %1236 = vmatprep.subr.bf16.mxu0 0
        %1237 = vmatpush1.bf16.msra.mxu0 0
        %1238 = vmatprep.subr.bf16.mxu0 0
        %1239 = vmatpush1.bf16.msra.mxu0 0
        %1240 = vmatprep.subr.bf16.mxu0 0
        %1241 = vmatpush1.bf16.msra.mxu0 0
        %1242 = vmatprep.subr.bf16.mxu0 0
        %1243 = vmatpush1.bf16.msra.mxu0 0
        %1244 = vmatprep.subr.bf16.mxu0 0
        %1245 = vmatpush1.bf16.msra.mxu0 0
        %1246 = vmatprep.subr.bf16.mxu0 0
        %1247 = vmatpush1.bf16.msra.mxu0 0
        %1248 = vmatprep.subr.bf16.mxu0 0
        %1249 = vmatpush1.bf16.msra.mxu0 0
        %1250 = vmatprep.subr.bf16.mxu0 0
        %1251 = vmatpush1.bf16.msra.mxu0 0
        %1252 = vmatprep.subr.bf16.mxu0 0
        %1253 = vmatpush1.bf16.msra.mxu0 0
        %1254 = vmatprep.subr.bf16.mxu0 0
        %1255 = vmatpush1.bf16.msra.mxu0 0
        %1256 = vmatprep.subr.bf16.mxu0 0
        %1257 = vmatpush1.bf16.msra.mxu0 0
        %1258 = vmatprep.subr.bf16.mxu0 0
        %1259 = vmatpush1.bf16.msra.mxu0 0
        %1260 = vmatprep.subr.bf16.mxu0 0
        %1261 = vmatpush1.bf16.msra.mxu0 0
        %1262 = vmatprep.subr.bf16.mxu0 0
        %1263 = vmatpush1.bf16.msra.mxu0 0
        %1264 = vmatprep.subr.bf16.mxu0 0
        %1265 = vmatpush1.bf16.msra.mxu0 0
        %1266 = vmatprep.mubr.bf16.mxu0 0
        %1267 = vmatmul.mubr.bf16.gmra.mrb[0].mxu0 %v1230
        %v1268 = vpop.f32.mrb[0].mxu0
        %v1269 = vadd.f32 1e-06, %v1268
        %v1270 = vpop.f32.mrb[0].mxu0
        %v1271 = vpop.f32.mrb[0].mxu0
        %v1272 = vpop.f32.mrb[0].mxu0
        %1273 = vdwg.mxu0
        %v1274 = vrcp.pop %v1269
        %v1275 = vmul.f32 %v1228, %v1274
        %v1276 = vpack.c.bf16 %v1275, %v1275
        %v1278 = vsel %vm347, %v1276, 0
        %1280 = vmatprep.subr.bf16.mxu0 %v416
        %1281 = vmatpush1.bf16.msra.mxu0 %v415
        %1282 = vmatprep.subr.bf16.mxu0 %v418
        %1283 = vmatpush1.bf16.msra.mxu0 %v417
        %1284 = vmatprep.subr.bf16.mxu0 0
        %1285 = vmatpush1.bf16.msra.mxu0 0
        %1286 = vmatprep.subr.bf16.mxu0 0
        %1287 = vmatpush1.bf16.msra.mxu0 0
        %1288 = vmatprep.subr.bf16.mxu0 0
        %1289 = vmatpush1.bf16.msra.mxu0 0
        %1290 = vmatprep.subr.bf16.mxu0 0
        %1291 = vmatpush1.bf16.msra.mxu0 0
        %1292 = vmatprep.subr.bf16.mxu0 0
        %1293 = vmatpush1.bf16.msra.mxu0 0
        %1294 = vmatprep.subr.bf16.mxu0 0
        %1295 = vmatpush1.bf16.msra.mxu0 0
        %1296 = vmatprep.subr.bf16.mxu0 0
        %1297 = vmatpush1.bf16.msra.mxu0 0
        %1298 = vmatprep.subr.bf16.mxu0 0
        %1299 = vmatpush1.bf16.msra.mxu0 0
        %1300 = vmatprep.subr.bf16.mxu0 0
        %1301 = vmatpush1.bf16.msra.mxu0 0
        %1302 = vmatprep.subr.bf16.mxu0 0
        %1303 = vmatpush1.bf16.msra.mxu0 0
        %1304 = vmatprep.subr.bf16.mxu0 0
        %1305 = vmatpush1.bf16.msra.mxu0 0
        %1306 = vmatprep.subr.bf16.mxu0 0
        %1307 = vmatpush1.bf16.msra.mxu0 0
        %1308 = vmatprep.subr.bf16.mxu0 0
        %1309 = vmatpush1.bf16.msra.mxu0 0
        %1310 = vmatprep.subr.bf16.mxu0 0
        %1311 = vmatpush1.bf16.msra.mxu0 0
        %1312 = vmatprep.mubr.bf16.mxu0 0
        %1313 = vmatmul.mubr.bf16.gmra.mrb[0].mxu0 %v1278
        %v1314 = vpop.f32.mrb[0].mxu0
        %v1315 = vadd.f32 0.0, %v1314
        %v1316 = vpop.f32.mrb[0].mxu0
        %v1317 = vadd.f32 0.0, %v1316
        %v1318 = vpop.f32.mrb[0].mxu0
        %v1319 = vpop.f32.mrb[0].mxu0
        %1320 = vdwg.mxu0
        %1321 = vmatprep.subr.bf16.mxu0 0
        %1322 = vmatpush1.bf16.xpose.msra.mxu0 %v1278
        %1323 = vmatprep.subr.bf16.mxu0 0
        %1324 = vmatpush1.bf16.xpose.msra.mxu0 0
        %1325 = vmatprep.subr.bf16.mxu0 0
        %1326 = vmatpush1.bf16.xpose.msra.mxu0 0
        %1327 = vmatprep.subr.bf16.mxu0 0
        %1328 = vmatpush1.bf16.xpose.msra.mxu0 0
        %1329 = vmatprep.subr.bf16.mxu0 0
        %1330 = vmatpush1.bf16.xpose.msra.mxu0 0
        %1331 = vmatprep.subr.bf16.mxu0 0
        %1332 = vmatpush1.bf16.xpose.msra.mxu0 0
        %1333 = vmatprep.subr.bf16.mxu0 0
        %1334 = vmatpush1.bf16.xpose.msra.mxu0 0
        %1335 = vmatprep.subr.bf16.mxu0 0
        %1336 = vmatpush1.bf16.xpose.msra.mxu0 0
        %1337 = vmatprep.subr.bf16.mxu0 0
        %1338 = vmatpush1.bf16.xpose.msra.mxu0 0
        %1339 = vmatprep.subr.bf16.mxu0 0
        %1340 = vmatpush1.bf16.xpose.msra.mxu0 0
        %1341 = vmatprep.subr.bf16.mxu0 0
        %1342 = vmatpush1.bf16.xpose.msra.mxu0 0
        %1343 = vmatprep.subr.bf16.mxu0 0
        %1344 = vmatpush1.bf16.xpose.msra.mxu0 0
        %1345 = vmatprep.subr.bf16.mxu0 0
        %1346 = vmatpush1.bf16.xpose.msra.mxu0 0
        %1347 = vmatprep.subr.bf16.mxu0 0
        %1348 = vmatpush1.bf16.xpose.msra.mxu0 0
        %1349 = vmatprep.subr.bf16.mxu0 0
        %1350 = vmatpush1.bf16.xpose.msra.mxu0 0
        %1351 = vmatprep.subr.bf16.mxu0 0
        %1352 = vmatpush1.bf16.xpose.msra.mxu0 0
        %1353 = vmatprep.mubr.bf16.mxu0 0
        %1354 = vmatmul.mubr.bf16.gmra.mrb[0].mxu0 %v1278
        %v1355 = vpop.f32.mrb[0].mxu0
        %v1356 = vadd.f32 0.0, %v1355
        %v1357 = vpop.f32.mrb[0].mxu0
        %v1358 = vpop.f32.mrb[0].mxu0
        %v1359 = vpop.f32.mrb[0].mxu0
        %1360 = vdwg.mxu0
        %v1361 = vpack.c.bf16 %v1356, %v1356
        %v1362 = vmul.f32 %v1143, %v1315
        %v1363 = vmul.f32 %v1144, %v1317
        %v1365 = vsel %vm543, %v1361, 0
        %v1368 = vsel %vm547, %v1145, 0
        %v1371 = vsel %vm547, %v1146, 0
        %1373 = vmatprep.subr.bf16.mxu0 %v1371
        %1374 = vmatpush1.bf16.msra.mxu0 %v1368
        %1375 = vmatprep.subr.bf16.mxu0 0
        %1376 = vmatpush1.bf16.msra.mxu0 0
        %1377 = vmatprep.subr.bf16.mxu0 0
        %1378 = vmatpush1.bf16.msra.mxu0 0
        %1379 = vmatprep.subr.bf16.mxu0 0
        %1380 = vmatpush1.bf16.msra.mxu0 0
        %1381 = vmatprep.subr.bf16.mxu0 0
        %1382 = vmatpush1.bf16.msra.mxu0 0
        %1383 = vmatprep.subr.bf16.mxu0 0
        %1384 = vmatpush1.bf16.msra.mxu0 0
        %1385 = vmatprep.subr.bf16.mxu0 0
        %1386 = vmatpush1.bf16.msra.mxu0 0
        %1387 = vmatprep.subr.bf16.mxu0 0
        %1388 = vmatpush1.bf16.msra.mxu0 0
        %1389 = vmatprep.subr.bf16.mxu0 0
        %1390 = vmatpush1.bf16.msra.mxu0 0
        %1391 = vmatprep.subr.bf16.mxu0 0
        %1392 = vmatpush1.bf16.msra.mxu0 0
        %1393 = vmatprep.subr.bf16.mxu0 0
        %1394 = vmatpush1.bf16.msra.mxu0 0
        %1395 = vmatprep.subr.bf16.mxu0 0
        %1396 = vmatpush1.bf16.msra.mxu0 0
        %1397 = vmatprep.subr.bf16.mxu0 0
        %1398 = vmatpush1.bf16.msra.mxu0 0
        %1399 = vmatprep.subr.bf16.mxu0 0
        %1400 = vmatpush1.bf16.msra.mxu0 0
        %1401 = vmatprep.subr.bf16.mxu0 0
        %1402 = vmatpush1.bf16.msra.mxu0 0
        %1403 = vmatprep.subr.bf16.mxu0 0
        %1404 = vmatpush1.bf16.msra.mxu0 0
        %1405 = vmatprep.mubr.bf16.mxu0 0
        %1406 = vmatmul.mubr.bf16.gmra.mrb[0].mxu0 %v1365
        %v1407 = vpop.f32.mrb[0].mxu0
        %v1408 = vadd.f32 1e-06, %v1407
        %v1409 = vpop.f32.mrb[0].mxu0
        %v1410 = vadd.f32 1e-06, %v1409
        %v1411 = vpop.f32.mrb[0].mxu0
        %v1412 = vpop.f32.mrb[0].mxu0
        %1413 = vdwg.mxu0
        %v1414 = vrcp.pop %v1408
        %v1415 = vrcp.pop %v1410
        %v1416 = vmul.f32 %v1362, %v1414
        %v1417 = vmul.f32 %v1363, %v1415
        %v1418 = vpack.c.bf16 %v1416, %v1416
        %v1419 = vpack.c.bf16 %v1417, %v1417
        %1420 = vmatprep.subr.bf16.mxu0 %v416
        %1421 = vmatpush1.bf16.xpose.msra.mxu0 %v415
        %1422 = vmatprep.subr.bf16.mxu0 %v418
        %1423 = vmatpush1.bf16.xpose.msra.mxu0 %v417
        %1424 = vmatprep.subr.bf16.mxu0 0
        %1425 = vmatpush1.bf16.xpose.msra.mxu0 0
        %1426 = vmatprep.subr.bf16.mxu0 0
        %1427 = vmatpush1.bf16.xpose.msra.mxu0 0
        %1428 = vmatprep.subr.bf16.mxu0 0
        %1429 = vmatpush1.bf16.xpose.msra.mxu0 0
        %1430 = vmatprep.subr.bf16.mxu0 0
        %1431 = vmatpush1.bf16.xpose.msra.mxu0 0
        %1432 = vmatprep.subr.bf16.mxu0 0
        %1433 = vmatpush1.bf16.xpose.msra.mxu0 0
        %1434 = vmatprep.subr.bf16.mxu0 0
        %1435 = vmatpush1.bf16.xpose.msra.mxu0 0
        %1436 = vmatprep.subr.bf16.mxu0 0
        %1437 = vmatpush1.bf16.xpose.msra.mxu0 0
        %1438 = vmatprep.subr.bf16.mxu0 0
        %1439 = vmatpush1.bf16.xpose.msra.mxu0 0
        %1440 = vmatprep.subr.bf16.mxu0 0
        %1441 = vmatpush1.bf16.xpose.msra.mxu0 0
        %1442 = vmatprep.subr.bf16.mxu0 0
        %1443 = vmatpush1.bf16.xpose.msra.mxu0 0
        %1444 = vmatprep.subr.bf16.mxu0 0
        %1445 = vmatpush1.bf16.xpose.msra.mxu0 0
        %1446 = vmatprep.subr.bf16.mxu0 0
        %1447 = vmatpush1.bf16.xpose.msra.mxu0 0
        %1448 = vmatprep.subr.bf16.mxu0 0
        %1449 = vmatpush1.bf16.xpose.msra.mxu0 0
        %1450 = vmatprep.subr.bf16.mxu0 0
        %1451 = vmatpush1.bf16.xpose.msra.mxu0 0
        %1452 = vmatprep.mubr.bf16.mxu0 %v1419
        %1453 = vmatmul.mubr.bf16.gmra.mrb[0].mxu0 %v1418
        %v1454 = vpop.f32.mrb[0].mxu0
        %v1455 = vadd.f32 0.0, %v1454
        %v1456 = vpop.f32.mrb[0].mxu0
        %v1457 = vpop.f32.mrb[0].mxu0
        %v1458 = vpop.f32.mrb[0].mxu0
        %1459 = vdwg.mxu0
        %1460 = vmatprep.subr.bf16.mxu0 %v1419
        %1461 = vmatpush1.bf16.xpose.msra.mxu0 %v1418
        %1462 = vmatprep.subr.bf16.mxu0 0
        %1463 = vmatpush1.bf16.xpose.msra.mxu0 0
        %1464 = vmatprep.subr.bf16.mxu0 0
        %1465 = vmatpush1.bf16.xpose.msra.mxu0 0
        %1466 = vmatprep.subr.bf16.mxu0 0
        %1467 = vmatpush1.bf16.xpose.msra.mxu0 0
        %1468 = vmatprep.subr.bf16.mxu0 0
        %1469 = vmatpush1.bf16.xpose.msra.mxu0 0
        %1470 = vmatprep.subr.bf16.mxu0 0
        %1471 = vmatpush1.bf16.xpose.msra.mxu0 0
        %1472 = vmatprep.subr.bf16.mxu0 0
        %1473 = vmatpush1.bf16.xpose.msra.mxu0 0
        %1474 = vmatprep.subr.bf16.mxu0 0
        %1475 = vmatpush1.bf16.xpose.msra.mxu0 0
        %1476 = vmatprep.subr.bf16.mxu0 0
        %1477 = vmatpush1.bf16.xpose.msra.mxu0 0
        %1478 = vmatprep.subr.bf16.mxu0 0
        %1479 = vmatpush1.bf16.xpose.msra.mxu0 0
        %1480 = vmatprep.subr.bf16.mxu0 0
        %1481 = vmatpush1.bf16.xpose.msra.mxu0 0
        %1482 = vmatprep.subr.bf16.mxu0 0
        %1483 = vmatpush1.bf16.xpose.msra.mxu0 0
        %1484 = vmatprep.subr.bf16.mxu0 0
        %1485 = vmatpush1.bf16.xpose.msra.mxu0 0
        %1486 = vmatprep.subr.bf16.mxu0 0
        %1487 = vmatpush1.bf16.xpose.msra.mxu0 0
        %1488 = vmatprep.subr.bf16.mxu0 0
        %1489 = vmatpush1.bf16.xpose.msra.mxu0 0
        %1490 = vmatprep.subr.bf16.mxu0 0
        %1491 = vmatpush1.bf16.xpose.msra.mxu0 0
        %1492 = vmatprep.mubr.bf16.mxu0 %v1419
        %1493 = vmatmul.mubr.bf16.gmra.mrb[0].mxu0 %v1418
        %v1494 = vpop.f32.mrb[0].mxu0
        %v1495 = vadd.f32 0.0, %v1494
        %v1496 = vpop.f32.mrb[0].mxu0
        %v1497 = vpop.f32.mrb[0].mxu0
        %v1498 = vpop.f32.mrb[0].mxu0
        %1499 = vdwg.mxu0
        %v1500 = vpack.c.bf16 %v1495, %v1495
        %v1501 = vmul.f32 %v1275, %v1455
        %v1503 = vsel %vm543, %v1500, 0
        %v1505 = vsel %vm547, %v1276, 0
        %1507 = vmatprep.subr.bf16.mxu0 0
        %1508 = vmatpush1.bf16.msra.mxu0 %v1505
        %1509 = vmatprep.subr.bf16.mxu0 0
        %1510 = vmatpush1.bf16.msra.mxu0 0
        %1511 = vmatprep.subr.bf16.mxu0 0
        %1512 = vmatpush1.bf16.msra.mxu0 0
        %1513 = vmatprep.subr.bf16.mxu0 0
        %1514 = vmatpush1.bf16.msra.mxu0 0
        %1515 = vmatprep.subr.bf16.mxu0 0
        %1516 = vmatpush1.bf16.msra.mxu0 0
        %1517 = vmatprep.subr.bf16.mxu0 0
        %1518 = vmatpush1.bf16.msra.mxu0 0
        %1519 = vmatprep.subr.bf16.mxu0 0
        %1520 = vmatpush1.bf16.msra.mxu0 0
        %1521 = vmatprep.subr.bf16.mxu0 0
        %1522 = vmatpush1.bf16.msra.mxu0 0
        %1523 = vmatprep.subr.bf16.mxu0 0
        %1524 = vmatpush1.bf16.msra.mxu0 0
        %1525 = vmatprep.subr.bf16.mxu0 0
        %1526 = vmatpush1.bf16.msra.mxu0 0
        %1527 = vmatprep.subr.bf16.mxu0 0
        %1528 = vmatpush1.bf16.msra.mxu0 0
        %1529 = vmatprep.subr.bf16.mxu0 0
        %1530 = vmatpush1.bf16.msra.mxu0 0
        %1531 = vmatprep.subr.bf16.mxu0 0
        %1532 = vmatpush1.bf16.msra.mxu0 0
        %1533 = vmatprep.subr.bf16.mxu0 0
        %1534 = vmatpush1.bf16.msra.mxu0 0
        %1535 = vmatprep.subr.bf16.mxu0 0
        %1536 = vmatpush1.bf16.msra.mxu0 0
        %1537 = vmatprep.subr.bf16.mxu0 0
        %1538 = vmatpush1.bf16.msra.mxu0 0
        %1539 = vmatprep.mubr.bf16.mxu0 0
        %1540 = vmatmul.mubr.bf16.gmra.mrb[0].mxu0 %v1503
        %v1541 = vpop.f32.mrb[0].mxu0
        %v1542 = vadd.f32 1e-06, %v1541
        %v1543 = vpop.f32.mrb[0].mxu0
        %v1544 = vpop.f32.mrb[0].mxu0
        %v1545 = vpop.f32.mrb[0].mxu0
        %1546 = vdwg.mxu0
        %v1547 = vrcp.pop %v1542
        %v1548 = vmul.f32 %v1501, %v1547
        %v1549 = vpack.c.bf16 %v1548, %v1548
        %v1551 = vsel %vm347, %v1549, 0
        %1553 = vmatprep.subr.bf16.mxu0 %v416
        %1554 = vmatpush1.bf16.msra.mxu0 %v415
        %1555 = vmatprep.subr.bf16.mxu0 %v418
        %1556 = vmatpush1.bf16.msra.mxu0 %v417
        %1557 = vmatprep.subr.bf16.mxu0 0
        %1558 = vmatpush1.bf16.msra.mxu0 0
        %1559 = vmatprep.subr.bf16.mxu0 0
        %1560 = vmatpush1.bf16.msra.mxu0 0
        %1561 = vmatprep.subr.bf16.mxu0 0
        %1562 = vmatpush1.bf16.msra.mxu0 0
        %1563 = vmatprep.subr.bf16.mxu0 0
        %1564 = vmatpush1.bf16.msra.mxu0 0
        %1565 = vmatprep.subr.bf16.mxu0 0
        %1566 = vmatpush1.bf16.msra.mxu0 0
        %1567 = vmatprep.subr.bf16.mxu0 0
        %1568 = vmatpush1.bf16.msra.mxu0 0
        %1569 = vmatprep.subr.bf16.mxu0 0
        %1570 = vmatpush1.bf16.msra.mxu0 0
        %1571 = vmatprep.subr.bf16.mxu0 0
        %1572 = vmatpush1.bf16.msra.mxu0 0
        %1573 = vmatprep.subr.bf16.mxu0 0
        %1574 = vmatpush1.bf16.msra.mxu0 0
        %1575 = vmatprep.subr.bf16.mxu0 0
        %1576 = vmatpush1.bf16.msra.mxu0 0
        %1577 = vmatprep.subr.bf16.mxu0 0
        %1578 = vmatpush1.bf16.msra.mxu0 0
        %1579 = vmatprep.subr.bf16.mxu0 0
        %1580 = vmatpush1.bf16.msra.mxu0 0
        %1581 = vmatprep.subr.bf16.mxu0 0
        %1582 = vmatpush1.bf16.msra.mxu0 0
        %1583 = vmatprep.subr.bf16.mxu0 0
        %1584 = vmatpush1.bf16.msra.mxu0 0
        %1585 = vmatprep.mubr.bf16.mxu0 0
        %1586 = vmatmul.mubr.bf16.gmra.mrb[0].mxu0 %v1551
        %v1587 = vpop.f32.mrb[0].mxu0
        %v1588 = vadd.f32 0.0, %v1587
        %v1589 = vpop.f32.mrb[0].mxu0
        %v1590 = vadd.f32 0.0, %v1589
        %v1591 = vpop.f32.mrb[0].mxu0
        %v1592 = vpop.f32.mrb[0].mxu0
        %1593 = vdwg.mxu0
        %1594 = vmatprep.subr.bf16.mxu0 0
        %1595 = vmatpush1.bf16.xpose.msra.mxu0 %v1551
        %1596 = vmatprep.subr.bf16.mxu0 0
        %1597 = vmatpush1.bf16.xpose.msra.mxu0 0
        %1598 = vmatprep.subr.bf16.mxu0 0
        %1599 = vmatpush1.bf16.xpose.msra.mxu0 0
        %1600 = vmatprep.subr.bf16.mxu0 0
        %1601 = vmatpush1.bf16.xpose.msra.mxu0 0
        %1602 = vmatprep.subr.bf16.mxu0 0
        %1603 = vmatpush1.bf16.xpose.msra.mxu0 0
        %1604 = vmatprep.subr.bf16.mxu0 0
        %1605 = vmatpush1.bf16.xpose.msra.mxu0 0
        %1606 = vmatprep.subr.bf16.mxu0 0
        %1607 = vmatpush1.bf16.xpose.msra.mxu0 0
        %1608 = vmatprep.subr.bf16.mxu0 0
        %1609 = vmatpush1.bf16.xpose.msra.mxu0 0
        %1610 = vmatprep.subr.bf16.mxu0 0
        %1611 = vmatpush1.bf16.xpose.msra.mxu0 0
        %1612 = vmatprep.subr.bf16.mxu0 0
        %1613 = vmatpush1.bf16.xpose.msra.mxu0 0
        %1614 = vmatprep.subr.bf16.mxu0 0
        %1615 = vmatpush1.bf16.xpose.msra.mxu0 0
        %1616 = vmatprep.subr.bf16.mxu0 0
        %1617 = vmatpush1.bf16.xpose.msra.mxu0 0
        %1618 = vmatprep.subr.bf16.mxu0 0
        %1619 = vmatpush1.bf16.xpose.msra.mxu0 0
        %1620 = vmatprep.subr.bf16.mxu0 0
        %1621 = vmatpush1.bf16.xpose.msra.mxu0 0
        %1622 = vmatprep.subr.bf16.mxu0 0
        %1623 = vmatpush1.bf16.xpose.msra.mxu0 0
        %1624 = vmatprep.subr.bf16.mxu0 0
        %1625 = vmatpush1.bf16.xpose.msra.mxu0 0
        %1626 = vmatprep.mubr.bf16.mxu0 0
        %1627 = vmatmul.mubr.bf16.gmra.mrb[0].mxu0 %v1551
        %v1628 = vpop.f32.mrb[0].mxu0
        %v1629 = vadd.f32 0.0, %v1628
        %v1630 = vpop.f32.mrb[0].mxu0
        %v1631 = vpop.f32.mrb[0].mxu0
        %v1632 = vpop.f32.mrb[0].mxu0
        %1633 = vdwg.mxu0
        %v1634 = vpack.c.bf16 %v1629, %v1629
        %v1635 = vmul.f32 %v1416, %v1588
        %v1636 = vmul.f32 %v1417, %v1590
        %v1638 = vsel %vm543, %v1634, 0
        %v1641 = vsel %vm547, %v1418, 0
        %v1644 = vsel %vm547, %v1419, 0
        %1646 = vmatprep.subr.bf16.mxu0 %v1644
        %1647 = vmatpush1.bf16.msra.mxu0 %v1641
        %1648 = vmatprep.subr.bf16.mxu0 0
        %1649 = vmatpush1.bf16.msra.mxu0 0
        %1650 = vmatprep.subr.bf16.mxu0 0
        %1651 = vmatpush1.bf16.msra.mxu0 0
        %1652 = vmatprep.subr.bf16.mxu0 0
        %1653 = vmatpush1.bf16.msra.mxu0 0
        %1654 = vmatprep.subr.bf16.mxu0 0
        %1655 = vmatpush1.bf16.msra.mxu0 0
        %1656 = vmatprep.subr.bf16.mxu0 0
        %1657 = vmatpush1.bf16.msra.mxu0 0
        %1658 = vmatprep.subr.bf16.mxu0 0
        %1659 = vmatpush1.bf16.msra.mxu0 0
        %1660 = vmatprep.subr.bf16.mxu0 0
        %1661 = vmatpush1.bf16.msra.mxu0 0
        %1662 = vmatprep.subr.bf16.mxu0 0
        %1663 = vmatpush1.bf16.msra.mxu0 0
        %1664 = vmatprep.subr.bf16.mxu0 0
        %1665 = vmatpush1.bf16.msra.mxu0 0
        %1666 = vmatprep.subr.bf16.mxu0 0
        %1667 = vmatpush1.bf16.msra.mxu0 0
        %1668 = vmatprep.subr.bf16.mxu0 0
        %1669 = vmatpush1.bf16.msra.mxu0 0
        %1670 = vmatprep.subr.bf16.mxu0 0
        %1671 = vmatpush1.bf16.msra.mxu0 0
        %1672 = vmatprep.subr.bf16.mxu0 0
        %1673 = vmatpush1.bf16.msra.mxu0 0
        %1674 = vmatprep.subr.bf16.mxu0 0
        %1675 = vmatpush1.bf16.msra.mxu0 0
        %1676 = vmatprep.subr.bf16.mxu0 0
        %1677 = vmatpush1.bf16.msra.mxu0 0
        %1678 = vmatprep.mubr.bf16.mxu0 0
        %1679 = vmatmul.mubr.bf16.gmra.mrb[0].mxu0 %v1638
        %v1680 = vpop.f32.mrb[0].mxu0
        %v1681 = vadd.f32 1e-06, %v1680
        %v1682 = vpop.f32.mrb[0].mxu0
        %v1683 = vadd.f32 1e-06, %v1682
        %v1684 = vpop.f32.mrb[0].mxu0
        %v1685 = vpop.f32.mrb[0].mxu0
        %1686 = vdwg.mxu0
        %v1687 = vrcp.pop %v1681
        %v1688 = vrcp.pop %v1683
        %v1689 = vmul.f32 %v1635, %v1687
        %v1690 = vmul.f32 %v1636, %v1688
        %v1691 = vpack.c.bf16 %v1689, %v1689
        %v1692 = vpack.c.bf16 %v1690, %v1690
        %1693 = vmatprep.subr.bf16.mxu0 %v416
        %1694 = vmatpush1.bf16.xpose.msra.mxu0 %v415
        %1695 = vmatprep.subr.bf16.mxu0 %v418
        %1696 = vmatpush1.bf16.xpose.msra.mxu0 %v417
        %1697 = vmatprep.subr.bf16.mxu0 0
        %1698 = vmatpush1.bf16.xpose.msra.mxu0 0
        %1699 = vmatprep.subr.bf16.mxu0 0
        %1700 = vmatpush1.bf16.xpose.msra.mxu0 0
        %1701 = vmatprep.subr.bf16.mxu0 0
        %1702 = vmatpush1.bf16.xpose.msra.mxu0 0
        %1703 = vmatprep.subr.bf16.mxu0 0
        %1704 = vmatpush1.bf16.xpose.msra.mxu0 0
        %1705 = vmatprep.subr.bf16.mxu0 0
        %1706 = vmatpush1.bf16.xpose.msra.mxu0 0
        %1707 = vmatprep.subr.bf16.mxu0 0
        %1708 = vmatpush1.bf16.xpose.msra.mxu0 0
        %1709 = vmatprep.subr.bf16.mxu0 0
        %1710 = vmatpush1.bf16.xpose.msra.mxu0 0
        %1711 = vmatprep.subr.bf16.mxu0 0
        %1712 = vmatpush1.bf16.xpose.msra.mxu0 0
        %1713 = vmatprep.subr.bf16.mxu0 0
        %1714 = vmatpush1.bf16.xpose.msra.mxu0 0
        %1715 = vmatprep.subr.bf16.mxu0 0
        %1716 = vmatpush1.bf16.xpose.msra.mxu0 0
        %1717 = vmatprep.subr.bf16.mxu0 0
        %1718 = vmatpush1.bf16.xpose.msra.mxu0 0
        %1719 = vmatprep.subr.bf16.mxu0 0
        %1720 = vmatpush1.bf16.xpose.msra.mxu0 0
        %1721 = vmatprep.subr.bf16.mxu0 0
        %1722 = vmatpush1.bf16.xpose.msra.mxu0 0
        %1723 = vmatprep.subr.bf16.mxu0 0
        %1724 = vmatpush1.bf16.xpose.msra.mxu0 0
        %1725 = vmatprep.mubr.bf16.mxu0 %v1692
        %1726 = vmatmul.mubr.bf16.gmra.mrb[0].mxu0 %v1691
        %v1727 = vpop.f32.mrb[0].mxu0
        %v1728 = vadd.f32 0.0, %v1727
        %v1729 = vpop.f32.mrb[0].mxu0
        %v1730 = vpop.f32.mrb[0].mxu0
        %v1731 = vpop.f32.mrb[0].mxu0
        %1732 = vdwg.mxu0
        %1733 = vmatprep.subr.bf16.mxu0 %v1692
        %1734 = vmatpush1.bf16.xpose.msra.mxu0 %v1691
        %1735 = vmatprep.subr.bf16.mxu0 0
        %1736 = vmatpush1.bf16.xpose.msra.mxu0 0
        %1737 = vmatprep.subr.bf16.mxu0 0
        %1738 = vmatpush1.bf16.xpose.msra.mxu0 0
        %1739 = vmatprep.subr.bf16.mxu0 0
        %1740 = vmatpush1.bf16.xpose.msra.mxu0 0
        %1741 = vmatprep.subr.bf16.mxu0 0
        %1742 = vmatpush1.bf16.xpose.msra.mxu0 0
        %1743 = vmatprep.subr.bf16.mxu0 0
        %1744 = vmatpush1.bf16.xpose.msra.mxu0 0
        %1745 = vmatprep.subr.bf16.mxu0 0
        %1746 = vmatpush1.bf16.xpose.msra.mxu0 0
        %1747 = vmatprep.subr.bf16.mxu0 0
        %1748 = vmatpush1.bf16.xpose.msra.mxu0 0
        %1749 = vmatprep.subr.bf16.mxu0 0
        %1750 = vmatpush1.bf16.xpose.msra.mxu0 0
        %1751 = vmatprep.subr.bf16.mxu0 0
        %1752 = vmatpush1.bf16.xpose.msra.mxu0 0
        %1753 = vmatprep.subr.bf16.mxu0 0
        %1754 = vmatpush1.bf16.xpose.msra.mxu0 0
        %1755 = vmatprep.subr.bf16.mxu0 0
        %1756 = vmatpush1.bf16.xpose.msra.mxu0 0
        %1757 = vmatprep.subr.bf16.mxu0 0
        %1758 = vmatpush1.bf16.xpose.msra.mxu0 0
        %1759 = vmatprep.subr.bf16.mxu0 0
        %1760 = vmatpush1.bf16.xpose.msra.mxu0 0
        %1761 = vmatprep.subr.bf16.mxu0 0
        %1762 = vmatpush1.bf16.xpose.msra.mxu0 0
        %1763 = vmatprep.subr.bf16.mxu0 0
        %1764 = vmatpush1.bf16.xpose.msra.mxu0 0
        %1765 = vmatprep.mubr.bf16.mxu0 %v1692
        %1766 = vmatmul.mubr.bf16.gmra.mrb[0].mxu0 %v1691
        %v1767 = vpop.f32.mrb[0].mxu0
        %v1768 = vadd.f32 0.0, %v1767
        %v1769 = vpop.f32.mrb[0].mxu0
        %v1770 = vpop.f32.mrb[0].mxu0
        %v1771 = vpop.f32.mrb[0].mxu0
        %1772 = vdwg.mxu0
        %v1773 = vpack.c.bf16 %v1768, %v1768
        %v1774 = vmul.f32 %v1548, %v1728
        %v1776 = vsel %vm543, %v1773, 0
        %v1778 = vsel %vm547, %v1549, 0
        %1780 = vmatprep.subr.bf16.mxu0 0
        %1781 = vmatpush1.bf16.msra.mxu0 %v1778
        %1782 = vmatprep.subr.bf16.mxu0 0
        %1783 = vmatpush1.bf16.msra.mxu0 0
        %1784 = vmatprep.subr.bf16.mxu0 0
        %1785 = vmatpush1.bf16.msra.mxu0 0
        %1786 = vmatprep.subr.bf16.mxu0 0
        %1787 = vmatpush1.bf16.msra.mxu0 0
        %1788 = vmatprep.subr.bf16.mxu0 0
        %1789 = vmatpush1.bf16.msra.mxu0 0
        %1790 = vmatprep.subr.bf16.mxu0 0
        %1791 = vmatpush1.bf16.msra.mxu0 0
        %1792 = vmatprep.subr.bf16.mxu0 0
        %1793 = vmatpush1.bf16.msra.mxu0 0
        %1794 = vmatprep.subr.bf16.mxu0 0
        %1795 = vmatpush1.bf16.msra.mxu0 0
        %1796 = vmatprep.subr.bf16.mxu0 0
        %1797 = vmatpush1.bf16.msra.mxu0 0
        %1798 = vmatprep.subr.bf16.mxu0 0
        %1799 = vmatpush1.bf16.msra.mxu0 0
        %1800 = vmatprep.subr.bf16.mxu0 0
        %1801 = vmatpush1.bf16.msra.mxu0 0
        %1802 = vmatprep.subr.bf16.mxu0 0
        %1803 = vmatpush1.bf16.msra.mxu0 0
        %1804 = vmatprep.subr.bf16.mxu0 0
        %1805 = vmatpush1.bf16.msra.mxu0 0
        %1806 = vmatprep.subr.bf16.mxu0 0
        %1807 = vmatpush1.bf16.msra.mxu0 0
        %1808 = vmatprep.subr.bf16.mxu0 0
        %1809 = vmatpush1.bf16.msra.mxu0 0
        %1810 = vmatprep.subr.bf16.mxu0 0
        %1811 = vmatpush1.bf16.msra.mxu0 0
        %1812 = vmatprep.mubr.bf16.mxu0 0
        %1813 = vmatmul.mubr.bf16.gmra.mrb[0].mxu0 %v1776
        %v1814 = vpop.f32.mrb[0].mxu0
        %v1815 = vadd.f32 1e-06, %v1814
        %v1816 = vpop.f32.mrb[0].mxu0
        %v1817 = vpop.f32.mrb[0].mxu0
        %v1818 = vpop.f32.mrb[0].mxu0
        %1819 = vdwg.mxu0
        %v1820 = vrcp.pop %v1815
        %v1821 = vmul.f32 %v1774, %v1820
        %v1822 = vpack.c.bf16 %v1821, %v1821
        %v1824 = vsel %vm347, %v1822, 0
        %1826 = vmatprep.subr.bf16.mxu0 %v416
        %1827 = vmatpush1.bf16.msra.mxu0 %v415
        %1828 = vmatprep.subr.bf16.mxu0 %v418
        %1829 = vmatpush1.bf16.msra.mxu0 %v417
        %1830 = vmatprep.subr.bf16.mxu0 0
        %1831 = vmatpush1.bf16.msra.mxu0 0
        %1832 = vmatprep.subr.bf16.mxu0 0
        %1833 = vmatpush1.bf16.msra.mxu0 0
        %1834 = vmatprep.subr.bf16.mxu0 0
        %1835 = vmatpush1.bf16.msra.mxu0 0
        %1836 = vmatprep.subr.bf16.mxu0 0
        %1837 = vmatpush1.bf16.msra.mxu0 0
        %1838 = vmatprep.subr.bf16.mxu0 0
        %1839 = vmatpush1.bf16.msra.mxu0 0
        %1840 = vmatprep.subr.bf16.mxu0 0
        %1841 = vmatpush1.bf16.msra.mxu0 0
        %1842 = vmatprep.subr.bf16.mxu0 0
        %1843 = vmatpush1.bf16.msra.mxu0 0
        %1844 = vmatprep.subr.bf16.mxu0 0
        %1845 = vmatpush1.bf16.msra.mxu0 0
        %1846 = vmatprep.subr.bf16.mxu0 0
        %1847 = vmatpush1.bf16.msra.mxu0 0
        %1848 = vmatprep.subr.bf16.mxu0 0
        %1849 = vmatpush1.bf16.msra.mxu0 0
        %1850 = vmatprep.subr.bf16.mxu0 0
        %1851 = vmatpush1.bf16.msra.mxu0 0
        %1852 = vmatprep.subr.bf16.mxu0 0
        %1853 = vmatpush1.bf16.msra.mxu0 0
        %1854 = vmatprep.subr.bf16.mxu0 0
        %1855 = vmatpush1.bf16.msra.mxu0 0
        %1856 = vmatprep.subr.bf16.mxu0 0
        %1857 = vmatpush1.bf16.msra.mxu0 0
        %1858 = vmatprep.mubr.bf16.mxu0 0
        %1859 = vmatmul.mubr.bf16.gmra.mrb[0].mxu0 %v1824
        %v1860 = vpop.f32.mrb[0].mxu0
        %v1861 = vadd.f32 0.0, %v1860
        %v1862 = vpop.f32.mrb[0].mxu0
        %v1863 = vadd.f32 0.0, %v1862
        %v1864 = vpop.f32.mrb[0].mxu0
        %v1865 = vpop.f32.mrb[0].mxu0
        %1866 = vdwg.mxu0
        %1867 = vmatprep.subr.bf16.mxu0 0
        %1868 = vmatpush1.bf16.xpose.msra.mxu0 %v1824
        %1869 = vmatprep.subr.bf16.mxu0 0
        %1870 = vmatpush1.bf16.xpose.msra.mxu0 0
        %1871 = vmatprep.subr.bf16.mxu0 0
        %1872 = vmatpush1.bf16.xpose.msra.mxu0 0
        %1873 = vmatprep.subr.bf16.mxu0 0
        %1874 = vmatpush1.bf16.xpose.msra.mxu0 0
        %1875 = vmatprep.subr.bf16.mxu0 0
        %1876 = vmatpush1.bf16.xpose.msra.mxu0 0
        %1877 = vmatprep.subr.bf16.mxu0 0
        %1878 = vmatpush1.bf16.xpose.msra.mxu0 0
        %1879 = vmatprep.subr.bf16.mxu0 0
        %1880 = vmatpush1.bf16.xpose.msra.mxu0 0
        %1881 = vmatprep.subr.bf16.mxu0 0
        %1882 = vmatpush1.bf16.xpose.msra.mxu0 0
        %1883 = vmatprep.subr.bf16.mxu0 0
        %1884 = vmatpush1.bf16.xpose.msra.mxu0 0
        %1885 = vmatprep.subr.bf16.mxu0 0
        %1886 = vmatpush1.bf16.xpose.msra.mxu0 0
        %1887 = vmatprep.subr.bf16.mxu0 0
        %1888 = vmatpush1.bf16.xpose.msra.mxu0 0
        %1889 = vmatprep.subr.bf16.mxu0 0
        %1890 = vmatpush1.bf16.xpose.msra.mxu0 0
        %1891 = vmatprep.subr.bf16.mxu0 0
        %1892 = vmatpush1.bf16.xpose.msra.mxu0 0
        %1893 = vmatprep.subr.bf16.mxu0 0
        %1894 = vmatpush1.bf16.xpose.msra.mxu0 0
        %1895 = vmatprep.subr.bf16.mxu0 0
        %1896 = vmatpush1.bf16.xpose.msra.mxu0 0
        %1897 = vmatprep.subr.bf16.mxu0 0
        %1898 = vmatpush1.bf16.xpose.msra.mxu0 0
        %1899 = vmatprep.mubr.bf16.mxu0 0
        %1900 = vmatmul.mubr.bf16.gmra.mrb[0].mxu0 %v1824
        %v1901 = vpop.f32.mrb[0].mxu0
        %v1902 = vadd.f32 0.0, %v1901
        %v1903 = vpop.f32.mrb[0].mxu0
        %v1904 = vpop.f32.mrb[0].mxu0
        %v1905 = vpop.f32.mrb[0].mxu0
        %1906 = vdwg.mxu0
        %v1907 = vpack.c.bf16 %v1902, %v1902
        %v1908 = vmul.f32 %v1689, %v1861
        %v1909 = vmul.f32 %v1690, %v1863
        %v1911 = vsel %vm543, %v1907, 0
        %v1914 = vsel %vm547, %v1691, 0
        %v1917 = vsel %vm547, %v1692, 0
        %1919 = vmatprep.subr.bf16.mxu0 %v1917
        %1920 = vmatpush1.bf16.msra.mxu0 %v1914
        %1921 = vmatprep.subr.bf16.mxu0 0
        %1922 = vmatpush1.bf16.msra.mxu0 0
        %1923 = vmatprep.subr.bf16.mxu0 0
        %1924 = vmatpush1.bf16.msra.mxu0 0
        %1925 = vmatprep.subr.bf16.mxu0 0
        %1926 = vmatpush1.bf16.msra.mxu0 0
        %1927 = vmatprep.subr.bf16.mxu0 0
        %1928 = vmatpush1.bf16.msra.mxu0 0
        %1929 = vmatprep.subr.bf16.mxu0 0
        %1930 = vmatpush1.bf16.msra.mxu0 0
        %1931 = vmatprep.subr.bf16.mxu0 0
        %1932 = vmatpush1.bf16.msra.mxu0 0
        %1933 = vmatprep.subr.bf16.mxu0 0
        %1934 = vmatpush1.bf16.msra.mxu0 0
        %1935 = vmatprep.subr.bf16.mxu0 0
        %1936 = vmatpush1.bf16.msra.mxu0 0
        %1937 = vmatprep.subr.bf16.mxu0 0
        %1938 = vmatpush1.bf16.msra.mxu0 0
        %1939 = vmatprep.subr.bf16.mxu0 0
        %1940 = vmatpush1.bf16.msra.mxu0 0
        %1941 = vmatprep.subr.bf16.mxu0 0
        %1942 = vmatpush1.bf16.msra.mxu0 0
        %1943 = vmatprep.subr.bf16.mxu0 0
        %1944 = vmatpush1.bf16.msra.mxu0 0
        %1945 = vmatprep.subr.bf16.mxu0 0
        %1946 = vmatpush1.bf16.msra.mxu0 0
        %1947 = vmatprep.subr.bf16.mxu0 0
        %1948 = vmatpush1.bf16.msra.mxu0 0
        %1949 = vmatprep.subr.bf16.mxu0 0
        %1950 = vmatpush1.bf16.msra.mxu0 0
        %1951 = vmatprep.mubr.bf16.mxu0 0
        %1952 = vmatmul.mubr.bf16.gmra.mrb[0].mxu0 %v1911
        %v1953 = vpop.f32.mrb[0].mxu0
        %v1954 = vadd.f32 1e-06, %v1953
        %v1955 = vpop.f32.mrb[0].mxu0
        %v1956 = vadd.f32 1e-06, %v1955
        %v1957 = vpop.f32.mrb[0].mxu0
        %v1958 = vpop.f32.mrb[0].mxu0
        %1959 = vdwg.mxu0
        %v1960 = vrcp.pop %v1954
        %v1961 = vrcp.pop %v1956
        %v1962 = vmul.f32 %v1908, %v1960
        %v1963 = vmul.f32 %v1909, %v1961
        %v1964 = vpack.c.bf16 %v1962, %v1962
        %v1965 = vpack.c.bf16 %v1963, %v1963
        %1966 = vmatprep.subr.bf16.mxu0 %v416
        %1967 = vmatpush1.bf16.xpose.msra.mxu0 %v415
        %1968 = vmatprep.subr.bf16.mxu0 %v418
        %1969 = vmatpush1.bf16.xpose.msra.mxu0 %v417
        %1970 = vmatprep.subr.bf16.mxu0 0
        %1971 = vmatpush1.bf16.xpose.msra.mxu0 0
        %1972 = vmatprep.subr.bf16.mxu0 0
        %1973 = vmatpush1.bf16.xpose.msra.mxu0 0
        %1974 = vmatprep.subr.bf16.mxu0 0
        %1975 = vmatpush1.bf16.xpose.msra.mxu0 0
        %1976 = vmatprep.subr.bf16.mxu0 0
        %1977 = vmatpush1.bf16.xpose.msra.mxu0 0
        %1978 = vmatprep.subr.bf16.mxu0 0
        %1979 = vmatpush1.bf16.xpose.msra.mxu0 0
        %1980 = vmatprep.subr.bf16.mxu0 0
        %1981 = vmatpush1.bf16.xpose.msra.mxu0 0
        %1982 = vmatprep.subr.bf16.mxu0 0
        %1983 = vmatpush1.bf16.xpose.msra.mxu0 0
        %1984 = vmatprep.subr.bf16.mxu0 0
        %1985 = vmatpush1.bf16.xpose.msra.mxu0 0
        %1986 = vmatprep.subr.bf16.mxu0 0
        %1987 = vmatpush1.bf16.xpose.msra.mxu0 0
        %1988 = vmatprep.subr.bf16.mxu0 0
        %1989 = vmatpush1.bf16.xpose.msra.mxu0 0
        %1990 = vmatprep.subr.bf16.mxu0 0
        %1991 = vmatpush1.bf16.xpose.msra.mxu0 0
        %1992 = vmatprep.subr.bf16.mxu0 0
        %1993 = vmatpush1.bf16.xpose.msra.mxu0 0
        %1994 = vmatprep.subr.bf16.mxu0 0
        %1995 = vmatpush1.bf16.xpose.msra.mxu0 0
        %1996 = vmatprep.subr.bf16.mxu0 0
        %1997 = vmatpush1.bf16.xpose.msra.mxu0 0
        %1998 = vmatprep.mubr.bf16.mxu0 %v1965
        %1999 = vmatmul.mubr.bf16.gmra.mrb[0].mxu0 %v1964
        %v2000 = vpop.f32.mrb[0].mxu0
        %v2001 = vadd.f32 0.0, %v2000
        %v2002 = vpop.f32.mrb[0].mxu0
        %v2003 = vpop.f32.mrb[0].mxu0
        %v2004 = vpop.f32.mrb[0].mxu0
        %2005 = vdwg.mxu0
        %2006 = vmatprep.subr.bf16.mxu0 %v1965
        %2007 = vmatpush1.bf16.xpose.msra.mxu0 %v1964
        %2008 = vmatprep.subr.bf16.mxu0 0
        %2009 = vmatpush1.bf16.xpose.msra.mxu0 0
        %2010 = vmatprep.subr.bf16.mxu0 0
        %2011 = vmatpush1.bf16.xpose.msra.mxu0 0
        %2012 = vmatprep.subr.bf16.mxu0 0
        %2013 = vmatpush1.bf16.xpose.msra.mxu0 0
        %2014 = vmatprep.subr.bf16.mxu0 0
        %2015 = vmatpush1.bf16.xpose.msra.mxu0 0
        %2016 = vmatprep.subr.bf16.mxu0 0
        %2017 = vmatpush1.bf16.xpose.msra.mxu0 0
        %2018 = vmatprep.subr.bf16.mxu0 0
        %2019 = vmatpush1.bf16.xpose.msra.mxu0 0
        %2020 = vmatprep.subr.bf16.mxu0 0
        %2021 = vmatpush1.bf16.xpose.msra.mxu0 0
        %2022 = vmatprep.subr.bf16.mxu0 0
        %2023 = vmatpush1.bf16.xpose.msra.mxu0 0
        %2024 = vmatprep.subr.bf16.mxu0 0
        %2025 = vmatpush1.bf16.xpose.msra.mxu0 0
        %2026 = vmatprep.subr.bf16.mxu0 0
        %2027 = vmatpush1.bf16.xpose.msra.mxu0 0
        %2028 = vmatprep.subr.bf16.mxu0 0
        %2029 = vmatpush1.bf16.xpose.msra.mxu0 0
        %2030 = vmatprep.subr.bf16.mxu0 0
        %2031 = vmatpush1.bf16.xpose.msra.mxu0 0
        %2032 = vmatprep.subr.bf16.mxu0 0
        %2033 = vmatpush1.bf16.xpose.msra.mxu0 0
        %2034 = vmatprep.subr.bf16.mxu0 0
        %2035 = vmatpush1.bf16.xpose.msra.mxu0 0
        %2036 = vmatprep.subr.bf16.mxu0 0
        %2037 = vmatpush1.bf16.xpose.msra.mxu0 0
        %2038 = vmatprep.mubr.bf16.mxu0 %v1965
        %2039 = vmatmul.mubr.bf16.gmra.mrb[0].mxu0 %v1964
        %v2040 = vpop.f32.mrb[0].mxu0
        %v2041 = vadd.f32 0.0, %v2040
        %v2042 = vpop.f32.mrb[0].mxu0
        %v2043 = vpop.f32.mrb[0].mxu0
        %v2044 = vpop.f32.mrb[0].mxu0
        %2045 = vdwg.mxu0
        %v2046 = vpack.c.bf16 %v2041, %v2041
        %v2047 = vmul.f32 %v1821, %v2001
        %v2049 = vsel %vm543, %v2046, 0
        %v2051 = vsel %vm547, %v1822, 0
        %2053 = vmatprep.subr.bf16.mxu0 0
        %2054 = vmatpush1.bf16.msra.mxu0 %v2051
        %2055 = vmatprep.subr.bf16.mxu0 0
        %2056 = vmatpush1.bf16.msra.mxu0 0
        %2057 = vmatprep.subr.bf16.mxu0 0
        %2058 = vmatpush1.bf16.msra.mxu0 0
        %2059 = vmatprep.subr.bf16.mxu0 0
        %2060 = vmatpush1.bf16.msra.mxu0 0
        %2061 = vmatprep.subr.bf16.mxu0 0
        %2062 = vmatpush1.bf16.msra.mxu0 0
        %2063 = vmatprep.subr.bf16.mxu0 0
        %2064 = vmatpush1.bf16.msra.mxu0 0
        %2065 = vmatprep.subr.bf16.mxu0 0
        %2066 = vmatpush1.bf16.msra.mxu0 0
        %2067 = vmatprep.subr.bf16.mxu0 0
        %2068 = vmatpush1.bf16.msra.mxu0 0
        %2069 = vmatprep.subr.bf16.mxu0 0
        %2070 = vmatpush1.bf16.msra.mxu0 0
        %2071 = vmatprep.subr.bf16.mxu0 0
        %2072 = vmatpush1.bf16.msra.mxu0 0
        %2073 = vmatprep.subr.bf16.mxu0 0
        %2074 = vmatpush1.bf16.msra.mxu0 0
        %2075 = vmatprep.subr.bf16.mxu0 0
        %2076 = vmatpush1.bf16.msra.mxu0 0
        %2077 = vmatprep.subr.bf16.mxu0 0
        %2078 = vmatpush1.bf16.msra.mxu0 0
        %2079 = vmatprep.subr.bf16.mxu0 0
        %2080 = vmatpush1.bf16.msra.mxu0 0
        %2081 = vmatprep.subr.bf16.mxu0 0
        %2082 = vmatpush1.bf16.msra.mxu0 0
        %2083 = vmatprep.subr.bf16.mxu0 0
        %2084 = vmatpush1.bf16.msra.mxu0 0
        %2085 = vmatprep.mubr.bf16.mxu0 0
        %2086 = vmatmul.mubr.bf16.gmra.mrb[0].mxu0 %v2049
        %v2087 = vpop.f32.mrb[0].mxu0
        %v2088 = vadd.f32 1e-06, %v2087
        %v2089 = vpop.f32.mrb[0].mxu0
        %v2090 = vpop.f32.mrb[0].mxu0
        %v2091 = vpop.f32.mrb[0].mxu0
        %2092 = vdwg.mxu0
        %v2093 = vrcp.pop %v2088
        %v2094 = vmul.f32 %v2047, %v2093
        %v2095 = vpack.c.bf16 %v2094, %v2094
        %v2097 = vsel %vm347, %v2095, 0
        %2099 = vmatprep.subr.bf16.mxu0 %v416
        %2100 = vmatpush1.bf16.msra.mxu0 %v415
        %2101 = vmatprep.subr.bf16.mxu0 %v418
        %2102 = vmatpush1.bf16.msra.mxu0 %v417
        %2103 = vmatprep.subr.bf16.mxu0 0
        %2104 = vmatpush1.bf16.msra.mxu0 0
        %2105 = vmatprep.subr.bf16.mxu0 0
        %2106 = vmatpush1.bf16.msra.mxu0 0
        %2107 = vmatprep.subr.bf16.mxu0 0
        %2108 = vmatpush1.bf16.msra.mxu0 0
        %2109 = vmatprep.subr.bf16.mxu0 0
        %2110 = vmatpush1.bf16.msra.mxu0 0
        %2111 = vmatprep.subr.bf16.mxu0 0
        %2112 = vmatpush1.bf16.msra.mxu0 0
        %2113 = vmatprep.subr.bf16.mxu0 0
        %2114 = vmatpush1.bf16.msra.mxu0 0
        %2115 = vmatprep.subr.bf16.mxu0 0
        %2116 = vmatpush1.bf16.msra.mxu0 0
        %2117 = vmatprep.subr.bf16.mxu0 0
        %2118 = vmatpush1.bf16.msra.mxu0 0
        %2119 = vmatprep.subr.bf16.mxu0 0
        %2120 = vmatpush1.bf16.msra.mxu0 0
        %2121 = vmatprep.subr.bf16.mxu0 0
        %2122 = vmatpush1.bf16.msra.mxu0 0
        %2123 = vmatprep.subr.bf16.mxu0 0
        %2124 = vmatpush1.bf16.msra.mxu0 0
        %2125 = vmatprep.subr.bf16.mxu0 0
        %2126 = vmatpush1.bf16.msra.mxu0 0
        %2127 = vmatprep.subr.bf16.mxu0 0
        %2128 = vmatpush1.bf16.msra.mxu0 0
        %2129 = vmatprep.subr.bf16.mxu0 0
        %2130 = vmatpush1.bf16.msra.mxu0 0
        %2131 = vmatprep.mubr.bf16.mxu0 0
        %2132 = vmatmul.mubr.bf16.gmra.mrb[0].mxu0 %v2097
        %v2133 = vpop.f32.mrb[0].mxu0
        %v2134 = vadd.f32 0.0, %v2133
        %v2135 = vpop.f32.mrb[0].mxu0
        %v2136 = vadd.f32 0.0, %v2135
        %v2137 = vpop.f32.mrb[0].mxu0
        %v2138 = vpop.f32.mrb[0].mxu0
        %2139 = vdwg.mxu0
        %2140 = vmatprep.subr.bf16.mxu0 0
        %2141 = vmatpush1.bf16.xpose.msra.mxu0 %v2097
        %2142 = vmatprep.subr.bf16.mxu0 0
        %2143 = vmatpush1.bf16.xpose.msra.mxu0 0
        %2144 = vmatprep.subr.bf16.mxu0 0
        %2145 = vmatpush1.bf16.xpose.msra.mxu0 0
        %2146 = vmatprep.subr.bf16.mxu0 0
        %2147 = vmatpush1.bf16.xpose.msra.mxu0 0
        %2148 = vmatprep.subr.bf16.mxu0 0
        %2149 = vmatpush1.bf16.xpose.msra.mxu0 0
        %2150 = vmatprep.subr.bf16.mxu0 0
        %2151 = vmatpush1.bf16.xpose.msra.mxu0 0
        %2152 = vmatprep.subr.bf16.mxu0 0
        %2153 = vmatpush1.bf16.xpose.msra.mxu0 0
        %2154 = vmatprep.subr.bf16.mxu0 0
        %2155 = vmatpush1.bf16.xpose.msra.mxu0 0
        %2156 = vmatprep.subr.bf16.mxu0 0
        %2157 = vmatpush1.bf16.xpose.msra.mxu0 0
        %2158 = vmatprep.subr.bf16.mxu0 0
        %2159 = vmatpush1.bf16.xpose.msra.mxu0 0
        %2160 = vmatprep.subr.bf16.mxu0 0
        %2161 = vmatpush1.bf16.xpose.msra.mxu0 0
        %2162 = vmatprep.subr.bf16.mxu0 0
        %2163 = vmatpush1.bf16.xpose.msra.mxu0 0
        %2164 = vmatprep.subr.bf16.mxu0 0
        %2165 = vmatpush1.bf16.xpose.msra.mxu0 0
        %2166 = vmatprep.subr.bf16.mxu0 0
        %2167 = vmatpush1.bf16.xpose.msra.mxu0 0
        %2168 = vmatprep.subr.bf16.mxu0 0
        %2169 = vmatpush1.bf16.xpose.msra.mxu0 0
        %2170 = vmatprep.subr.bf16.mxu0 0
        %2171 = vmatpush1.bf16.xpose.msra.mxu0 0
        %2172 = vmatprep.mubr.bf16.mxu0 0
        %2173 = vmatmul.mubr.bf16.gmra.mrb[0].mxu0 %v2097
        %v2174 = vpop.f32.mrb[0].mxu0
        %v2175 = vadd.f32 0.0, %v2174
        %v2176 = vpop.f32.mrb[0].mxu0
        %v2177 = vpop.f32.mrb[0].mxu0
        %v2178 = vpop.f32.mrb[0].mxu0
        %2179 = vdwg.mxu0
        %v2180 = vpack.c.bf16 %v2175, %v2175
        %v2181 = vmul.f32 %v1962, %v2134
        %v2182 = vmul.f32 %v1963, %v2136
        %v2184 = vsel %vm543, %v2180, 0
        %v2187 = vsel %vm547, %v1964, 0
        %v2190 = vsel %vm547, %v1965, 0
        %2192 = vmatprep.subr.bf16.mxu0 %v2190
        %2193 = vmatpush1.bf16.msra.mxu0 %v2187
        %2194 = vmatprep.subr.bf16.mxu0 0
        %2195 = vmatpush1.bf16.msra.mxu0 0
        %2196 = vmatprep.subr.bf16.mxu0 0
        %2197 = vmatpush1.bf16.msra.mxu0 0
        %2198 = vmatprep.subr.bf16.mxu0 0
        %2199 = vmatpush1.bf16.msra.mxu0 0
        %2200 = vmatprep.subr.bf16.mxu0 0
        %2201 = vmatpush1.bf16.msra.mxu0 0
        %2202 = vmatprep.subr.bf16.mxu0 0
        %2203 = vmatpush1.bf16.msra.mxu0 0
        %2204 = vmatprep.subr.bf16.mxu0 0
        %2205 = vmatpush1.bf16.msra.mxu0 0
        %2206 = vmatprep.subr.bf16.mxu0 0
        %2207 = vmatpush1.bf16.msra.mxu0 0
        %2208 = vmatprep.subr.bf16.mxu0 0
        %2209 = vmatpush1.bf16.msra.mxu0 0
        %2210 = vmatprep.subr.bf16.mxu0 0
        %2211 = vmatpush1.bf16.msra.mxu0 0
        %2212 = vmatprep.subr.bf16.mxu0 0
        %2213 = vmatpush1.bf16.msra.mxu0 0
        %2214 = vmatprep.subr.bf16.mxu0 0
        %2215 = vmatpush1.bf16.msra.mxu0 0
        %2216 = vmatprep.subr.bf16.mxu0 0
        %2217 = vmatpush1.bf16.msra.mxu0 0
        %2218 = vmatprep.subr.bf16.mxu0 0
        %2219 = vmatpush1.bf16.msra.mxu0 0
        %2220 = vmatprep.subr.bf16.mxu0 0
        %2221 = vmatpush1.bf16.msra.mxu0 0
        %2222 = vmatprep.subr.bf16.mxu0 0
        %2223 = vmatpush1.bf16.msra.mxu0 0
        %2224 = vmatprep.mubr.bf16.mxu0 0
        %2225 = vmatmul.mubr.bf16.gmra.mrb[0].mxu0 %v2184
        %v2226 = vpop.f32.mrb[0].mxu0
        %v2227 = vadd.f32 1e-06, %v2226
        %v2228 = vpop.f32.mrb[0].mxu0
        %v2229 = vadd.f32 1e-06, %v2228
        %v2230 = vpop.f32.mrb[0].mxu0
        %v2231 = vpop.f32.mrb[0].mxu0
        %2232 = vdwg.mxu0
        %v2233 = vrcp.pop %v2227
        %v2234 = vrcp.pop %v2229
        %v2235 = vmul.f32 %v2181, %v2233
        %v2236 = vmul.f32 %v2182, %v2234
        %v2237 = vpack.c.bf16 %v2235, %v2235
        %v2238 = vpack.c.bf16 %v2236, %v2236
        %v2243 = vunpack.c.l.b16 %v304
        %v2244 = vunpack.c.l.b16 %v305
        %v2245 = vunpack.c.l.b16 %v306
        %v2246 = vunpack.c.l.b16 %v307
        %v2247 = vpack.c.b16 %v2244, %v2243
        %v2248 = vpack.c.b16 %v2246, %v2245
        %v2250 = vsel %vm347, %v2247, 0
        %v2253 = vsel %vm347, %v2248, 0
        %2255 = vmatprep.subr.bf16.mxu0 0
        %2256 = vmatpush1.bf16.xpose.msra.mxu0 %v2097
        %2257 = vmatprep.subr.bf16.mxu0 0
        %2258 = vmatpush1.bf16.xpose.msra.mxu0 0
        %2259 = vmatprep.subr.bf16.mxu0 0
        %2260 = vmatpush1.bf16.xpose.msra.mxu0 0
        %2261 = vmatprep.subr.bf16.mxu0 0
        %2262 = vmatpush1.bf16.xpose.msra.mxu0 0
        %2263 = vmatprep.subr.bf16.mxu0 0
        %2264 = vmatpush1.bf16.xpose.msra.mxu0 0
        %2265 = vmatprep.subr.bf16.mxu0 0
        %2266 = vmatpush1.bf16.xpose.msra.mxu0 0
        %2267 = vmatprep.subr.bf16.mxu0 0
        %2268 = vmatpush1.bf16.xpose.msra.mxu0 0
        %2269 = vmatprep.subr.bf16.mxu0 0
        %2270 = vmatpush1.bf16.xpose.msra.mxu0 0
        %2271 = vmatprep.subr.bf16.mxu0 0
        %2272 = vmatpush1.bf16.xpose.msra.mxu0 0
        %2273 = vmatprep.subr.bf16.mxu0 0
        %2274 = vmatpush1.bf16.xpose.msra.mxu0 0
        %2275 = vmatprep.subr.bf16.mxu0 0
        %2276 = vmatpush1.bf16.xpose.msra.mxu0 0
        %2277 = vmatprep.subr.bf16.mxu0 0
        %2278 = vmatpush1.bf16.xpose.msra.mxu0 0
        %2279 = vmatprep.subr.bf16.mxu0 0
        %2280 = vmatpush1.bf16.xpose.msra.mxu0 0
        %2281 = vmatprep.subr.bf16.mxu0 0
        %2282 = vmatpush1.bf16.xpose.msra.mxu0 0
        %2283 = vmatprep.subr.bf16.mxu0 0
        %2284 = vmatpush1.bf16.xpose.msra.mxu0 0
        %2285 = vmatprep.subr.bf16.mxu0 0
        %2286 = vmatpush1.bf16.xpose.msra.mxu0 0
        %2287 = vmatprep.mubr.bf16.mxu0 0
        %2288 = vmatmul.mubr.bf16.gmra.mrb[0].mxu0 %v2250
        %v2289 = vpop.f32.mrb[0].mxu0
        %v2290 = vadd.f32 0.0, %v2289
        %v2291 = vpop.f32.mrb[0].mxu0
        %v2292 = vpop.f32.mrb[0].mxu0
        %v2293 = vadd.f32 0.0, %v2292
        %v2294 = vpop.f32.mrb[0].mxu0
        %2295 = vmatprep.mubr.bf16.mxu0 0
        %2296 = vmatmul.mubr.bf16.gmra.mrb[0].mxu0 %v2253
        %v2297 = vpop.f32.mrb[0].mxu0
        %v2298 = vadd.f32 0.0, %v2297
        %v2299 = vpop.f32.mrb[0].mxu0
        %v2300 = vpop.f32.mrb[0].mxu0
        %v2301 = vadd.f32 0.0, %v2300
        %v2302 = vpop.f32.mrb[0].mxu0
        %2303 = vdwg.mxu0
        %v2304 = vpack.c.bf16 %v2293, %v2290
        %v2305 = vpack.c.bf16 %v2301, %v2298
        %2307 = vset.pattern.permute.xlu0 0
        %2308 = vperm.xlu0 %2307, %v308
        %v2309 = vpop.permute.xlu0 %2308
        %2312 = vset.pattern.permute.xlu0 0
        %2313 = vperm.xlu0 %2312, %v309
        %v2314 = vpop.permute.xlu0 %2313
        %2317 = vset.pattern.permute.xlu0 0
        %2318 = vperm.xlu0 %2317, %v310
        %v2319 = vpop.permute.xlu0 %2318
        %2322 = vset.pattern.permute.xlu0 0
        %2323 = vperm.xlu0 %2322, %v311
        %v2324 = vpop.permute.xlu0 %2323
        %v2327 = vsel %vm543, %v2304, 0
        %v2330 = vsel %vm543, %v2305, 0
        %v2333 = vsel %vm547, %v2237, 0
        %v2336 = vsel %vm547, %v2238, 0
        %2338 = vmatprep.subr.bf16.mxu0 %v2336
        %2339 = vmatpush1.bf16.msra.mxu0 %v2333
        %2340 = vmatprep.subr.bf16.mxu0 0
        %2341 = vmatpush1.bf16.msra.mxu0 0
        %2342 = vmatprep.subr.bf16.mxu0 0
        %2343 = vmatpush1.bf16.msra.mxu0 0
        %2344 = vmatprep.subr.bf16.mxu0 0
        %2345 = vmatpush1.bf16.msra.mxu0 0
        %2346 = vmatprep.subr.bf16.mxu0 0
        %2347 = vmatpush1.bf16.msra.mxu0 0
        %2348 = vmatprep.subr.bf16.mxu0 0
        %2349 = vmatpush1.bf16.msra.mxu0 0
        %2350 = vmatprep.subr.bf16.mxu0 0
        %2351 = vmatpush1.bf16.msra.mxu0 0
        %2352 = vmatprep.subr.bf16.mxu0 0
        %2353 = vmatpush1.bf16.msra.mxu0 0
        %2354 = vmatprep.subr.bf16.mxu0 0
        %2355 = vmatpush1.bf16.msra.mxu0 0
        %2356 = vmatprep.subr.bf16.mxu0 0
        %2357 = vmatpush1.bf16.msra.mxu0 0
        %2358 = vmatprep.subr.bf16.mxu0 0
        %2359 = vmatpush1.bf16.msra.mxu0 0
        %2360 = vmatprep.subr.bf16.mxu0 0
        %2361 = vmatpush1.bf16.msra.mxu0 0
        %2362 = vmatprep.subr.bf16.mxu0 0
        %2363 = vmatpush1.bf16.msra.mxu0 0
        %2364 = vmatprep.subr.bf16.mxu0 0
        %2365 = vmatpush1.bf16.msra.mxu0 0
        %2366 = vmatprep.subr.bf16.mxu0 0
        %2367 = vmatpush1.bf16.msra.mxu0 0
        %2368 = vmatprep.subr.bf16.mxu0 0
        %2369 = vmatpush1.bf16.msra.mxu0 0
        %2370 = vmatprep.mubr.bf16.mxu0 0
        %2371 = vmatmul.mubr.bf16.gmra.mrb[0].mxu0 %v2327
        %v2372 = vpop.f32.mrb[0].mxu0
        %v2373 = vadd.f32 %v2309, %v2372
        %v2374 = vpop.f32.mrb[0].mxu0
        %v2375 = vadd.f32 %v2309, %v2374
        %v2376 = vpop.f32.mrb[0].mxu0
        %v2377 = vadd.f32 %v2314, %v2376
        %v2378 = vpop.f32.mrb[0].mxu0
        %v2379 = vadd.f32 %v2314, %v2378
        %2380 = vmatprep.mubr.bf16.mxu0 0
        %2381 = vmatmul.mubr.bf16.gmra.mrb[0].mxu0 %v2330
        %v2382 = vpop.f32.mrb[0].mxu0
        %v2383 = vadd.f32 %v2319, %v2382
        %v2384 = vpop.f32.mrb[0].mxu0
        %v2385 = vadd.f32 %v2319, %v2384
        %v2386 = vpop.f32.mrb[0].mxu0
        %v2387 = vadd.f32 %v2324, %v2386
        %v2388 = vpop.f32.mrb[0].mxu0
        %v2389 = vadd.f32 %v2324, %v2388
        %2390 = vdwg.mxu0
        %v2391 = vadd.f32 %v288, %v2373
        %v2392 = vadd.f32 %v289, %v2375
        %v2393 = vadd.f32 %v290, %v2377
        %v2394 = vadd.f32 %v291, %v2379
        %v2395 = vadd.f32 %v292, %v2383
        %v2396 = vadd.f32 %v293, %v2385
        %v2397 = vadd.f32 %v294, %v2387
        %v2398 = vadd.f32 %v295, %v2389
        %v2399 = vmax.f32 %v2391, 0.0
        %v2400 = vmax.f32 %v2392, 0.0
        %v2401 = vmax.f32 %v2393, 0.0
        %v2402 = vmax.f32 %v2394, 0.0
        %v2403 = vmax.f32 %v2395, 0.0
        %v2404 = vmax.f32 %v2396, 0.0
        %v2405 = vmax.f32 %v2397, 0.0
        %v2406 = vmax.f32 %v2398, 0.0
        %2407 = vst [vmem:[%s282] sm:$0xff] %v2399
        %2408 = vst [vmem:[%s282 + $0x8] sm:$0xff] %v2400
        %2409 = vst [vmem:[%s282 + $0x10] sm:$0xff] %v2401
        %2410 = vst [vmem:[%s282 + $0x18] sm:$0xff] %v2402
        %2411 = vst [vmem:[%s282 + $0x20] sm:$0xff] %v2403
        %2412 = vst [vmem:[%s282 + $0x28] sm:$0xff] %v2404
        %2413 = vst [vmem:[%s282 + $0x30] sm:$0xff] %v2405
        %2414 = vst [vmem:[%s282 + $0x38] sm:$0xff] %v2406
        %s2415 = sand.u32 %s167, 1
        %s2416 = scalar_lea.sflag [#allocation4], %s2415
        %s2417 = sand.u32 %s167, 1
        %s2418 = smul.addr %s2417, 64
        %s2419 = scalar_lea.vmem [#allocation5], %s2418
        // Predicated region
        $region49: #{tpu_custom_call.1} parent=43 // pred_check
          %p2420 = pneg %p177
        $region50: #{tpu_custom_call.1} parent=43 // pred_check_branch
          %2422 = sbr.rel (%p2420) target = $region52
        $region51: #{tpu_custom_call.1} parent=43 // pred_region
          %s2424 = ssub.s32 1024, 1024
          %2425 = vsyncadd %s2416, %s2424
          %s2426 = smul.addr %s23, 8
          %s2427 = smul.addr %s2426, 128
          %s2428 = scalar_lea.hbm %s6, %s2427
          %s2429 = sshll.u32 %s2419, 4
          %s2430 = int_to_ptr.vmem [resolvable:$true] %s2429
          %2435 = dma.vmem_to_hbm [thread:$0]  %s2430, 1024, %s2428, %s2416, 256, 256, 16
        $region52: #{tpu_custom_call.1} parent=43 // pred_fallthru
          _
      $region44: #{tpu_custom_call.1} parent=5 // pred_fallthru
        _
      %p2436 = scmp.le.s32.totalorder 2, %s18
      // Predicated region
      $region53: #{tpu_custom_call.1} parent=5 // pred_check
        %p2437 = pneg %p2436
      $region54: #{tpu_custom_call.1} parent=5 // pred_check_branch
        %2439 = sbr.rel (%p2437) target = $region56
      $region55: #{tpu_custom_call.1} parent=5 // pred_region
        %s2440 = ssub.s32 %s18, 2
        // Predicated region
        $region57: #{tpu_custom_call.1} parent=55 // pred_check
          %p2441 = pneg %p183
        $region58: #{tpu_custom_call.1} parent=55 // pred_check_branch
          %2443 = sbr.rel (%p2441) target = $region60
        $region59: #{tpu_custom_call.1} parent=55 // pred_region
          %s2444 = sand.u32 %s168, 1
          %s2445 = scalar_lea.sflag [#allocation4], %s2444
          %s2446 = sand.u32 %s168, 1
          %s2447 = smul.addr %s2446, 64
          %s2448 = scalar_lea.vmem [#allocation5], %s2447
          %2449 = dma.done %s2445, 1024
        $region60: #{tpu_custom_call.1} parent=55 // pred_fallthru
          _
      $region56: #{tpu_custom_call.1} parent=5 // pred_fallthru
        _
    $region6: #{tpu_custom_call.1} parent=1 // loop_footer
      %s22 = sadd.s32 1, %s18
    $region7: #{tpu_custom_call.1} parent=1 // loop_footer_branch
      %17 = sbr.rel target = $region3
    $region8: #{tpu_custom_call.1} parent=1 // loop_exit
      _
    %2450 = vsyncpa [#allocation3], 1
    %s2451 = scalar_lea.sflag [#allocation3], 1
    %2452 = vsyncpa %s2451, 1
    %2453 = vsyncpa [#allocation4], 1
    %s2454 = scalar_lea.sflag [#allocation4], 1
    %2455 = vsyncpa %s2454, 1

// kernel: tpu_custom_call.1
$region0: #{tpu_custom_call.1}
  #allocation0 [shape = 'u32[]', space=smem, size = 0x4, offset = 0x4, fixed_abs, tag = 'smem constant byte address 0x4 - core index']
  #allocation1 [shape = 'u32[144,128]{1,0:T(1,128)}', space=vmem, size = 0x12000, scoped, tag = 'internal scratch']
  %s0 = inlined_call_operand.hbm [shape: f32[2,32,256], index: 0, kind: input, shape index: {}]
  %s1 = inlined_call_operand.vmem [shape: bf16[32,32], index: 1, kind: input, shape index: {}]
  %s2 = inlined_call_operand.vmem [shape: f32[32,1], index: 2, kind: input, shape index: {}]
  %s3 = inlined_call_operand.vmem [shape: bf16[32,32], index: 3, kind: input, shape index: {}]
  %s4 = inlined_call_operand.vmem [shape: f32[32,1], index: 4, kind: input, shape index: {}]
  %s5 = inlined_call_operand.vmem [shape: f32[2,8,32], index: 5, kind: input, shape index: {}]
  %s6 = inlined_call_operand.hbm [shape: f32[2,32,256], index: 6, kind: output, shape index: {}]
  %s7 = sld [smem:[#allocation0]]
  $region61: #{tpu_custom_call.1} parent=0
    _
  %s9 = ssub.s32 1, %s7
  %s10 = scalar_select 0, %s9, %s7
  $region1: #{tpu_custom_call.1} parent=0
    #allocation2 [shape = 'u8[65536]{0}', space=vmem, size = 0x10000, scoped, tag = 'input window, operand 0']
    #allocation3 [shape = 's32[2]{0}', space=sflag, size = 0x8, scoped, tag = 'scoped memory for tpu_custom_call.1']
    #allocation4 [shape = 's32[2]{0}', space=sflag, size = 0x8, scoped, tag = 'scoped memory for tpu_custom_call.1']
    #allocation5 [shape = 'u8[65536]{0}', space=vmem, size = 0x10000, scoped, tag = 'output window, operand 0']
    %11 = vsyncpa [#allocation3], 0
    %s12 = scalar_lea.sflag [#allocation3], 1
    %13 = vsyncpa %s12, 0
    %14 = vsyncpa [#allocation4], 0
    %s15 = scalar_lea.sflag [#allocation4], 1
    %16 = vsyncpa %s15, 0
    loop: start=0, step=1, limit=4
    $region2: #{tpu_custom_call.1} parent=1 // loop_pre_header
      _
    $region3: #{tpu_custom_call.1} parent=1 // loop_header
      %s18 = sphi 0, %s22
      %p19 = scmp.ge.s32.totalorder %s18, 4
      %s28 = sphi 0, %s30
      %s31 = sphi 0, %s28
      %s32 = sphi 0, %s31
      %s48 = sphi 0, %s32
      %s52 = sphi 0, %s52
      %s54 = sphi 0, %s52
      %s55 = sphi 0, %s54
      %s69 = sphi 0, %s55
      %s73 = sphi 0, %s73
      %s75 = sphi 0, %s73
      %s76 = sphi 0, %s75
      %s90 = sphi 0, %s76
      %s94 = sphi 0, %s94
      %s96 = sphi 0, %s94
      %s97 = sphi 0, %s96
      %s111 = sphi 0, %s97
      %s115 = sphi 0, %s115
      %s117 = sphi 0, %s115
      %s118 = sphi 0, %s117
      %s132 = sphi 0, %s118
      %s138 = sphi 0, %s140
      %s141 = sphi 0, %s138
      %s142 = sphi 0, %s141
      %s158 = sphi 0, %s142
      %s164 = sphi 0, %s166
      %s167 = sphi 0, %s164
      %s168 = sphi 0, %s167
      %s184 = sphi 0, %s168
    $region4: #{tpu_custom_call.1} parent=1 // loop_header_branch
      %21 = sbr.rel (%p19) target = $region8
    $region5: #{tpu_custom_call.1} parent=1 // loop_body
      %s23 = ssub.s32 %s18, 1
      %s24 = ssub.s32 %s18, 2
      %s25 = sadd.s32 %s18, 1
      %s26 = ssub.s32 %s18, %s25
      %p27 = scmp.eq.s32.totalorder %s26, 0
      %s29 = sadd.s32 %s28, 1
      %s30 = scalar_select %p27, %s28, %s29
      %p33 = pneg %p27
      %p34 = scmp.eq.s32.totalorder %s18, 1
      %p35 = por %p33, %p34
      %p36 = scmp.ne.s32.totalorder %s28, %s31
      %p37 = scmp.eq.s32.totalorder %s18, 0
      %p38 = por %p36, %p37
      %p39 = scmp.ne.s32.totalorder %s28, %s31
      %p40 = scmp.eq.s32.totalorder %s23, 1
      %p41 = por %p39, %p40
      %p42 = scmp.ne.s32.totalorder %s31, %s32
      %p43 = scmp.eq.s32.totalorder %s23, 0
      %p44 = por %p42, %p43
      %p45 = scmp.ne.s32.totalorder %s31, %s32
      %p46 = scmp.eq.s32.totalorder %s24, 1
      %p47 = por %p45, %p46
      %p49 = scmp.ne.s32.totalorder %s32, %s48
      %p50 = scmp.eq.s32.totalorder %s24, 0
      %p51 = por %p49, %p50
      %s53 = sadd.s32 %s52, 1
      %p56 = scmp.eq.s32.totalorder %s18, 1
      %p57 = scmp.ne.s32.totalorder %s52, %s54
      %p58 = scmp.eq.s32.totalorder %s18, 0
      %p59 = por %p57, %p58
      %p60 = scmp.ne.s32.totalorder %s52, %s54
      %p61 = scmp.eq.s32.totalorder %s23, 1
      %p62 = por %p60, %p61
      %p63 = scmp.ne.s32.totalorder %s54, %s55
      %p64 = scmp.eq.s32.totalorder %s23, 0
      %p65 = por %p63, %p64
      %p66 = scmp.ne.s32.totalorder %s54, %s55
      %p67 = scmp.eq.s32.totalorder %s24, 1
      %p68 = por %p66, %p67
      %p70 = scmp.ne.s32.totalorder %s55, %s69
      %p71 = scmp.eq.s32.totalorder %s24, 0
      %p72 = por %p70, %p71
      %s74 = sadd.s32 %s73, 1
      %p77 = scmp.eq.s32.totalorder %s18, 1
      %p78 = scmp.ne.s32.totalorder %s73, %s75
      %p79 = scmp.eq.s32.totalorder %s18, 0
      %p80 = por %p78, %p79
      %p81 = scmp.ne.s32.totalorder %s73, %s75
      %p82 = scmp.eq.s32.totalorder %s23, 1
      %p83 = por %p81, %p82
      %p84 = scmp.ne.s32.totalorder %s75, %s76
      %p85 = scmp.eq.s32.totalorder %s23, 0
      %p86 = por %p84, %p85
      %p87 = scmp.ne.s32.totalorder %s75, %s76
      %p88 = scmp.eq.s32.totalorder %s24, 1
      %p89 = por %p87, %p88
      %p91 = scmp.ne.s32.totalorder %s76, %s90
      %p92 = scmp.eq.s32.totalorder %s24, 0
      %p93 = por %p91, %p92
      %s95 = sadd.s32 %s94, 1
      %p98 = scmp.eq.s32.totalorder %s18, 1
      %p99 = scmp.ne.s32.totalorder %s94, %s96
      %p100 = scmp.eq.s32.totalorder %s18, 0
      %p101 = por %p99, %p100
      %p102 = scmp.ne.s32.totalorder %s94, %s96
      %p103 = scmp.eq.s32.totalorder %s23, 1
      %p104 = por %p102, %p103
      %p105 = scmp.ne.s32.totalorder %s96, %s97
      %p106 = scmp.eq.s32.totalorder %s23, 0
      %p107 = por %p105, %p106
      %p108 = scmp.ne.s32.totalorder %s96, %s97
      %p109 = scmp.eq.s32.totalorder %s24, 1
      %p110 = por %p108, %p109
      %p112 = scmp.ne.s32.totalorder %s97, %s111
      %p113 = scmp.eq.s32.totalorder %s24, 0
      %p114 = por %p112, %p113
      %s116 = sadd.s32 %s115, 1
      %p119 = scmp.eq.s32.totalorder %s18, 1
      %p120 = scmp.ne.s32.totalorder %s115, %s117
      %p121 = scmp.eq.s32.totalorder %s18, 0
      %p122 = por %p120, %p121
      %p123 = scmp.ne.s32.totalorder %s115, %s117
      %p124 = scmp.eq.s32.totalorder %s23, 1
      %p125 = por %p123, %p124
      %p126 = scmp.ne.s32.totalorder %s117, %s118
      %p127 = scmp.eq.s32.totalorder %s23, 0
      %p128 = por %p126, %p127
      %p129 = scmp.ne.s32.totalorder %s117, %s118
      %p130 = scmp.eq.s32.totalorder %s24, 1
      %p131 = por %p129, %p130
      %p133 = scmp.ne.s32.totalorder %s118, %s132
      %p134 = scmp.eq.s32.totalorder %s24, 0
      %p135 = por %p133, %p134
      %s136 = ssub.s32 %s18, %s25
      %p137 = scmp.eq.s32.totalorder %s136, 0
      %s139 = sadd.s32 %s138, 1
      %s140 = scalar_select %p137, %s138, %s139
      %p143 = pneg %p137
      %p144 = scmp.eq.s32.totalorder %s18, 1
      %p145 = por %p143, %p144
      %p146 = scmp.ne.s32.totalorder %s138, %s141
      %p147 = scmp.eq.s32.totalorder %s18, 0
      %p148 = por %p146, %p147
      %p149 = scmp.ne.s32.totalorder %s138, %s141
      %p150 = scmp.eq.s32.totalorder %s23, 1
      %p151 = por %p149, %p150
      %p152 = scmp.ne.s32.totalorder %s141, %s142
      %p153 = scmp.eq.s32.totalorder %s23, 0
      %p154 = por %p152, %p153
      %p155 = scmp.ne.s32.totalorder %s141, %s142
      %p156 = scmp.eq.s32.totalorder %s24, 1
      %p157 = por %p155, %p156
      %p159 = scmp.ne.s32.totalorder %s142, %s158
      %p160 = scmp.eq.s32.totalorder %s24, 0
      %p161 = por %p159, %p160
      %s162 = ssub.s32 %s18, %s25
      %p163 = scmp.eq.s32.totalorder %s162, 0
      %s165 = sadd.s32 %s164, 1
      %s166 = scalar_select %p163, %s164, %s165
      %p169 = pneg %p163
      %p170 = scmp.eq.s32.totalorder %s18, 1
      %p171 = por %p169, %p170
      %p172 = scmp.ne.s32.totalorder %s164, %s167
      %p173 = scmp.eq.s32.totalorder %s18, 0
      %p174 = por %p172, %p173
      %p175 = scmp.ne.s32.totalorder %s164, %s167
      %p176 = scmp.eq.s32.totalorder %s23, 1
      %p177 = por %p175, %p176
      %p178 = scmp.ne.s32.totalorder %s167, %s168
      %p179 = scmp.eq.s32.totalorder %s23, 0
      %p180 = por %p178, %p179
      %p181 = scmp.ne.s32.totalorder %s167, %s168
      %p182 = scmp.eq.s32.totalorder %s24, 1
      %p183 = por %p181, %p182
      %p185 = scmp.ne.s32.totalorder %s168, %s184
      %p186 = scmp.eq.s32.totalorder %s24, 0
      %p187 = por %p185, %p186
      %p188 = scmp.le.s32.totalorder 1, %s18
      %p189 = scmp.lt.s32.totalorder %s18, 3
      %p190 = pnand %p188, %p189
      %p191 = pneg %p190
      // Predicated region
      $region9: #{tpu_custom_call.1} parent=5 // pred_check
        _
      $region10: #{tpu_custom_call.1} parent=5 // pred_check_branch
        %193 = sbr.rel (%p190) target = $region12
      $region11: #{tpu_custom_call.1} parent=5 // pred_region
        %s194 = ssub.s32 %s18, 1
        // Predicated region
        $region13: #{tpu_custom_call.1} parent=11 // pred_check
          %p195 = pneg %p65
        $region14: #{tpu_custom_call.1} parent=11 // pred_check_branch
          %197 = sbr.rel (%p195) target = $region16
        $region15: #{tpu_custom_call.1} parent=11 // pred_region
          _
        $region16: #{tpu_custom_call.1} parent=11 // pred_fallthru
          _
        // Predicated region
        $region17: #{tpu_custom_call.1} parent=11 // pred_check
          %p198 = pneg %p86
        $region18: #{tpu_custom_call.1} parent=11 // pred_check_branch
          %200 = sbr.rel (%p198) target = $region20
        $region19: #{tpu_custom_call.1} parent=11 // pred_region
          _
        $region20: #{tpu_custom_call.1} parent=11 // pred_fallthru
          _
        // Predicated region
        $region21: #{tpu_custom_call.1} parent=11 // pred_check
          %p201 = pneg %p107
        $region22: #{tpu_custom_call.1} parent=11 // pred_check_branch
          %203 = sbr.rel (%p201) target = $region24
        $region23: #{tpu_custom_call.1} parent=11 // pred_region
          _
        $region24: #{tpu_custom_call.1} parent=11 // pred_fallthru
          _
        // Predicated region
        $region25: #{tpu_custom_call.1} parent=11 // pred_check
          %p204 = pneg %p128
        $region26: #{tpu_custom_call.1} parent=11 // pred_check_branch
          %206 = sbr.rel (%p204) target = $region28
        $region27: #{tpu_custom_call.1} parent=11 // pred_region
          _
        $region28: #{tpu_custom_call.1} parent=11 // pred_fallthru
          _
      $region12: #{tpu_custom_call.1} parent=5 // pred_fallthru
        _
      %p207 = scmp.lt.s32.totalorder %s18, 2
      // Predicated region
      $region29: #{tpu_custom_call.1} parent=5 // pred_check
        %p208 = pneg %p207
      $region30: #{tpu_custom_call.1} parent=5 // pred_check_branch
        %210 = sbr.rel (%p208) target = $region32
      $region31: #{tpu_custom_call.1} parent=5 // pred_region
        // Predicated region
        $region33: #{tpu_custom_call.1} parent=31 // pred_check
          %p211 = pneg %p38
        $region34: #{tpu_custom_call.1} parent=31 // pred_check_branch
          %213 = sbr.rel (%p211) target = $region36
        $region35: #{tpu_custom_call.1} parent=31 // pred_region
          %s214 = sand.u32 %s28, 1
          %s215 = scalar_lea.sflag [#allocation3], %s214
          %s216 = sand.u32 %s28, 1
          %s217 = smul.addr %s216, 64
          %s218 = scalar_lea.vmem [#allocation2], %s217
          %s220 = ssub.s32 1024, 1024
          %221 = vsyncadd %s215, %s220
          %s222 = smul.addr %s18, 8
          %s223 = smul.addr %s222, 128
          %s224 = scalar_lea.hbm %s0, %s223
          %s225 = sshll.u32 %s218, 4
          %s226 = int_to_ptr.vmem [resolvable:$true] %s225
          %231 = dma.hbm_to_vmem [thread:$0]  %s224, 1024, %s226, %s215, 256, 256, 16
        $region36: #{tpu_custom_call.1} parent=31 // pred_fallthru
          _
        // Predicated region
        $region37: #{tpu_custom_call.1} parent=31 // pred_check
          %p232 = pneg %p148
        $region38: #{tpu_custom_call.1} parent=31 // pred_check_branch
          %234 = sbr.rel (%p232) target = $region40
        $region39: #{tpu_custom_call.1} parent=31 // pred_region
          %p235 = scmp.lt.s32.totalorder %s18, 1
          %s236 = scalar_select %p235, %s18, 1
          %s237 = smul.addr %s236, 8
          %s238 = scalar_lea.vmem %s5, %s237
        $region40: #{tpu_custom_call.1} parent=31 // pred_fallthru
          _
      $region32: #{tpu_custom_call.1} parent=5 // pred_fallthru
        _
      %p239 = scmp.le.s32.totalorder 1, %s18
      %p240 = scmp.lt.s32.totalorder %s18, 3
      %p241 = pnand %p239, %p240
      %p242 = pneg %p241
      // Predicated region
      $region41: #{tpu_custom_call.1} parent=5 // pred_check
        _
      $region42: #{tpu_custom_call.1} parent=5 // pred_check_branch
        %244 = sbr.rel (%p241) target = $region44
      $region43: #{tpu_custom_call.1} parent=5 // pred_region
        %s245 = ssub.s32 %s18, 1
        %s246 = sand.u32 %s31, 1
        %s247 = scalar_lea.sflag [#allocation3], %s246
        %s248 = sand.u32 %s31, 1
        %s249 = smul.addr %s248, 64
        %s250 = scalar_lea.vmem [#allocation2], %s249
        // Predicated region
        $region45: #{tpu_custom_call.1} parent=43 // pred_check
          %p251 = pneg %p44
        $region46: #{tpu_custom_call.1} parent=43 // pred_check_branch
          %253 = sbr.rel (%p251) target = $region48
        $region47: #{tpu_custom_call.1} parent=43 // pred_region
          %254 = dma.done %s247, 1024
        $region48: #{tpu_custom_call.1} parent=43 // pred_fallthru
          _
        %s255 = sand.u32 %s31, 1
        %s256 = scalar_lea.sflag [#allocation3], %s255
        %s257 = sand.u32 %s31, 1
        %s258 = smul.addr %s257, 64
        %s259 = scalar_lea.vmem [#allocation2], %s258
        %p260 = pneg %p44
        %p261 = pneg %p41
        %p262 = pneg %p65
        %p263 = pneg %p62
        %p264 = pneg %p86
        %p265 = pneg %p83
        %p266 = pneg %p107
        %p267 = pneg %p104
        %p268 = pneg %p128
        %p269 = pneg %p125
        %p270 = scmp.lt.s32.totalorder %s23, 1
        %s271 = scalar_select %p270, %s23, 1
        %s272 = smul.addr %s271, 8
        %s273 = scalar_lea.vmem %s5, %s272
        %p274 = pneg %p154
        %p275 = pneg %p151
        %p276 = pneg %p180
        %p277 = pneg %p177
        %s278 = sand.u32 %s167, 1
        %s279 = scalar_lea.sflag [#allocation4], %s278
        %s280 = sand.u32 %s167, 1
        %s281 = smul.addr %s280, 64
        %s282 = scalar_lea.vmem [#allocation5], %s281
        %p283 = scmp.lt.s32.totalorder %s23, 1
        %s284 = scalar_select %p283, %s23, 1
        %s285 = smul.addr %s284, 8
        %s286 = scalar_lea.vmem %s5, %s285
        %v288 = vld [vmem:[%s250] sm:$0xff]
        %v289 = vld [vmem:[%s250 + $0x8] sm:$0xff]
        %v290 = vld [vmem:[%s250 + $0x10] sm:$0xff]
        %v291 = vld [vmem:[%s250 + $0x18] sm:$0xff]
        %v292 = vld [vmem:[%s250 + $0x20] sm:$0xff]
        %v293 = vld [vmem:[%s250 + $0x28] sm:$0xff]
        %v294 = vld [vmem:[%s250 + $0x30] sm:$0xff]
        %v295 = vld [vmem:[%s250 + $0x38] sm:$0xff]
        %v296 = vld [vmem:[%s1] sm:$0xf]
        %v297 = vld [vmem:[%s1 + $0x4] sm:$0xf]
        %v298 = vld [vmem:[%s1 + $0x8] sm:$0xf]
        %v299 = vld [vmem:[%s1 + $0xc] sm:$0xf]
        %v300 = vld [vmem:[%s2] sm:$0xff]
        %v301 = vld [vmem:[%s2 + $0x8] sm:$0xff]
        %v302 = vld [vmem:[%s2 + $0x10] sm:$0xff]
        %v303 = vld [vmem:[%s2 + $0x18] sm:$0xff]
        %v304 = vld [vmem:[%s3] sm:$0xf]
        %v305 = vld [vmem:[%s3 + $0x4] sm:$0xf]
        %v306 = vld [vmem:[%s3 + $0x8] sm:$0xf]
        %v307 = vld [vmem:[%s3 + $0xc] sm:$0xf]
        %v308 = vld [vmem:[%s4] sm:$0xff]
        %v309 = vld [vmem:[%s4 + $0x8] sm:$0xff]
        %v310 = vld [vmem:[%s4 + $0x10] sm:$0xff]
        %v311 = vld [vmem:[%s4 + $0x18] sm:$0xff]
        %v312 = vld [vmem:[%s286] sm:$0xff]
        %v313 = vpack.c.bf16 %v290, %v288
        %v314 = vpack.c.bf16 %v291, %v289
        %v315 = vpack.c.bf16 %v294, %v292
        %v316 = vpack.c.bf16 %v295, %v293
        %318 = vset.pattern.permute.xlu0 0
        %319 = vperm.xlu0 %318, %v300
        %v320 = vpop.permute.xlu0 %319
        %323 = vset.pattern.permute.xlu0 0
        %324 = vperm.xlu0 %323, %v301
        %v325 = vpop.permute.xlu0 %324
        %328 = vset.pattern.permute.xlu0 0
        %329 = vperm.xlu0 %328, %v302
        %v330 = vpop.permute.xlu0 %329
        %333 = vset.pattern.permute.xlu0 0
        %334 = vperm.xlu0 %333, %v303
        %v335 = vpop.permute.xlu0 %334
        %v341 = vunpack.c.l.b16 %v296
        %v342 = vunpack.c.l.b16 %v297
        %v343 = vunpack.c.l.b16 %v298
        %v344 = vunpack.c.l.b16 %v299
        %v345 = vpack.c.b16 %v342, %v341
        %v346 = vpack.c.b16 %v344, %v343
        %vm347 = vcmask 261120
        %v349 = vsel %vm347, %v345, 0
        %v352 = vsel %vm347, %v346, 0
        %354 = vmatprep.subr.bf16.mxu0 %v314
        %355 = vmatpush1.bf16.msra.mxu0 %v313
        %356 = vmatprep.subr.bf16.mxu0 %v316
        %357 = vmatpush1.bf16.msra.mxu0 %v315
        %358 = vmatprep.subr.bf16.mxu0 0
        %359 = vmatpush1.bf16.msra.mxu0 0
        %360 = vmatprep.subr.bf16.mxu0 0
        %361 = vmatpush1.bf16.msra.mxu0 0
        %362 = vmatprep.subr.bf16.mxu0 0
        %363 = vmatpush1.bf16.msra.mxu0 0
        %364 = vmatprep.subr.bf16.mxu0 0
        %365 = vmatpush1.bf16.msra.mxu0 0
        %366 = vmatprep.subr.bf16.mxu0 0
        %367 = vmatpush1.bf16.msra.mxu0 0
        %368 = vmatprep.subr.bf16.mxu0 0
        %369 = vmatpush1.bf16.msra.mxu0 0
        %370 = vmatprep.subr.bf16.mxu0 0
        %371 = vmatpush1.bf16.msra.mxu0 0
        %372 = vmatprep.subr.bf16.mxu0 0
        %373 = vmatpush1.bf16.msra.mxu0 0
        %374 = vmatprep.subr.bf16.mxu0 0
        %375 = vmatpush1.bf16.msra.mxu0 0
        %376 = vmatprep.subr.bf16.mxu0 0
        %377 = vmatpush1.bf16.msra.mxu0 0
        %378 = vmatprep.subr.bf16.mxu0 0
        %379 = vmatpush1.bf16.msra.mxu0 0
        %380 = vmatprep.subr.bf16.mxu0 0
        %381 = vmatpush1.bf16.msra.mxu0 0
        %382 = vmatprep.subr.bf16.mxu0 0
        %383 = vmatpush1.bf16.msra.mxu0 0
        %384 = vmatprep.subr.bf16.mxu0 0
        %385 = vmatpush1.bf16.msra.mxu0 0
        %386 = vmatprep.mubr.bf16.mxu0 0
        %387 = vmatmul.mubr.bf16.gmra.mrb[0].mxu0 %v349
        %v388 = vpop.f32.mrb[0].mxu0
        %v389 = vadd.f32 %v320, %v388
        %v390 = vpop.f32.mrb[0].mxu0
        %v391 = vadd.f32 %v320, %v390
        %v392 = vpop.f32.mrb[0].mxu0
        %v393 = vadd.f32 %v325, %v392
        %v394 = vpop.f32.mrb[0].mxu0
        %v395 = vadd.f32 %v325, %v394
        %396 = vmatprep.mubr.bf16.mxu0 0
        %397 = vmatmul.mubr.bf16.gmra.mrb[0].mxu0 %v352
        %v398 = vpop.f32.mrb[0].mxu0
        %v399 = vadd.f32 %v330, %v398
        %v400 = vpop.f32.mrb[0].mxu0
        %v401 = vadd.f32 %v330, %v400
        %v402 = vpop.f32.mrb[0].mxu0
        %v403 = vadd.f32 %v335, %v402
        %v404 = vpop.f32.mrb[0].mxu0
        %v405 = vadd.f32 %v335, %v404
        %406 = vdwg.mxu0
        %v407 = vmax.f32 %v389, 0.0
        %v408 = vmax.f32 %v391, 0.0
        %v409 = vmax.f32 %v393, 0.0
        %v410 = vmax.f32 %v395, 0.0
        %v411 = vmax.f32 %v399, 0.0
        %v412 = vmax.f32 %v401, 0.0
        %v413 = vmax.f32 %v403, 0.0
        %v414 = vmax.f32 %v405, 0.0
        %v415 = vpack.c.bf16 %v409, %v407
        %v416 = vpack.c.bf16 %v410, %v408
        %v417 = vpack.c.bf16 %v413, %v411
        %v418 = vpack.c.bf16 %v414, %v412
        %v419 = vpack.c.bf16 %v312, %v312
        %v421 = vsel %vm347, %v419, 0
        %423 = vmatprep.subr.bf16.mxu0 %v416
        %424 = vmatpush1.bf16.msra.mxu0 %v415
        %425 = vmatprep.subr.bf16.mxu0 %v418
        %426 = vmatpush1.bf16.msra.mxu0 %v417
        %427 = vmatprep.subr.bf16.mxu0 0
        %428 = vmatpush1.bf16.msra.mxu0 0
        %429 = vmatprep.subr.bf16.mxu0 0
        %430 = vmatpush1.bf16.msra.mxu0 0
        %431 = vmatprep.subr.bf16.mxu0 0
        %432 = vmatpush1.bf16.msra.mxu0 0
        %433 = vmatprep.subr.bf16.mxu0 0
        %434 = vmatpush1.bf16.msra.mxu0 0
        %435 = vmatprep.subr.bf16.mxu0 0
        %436 = vmatpush1.bf16.msra.mxu0 0
        %437 = vmatprep.subr.bf16.mxu0 0
        %438 = vmatpush1.bf16.msra.mxu0 0
        %439 = vmatprep.subr.bf16.mxu0 0
        %440 = vmatpush1.bf16.msra.mxu0 0
        %441 = vmatprep.subr.bf16.mxu0 0
        %442 = vmatpush1.bf16.msra.mxu0 0
        %443 = vmatprep.subr.bf16.mxu0 0
        %444 = vmatpush1.bf16.msra.mxu0 0
        %445 = vmatprep.subr.bf16.mxu0 0
        %446 = vmatpush1.bf16.msra.mxu0 0
        %447 = vmatprep.subr.bf16.mxu0 0
        %448 = vmatpush1.bf16.msra.mxu0 0
        %449 = vmatprep.subr.bf16.mxu0 0
        %450 = vmatpush1.bf16.msra.mxu0 0
        %451 = vmatprep.subr.bf16.mxu0 0
        %452 = vmatpush1.bf16.msra.mxu0 0
        %453 = vmatprep.subr.bf16.mxu0 0
        %454 = vmatpush1.bf16.msra.mxu0 0
        %455 = vmatprep.mubr.bf16.mxu0 0
        %456 = vmatmul.mubr.bf16.gmra.mrb[0].mxu0 %v421
        %v457 = vpop.f32.mrb[0].mxu0
        %v458 = vadd.f32 0.0, %v457
        %v459 = vpop.f32.mrb[0].mxu0
        %v460 = vadd.f32 0.0, %v459
        %v461 = vpop.f32.mrb[0].mxu0
        %v462 = vpop.f32.mrb[0].mxu0
        %463 = vdwg.mxu0
        %v464 = vrot.slane %v458, 4
        %v465 = vmax.f32 %v458, %v464
        %v466 = vrot.slane %v465, 2
        %v467 = vmax.f32 %v465, %v466
        %v468 = vrot.slane %v467, 1
        %v469 = vmax.f32 %v467, %v468
        %v470 = vrot.slane %v460, 4
        %v471 = vmax.f32 %v460, %v470
        %v472 = vrot.slane %v471, 2
        %v473 = vmax.f32 %v471, %v472
        %v474 = vrot.slane %v473, 1
        %v475 = vmax.f32 %v473, %v474
        %v476 = vsub.f32 %v458, %v469
        %v477 = vsub.f32 %v460, %v475
        %v478 = vmul.f32 %v476, 1.442695
        %v479 = vpow.pop %v478
        %v480 = vmul.f32 %v477, 1.442695
        %v481 = vpow.pop %v480
        %v482 = vrot.slane %v479, 4
        %v483 = vadd.f32 %v479, %v482
        %v484 = vrot.slane %v483, 2
        %v485 = vadd.f32 %v483, %v484
        %v486 = vrot.slane %v485, 1
        %v487 = vadd.f32 %v485, %v486
        %v488 = vrot.slane %v481, 4
        %v489 = vadd.f32 %v481, %v488
        %v490 = vrot.slane %v489, 2
        %v491 = vadd.f32 %v489, %v490
        %v492 = vrot.slane %v491, 1
        %v493 = vadd.f32 %v491, %v492
        %v494 = vrcp.pop %v487
        %v495 = vmul.f32 %v479, %v494
        %v496 = vrcp.pop %v493
        %v497 = vmul.f32 %v481, %v496
        %v498 = vpack.c.bf16 %v495, %v495
        %v499 = vpack.c.bf16 %v497, %v497
        %500 = vmatprep.subr.bf16.mxu0 0
        %501 = vmatpush1.bf16.xpose.msra.mxu0 %v421
        %502 = vmatprep.subr.bf16.mxu0 0
        %503 = vmatpush1.bf16.xpose.msra.mxu0 0
        %504 = vmatprep.subr.bf16.mxu0 0
        %505 = vmatpush1.bf16.xpose.msra.mxu0 0
        %506 = vmatprep.subr.bf16.mxu0 0
        %507 = vmatpush1.bf16.xpose.msra.mxu0 0
        %508 = vmatprep.subr.bf16.mxu0 0
        %509 = vmatpush1.bf16.xpose.msra.mxu0 0
        %510 = vmatprep.subr.bf16.mxu0 0
        %511 = vmatpush1.bf16.xpose.msra.mxu0 0
        %512 = vmatprep.subr.bf16.mxu0 0
        %513 = vmatpush1.bf16.xpose.msra.mxu0 0
        %514 = vmatprep.subr.bf16.mxu0 0
        %515 = vmatpush1.bf16.xpose.msra.mxu0 0
        %516 = vmatprep.subr.bf16.mxu0 0
        %517 = vmatpush1.bf16.xpose.msra.mxu0 0
        %518 = vmatprep.subr.bf16.mxu0 0
        %519 = vmatpush1.bf16.xpose.msra.mxu0 0
        %520 = vmatprep.subr.bf16.mxu0 0
        %521 = vmatpush1.bf16.xpose.msra.mxu0 0
        %522 = vmatprep.subr.bf16.mxu0 0
        %523 = vmatpush1.bf16.xpose.msra.mxu0 0
        %524 = vmatprep.subr.bf16.mxu0 0
        %525 = vmatpush1.bf16.xpose.msra.mxu0 0
        %526 = vmatprep.subr.bf16.mxu0 0
        %527 = vmatpush1.bf16.xpose.msra.mxu0 0
        %528 = vmatprep.subr.bf16.mxu0 0
        %529 = vmatpush1.bf16.xpose.msra.mxu0 0
        %530 = vmatprep.subr.bf16.mxu0 0
        %531 = vmatpush1.bf16.xpose.msra.mxu0 0
        %532 = vmatprep.mubr.bf16.mxu0 0
        %533 = vmatmul.mubr.bf16.gmra.mrb[0].mxu0 %v421
        %v534 = vpop.f32.mrb[0].mxu0
        %v535 = vadd.f32 0.0, %v534
        %v536 = vpop.f32.mrb[0].mxu0
        %v537 = vpop.f32.mrb[0].mxu0
        %v538 = vpop.f32.mrb[0].mxu0
        %539 = vdwg.mxu0
        %v540 = vpack.c.bf16 %v535, %v535
        %v541 = vmul.f32 %v495, %v458
        %v542 = vmul.f32 %v497, %v460
        %vm543 = vcmask 64512
        %v545 = vsel %vm543, %v540, 0
        %vm547 = vcmask 1043456
        %v549 = vsel %vm547, %v498, 0
        %v552 = vsel %vm547, %v499, 0
        %554 = vmatprep.subr.bf16.mxu0 %v552
        %555 = vmatpush1.bf16.msra.mxu0 %v549
        %556 = vmatprep.subr.bf16.mxu0 0
        %557 = vmatpush1.bf16.msra.mxu0 0
        %558 = vmatprep.subr.bf16.mxu0 0
        %559 = vmatpush1.bf16.msra.mxu0 0
        %560 = vmatprep.subr.bf16.mxu0 0
        %561 = vmatpush1.bf16.msra.mxu0 0
        %562 = vmatprep.subr.bf16.mxu0 0
        %563 = vmatpush1.bf16.msra.mxu0 0
        %564 = vmatprep.subr.bf16.mxu0 0
        %565 = vmatpush1.bf16.msra.mxu0 0
        %566 = vmatprep.subr.bf16.mxu0 0
        %567 = vmatpush1.bf16.msra.mxu0 0
        %568 = vmatprep.subr.bf16.mxu0 0
        %569 = vmatpush1.bf16.msra.mxu0 0
        %570 = vmatprep.subr.bf16.mxu0 0
        %571 = vmatpush1.bf16.msra.mxu0 0
        %572 = vmatprep.subr.bf16.mxu0 0
        %573 = vmatpush1.bf16.msra.mxu0 0
        %574 = vmatprep.subr.bf16.mxu0 0
        %575 = vmatpush1.bf16.msra.mxu0 0
        %576 = vmatprep.subr.bf16.mxu0 0
        %577 = vmatpush1.bf16.msra.mxu0 0
        %578 = vmatprep.subr.bf16.mxu0 0
        %579 = vmatpush1.bf16.msra.mxu0 0
        %580 = vmatprep.subr.bf16.mxu0 0
        %581 = vmatpush1.bf16.msra.mxu0 0
        %582 = vmatprep.subr.bf16.mxu0 0
        %583 = vmatpush1.bf16.msra.mxu0 0
        %584 = vmatprep.subr.bf16.mxu0 0
        %585 = vmatpush1.bf16.msra.mxu0 0
        %586 = vmatprep.mubr.bf16.mxu0 0
        %587 = vmatmul.mubr.bf16.gmra.mrb[0].mxu0 %v545
        %v588 = vpop.f32.mrb[0].mxu0
        %v589 = vadd.f32 1e-06, %v588
        %v590 = vpop.f32.mrb[0].mxu0
        %v591 = vadd.f32 1e-06, %v590
        %v592 = vpop.f32.mrb[0].mxu0
        %v593 = vpop.f32.mrb[0].mxu0
        %594 = vdwg.mxu0
        %v595 = vrcp.pop %v589
        %v596 = vrcp.pop %v591
        %v597 = vmul.f32 %v541, %v595
        %v598 = vmul.f32 %v542, %v596
        %v599 = vpack.c.bf16 %v597, %v597
        %v600 = vpack.c.bf16 %v598, %v598
        %601 = vmatprep.subr.bf16.mxu0 %v416
        %602 = vmatpush1.bf16.xpose.msra.mxu0 %v415
        %603 = vmatprep.subr.bf16.mxu0 %v418
        %604 = vmatpush1.bf16.xpose.msra.mxu0 %v417
        %605 = vmatprep.subr.bf16.mxu0 0
        %606 = vmatpush1.bf16.xpose.msra.mxu0 0
        %607 = vmatprep.subr.bf16.mxu0 0
        %608 = vmatpush1.bf16.xpose.msra.mxu0 0
        %609 = vmatprep.subr.bf16.mxu0 0
        %610 = vmatpush1.bf16.xpose.msra.mxu0 0
        %611 = vmatprep.subr.bf16.mxu0 0
        %612 = vmatpush1.bf16.xpose.msra.mxu0 0
        %613 = vmatprep.subr.bf16.mxu0 0
        %614 = vmatpush1.bf16.xpose.msra.mxu0 0
        %615 = vmatprep.subr.bf16.mxu0 0
        %616 = vmatpush1.bf16.xpose.msra.mxu0 0
        %617 = vmatprep.subr.bf16.mxu0 0
        %618 = vmatpush1.bf16.xpose.msra.mxu0 0
        %619 = vmatprep.subr.bf16.mxu0 0
        %620 = vmatpush1.bf16.xpose.msra.mxu0 0
        %621 = vmatprep.subr.bf16.mxu0 0
        %622 = vmatpush1.bf16.xpose.msra.mxu0 0
        %623 = vmatprep.subr.bf16.mxu0 0
        %624 = vmatpush1.bf16.xpose.msra.mxu0 0
        %625 = vmatprep.subr.bf16.mxu0 0
        %626 = vmatpush1.bf16.xpose.msra.mxu0 0
        %627 = vmatprep.subr.bf16.mxu0 0
        %628 = vmatpush1.bf16.xpose.msra.mxu0 0
        %629 = vmatprep.subr.bf16.mxu0 0
        %630 = vmatpush1.bf16.xpose.msra.mxu0 0
        %631 = vmatprep.subr.bf16.mxu0 0
        %632 = vmatpush1.bf16.xpose.msra.mxu0 0
        %633 = vmatprep.mubr.bf16.mxu0 %v600
        %634 = vmatmul.mubr.bf16.gmra.mrb[0].mxu0 %v599
        %v635 = vpop.f32.mrb[0].mxu0
        %v636 = vadd.f32 0.0, %v635
        %v637 = vpop.f32.mrb[0].mxu0
        %v638 = vpop.f32.mrb[0].mxu0
        %v639 = vpop.f32.mrb[0].mxu0
        %640 = vdwg.mxu0
        %641 = vmatprep.subr.bf16.mxu0 %v600
        %642 = vmatpush1.bf16.xpose.msra.mxu0 %v599
        %643 = vmatprep.subr.bf16.mxu0 0
        %644 = vmatpush1.bf16.xpose.msra.mxu0 0
        %645 = vmatprep.subr.bf16.mxu0 0
        %646 = vmatpush1.bf16.xpose.msra.mxu0 0
        %647 = vmatprep.subr.bf16.mxu0 0
        %648 = vmatpush1.bf16.xpose.msra.mxu0 0
        %649 = vmatprep.subr.bf16.mxu0 0
        %650 = vmatpush1.bf16.xpose.msra.mxu0 0
        %651 = vmatprep.subr.bf16.mxu0 0
        %652 = vmatpush1.bf16.xpose.msra.mxu0 0
        %653 = vmatprep.subr.bf16.mxu0 0
        %654 = vmatpush1.bf16.xpose.msra.mxu0 0
        %655 = vmatprep.subr.bf16.mxu0 0
        %656 = vmatpush1.bf16.xpose.msra.mxu0 0
        %657 = vmatprep.subr.bf16.mxu0 0
        %658 = vmatpush1.bf16.xpose.msra.mxu0 0
        %659 = vmatprep.subr.bf16.mxu0 0
        %660 = vmatpush1.bf16.xpose.msra.mxu0 0
        %661 = vmatprep.subr.bf16.mxu0 0
        %662 = vmatpush1.bf16.xpose.msra.mxu0 0
        %663 = vmatprep.subr.bf16.mxu0 0
        %664 = vmatpush1.bf16.xpose.msra.mxu0 0
        %665 = vmatprep.subr.bf16.mxu0 0
        %666 = vmatpush1.bf16.xpose.msra.mxu0 0
        %667 = vmatprep.subr.bf16.mxu0 0
        %668 = vmatpush1.bf16.xpose.msra.mxu0 0
        %669 = vmatprep.subr.bf16.mxu0 0
        %670 = vmatpush1.bf16.xpose.msra.mxu0 0
        %671 = vmatprep.subr.bf16.mxu0 0
        %672 = vmatpush1.bf16.xpose.msra.mxu0 0
        %673 = vmatprep.mubr.bf16.mxu0 %v600
        %674 = vmatmul.mubr.bf16.gmra.mrb[0].mxu0 %v599
        %v675 = vpop.f32.mrb[0].mxu0
        %v676 = vadd.f32 0.0, %v675
        %v677 = vpop.f32.mrb[0].mxu0
        %v678 = vpop.f32.mrb[0].mxu0
        %v679 = vpop.f32.mrb[0].mxu0
        %680 = vdwg.mxu0
        %v681 = vpack.c.bf16 %v676, %v676
        %v682 = vmul.f32 %v312, %v636
        %v684 = vsel %vm543, %v681, 0
        %v686 = vsel %vm547, %v419, 0
        %688 = vmatprep.subr.bf16.mxu0 0
        %689 = vmatpush1.bf16.msra.mxu0 %v686
        %690 = vmatprep.subr.bf16.mxu0 0
        %691 = vmatpush1.bf16.msra.mxu0 0
        %692 = vmatprep.subr.bf16.mxu0 0
        %693 = vmatpush1.bf16.msra.mxu0 0
        %694 = vmatprep.subr.bf16.mxu0 0
        %695 = vmatpush1.bf16.msra.mxu0 0
        %696 = vmatprep.subr.bf16.mxu0 0
        %697 = vmatpush1.bf16.msra.mxu0 0
        %698 = vmatprep.subr.bf16.mxu0 0
        %699 = vmatpush1.bf16.msra.mxu0 0
        %700 = vmatprep.subr.bf16.mxu0 0
        %701 = vmatpush1.bf16.msra.mxu0 0
        %702 = vmatprep.subr.bf16.mxu0 0
        %703 = vmatpush1.bf16.msra.mxu0 0
        %704 = vmatprep.subr.bf16.mxu0 0
        %705 = vmatpush1.bf16.msra.mxu0 0
        %706 = vmatprep.subr.bf16.mxu0 0
        %707 = vmatpush1.bf16.msra.mxu0 0
        %708 = vmatprep.subr.bf16.mxu0 0
        %709 = vmatpush1.bf16.msra.mxu0 0
        %710 = vmatprep.subr.bf16.mxu0 0
        %711 = vmatpush1.bf16.msra.mxu0 0
        %712 = vmatprep.subr.bf16.mxu0 0
        %713 = vmatpush1.bf16.msra.mxu0 0
        %714 = vmatprep.subr.bf16.mxu0 0
        %715 = vmatpush1.bf16.msra.mxu0 0
        %716 = vmatprep.subr.bf16.mxu0 0
        %717 = vmatpush1.bf16.msra.mxu0 0
        %718 = vmatprep.subr.bf16.mxu0 0
        %719 = vmatpush1.bf16.msra.mxu0 0
        %720 = vmatprep.mubr.bf16.mxu0 0
        %721 = vmatmul.mubr.bf16.gmra.mrb[0].mxu0 %v684
        %v722 = vpop.f32.mrb[0].mxu0
        %v723 = vadd.f32 1e-06, %v722
        %v724 = vpop.f32.mrb[0].mxu0
        %v725 = vpop.f32.mrb[0].mxu0
        %v726 = vpop.f32.mrb[0].mxu0
        %727 = vdwg.mxu0
        %v728 = vrcp.pop %v723
        %v729 = vmul.f32 %v682, %v728
        %v730 = vpack.c.bf16 %v729, %v729
        %v732 = vsel %vm347, %v730, 0
        %734 = vmatprep.subr.bf16.mxu0 %v416
        %735 = vmatpush1.bf16.msra.mxu0 %v415
        %736 = vmatprep.subr.bf16.mxu0 %v418
        %737 = vmatpush1.bf16.msra.mxu0 %v417
        %738 = vmatprep.subr.bf16.mxu0 0
        %739 = vmatpush1.bf16.msra.mxu0 0
        %740 = vmatprep.subr.bf16.mxu0 0
        %741 = vmatpush1.bf16.msra.mxu0 0
        %742 = vmatprep.subr.bf16.mxu0 0
        %743 = vmatpush1.bf16.msra.mxu0 0
        %744 = vmatprep.subr.bf16.mxu0 0
        %745 = vmatpush1.bf16.msra.mxu0 0
        %746 = vmatprep.subr.bf16.mxu0 0
        %747 = vmatpush1.bf16.msra.mxu0 0
        %748 = vmatprep.subr.bf16.mxu0 0
        %749 = vmatpush1.bf16.msra.mxu0 0
        %750 = vmatprep.subr.bf16.mxu0 0
        %751 = vmatpush1.bf16.msra.mxu0 0
        %752 = vmatprep.subr.bf16.mxu0 0
        %753 = vmatpush1.bf16.msra.mxu0 0
        %754 = vmatprep.subr.bf16.mxu0 0
        %755 = vmatpush1.bf16.msra.mxu0 0
        %756 = vmatprep.subr.bf16.mxu0 0
        %757 = vmatpush1.bf16.msra.mxu0 0
        %758 = vmatprep.subr.bf16.mxu0 0
        %759 = vmatpush1.bf16.msra.mxu0 0
        %760 = vmatprep.subr.bf16.mxu0 0
        %761 = vmatpush1.bf16.msra.mxu0 0
        %762 = vmatprep.subr.bf16.mxu0 0
        %763 = vmatpush1.bf16.msra.mxu0 0
        %764 = vmatprep.subr.bf16.mxu0 0
        %765 = vmatpush1.bf16.msra.mxu0 0
        %766 = vmatprep.mubr.bf16.mxu0 0
        %767 = vmatmul.mubr.bf16.gmra.mrb[0].mxu0 %v732
        %v768 = vpop.f32.mrb[0].mxu0
        %v769 = vadd.f32 0.0, %v768
        %v770 = vpop.f32.mrb[0].mxu0
        %v771 = vadd.f32 0.0, %v770
        %v772 = vpop.f32.mrb[0].mxu0
        %v773 = vpop.f32.mrb[0].mxu0
        %774 = vdwg.mxu0
        %775 = vmatprep.subr.bf16.mxu0 0
        %776 = vmatpush1.bf16.xpose.msra.mxu0 %v732
        %777 = vmatprep.subr.bf16.mxu0 0
        %778 = vmatpush1.bf16.xpose.msra.mxu0 0
        %779 = vmatprep.subr.bf16.mxu0 0
        %780 = vmatpush1.bf16.xpose.msra.mxu0 0
        %781 = vmatprep.subr.bf16.mxu0 0
        %782 = vmatpush1.bf16.xpose.msra.mxu0 0
        %783 = vmatprep.subr.bf16.mxu0 0
        %784 = vmatpush1.bf16.xpose.msra.mxu0 0
        %785 = vmatprep.subr.bf16.mxu0 0
        %786 = vmatpush1.bf16.xpose.msra.mxu0 0
        %787 = vmatprep.subr.bf16.mxu0 0
        %788 = vmatpush1.bf16.xpose.msra.mxu0 0
        %789 = vmatprep.subr.bf16.mxu0 0
        %790 = vmatpush1.bf16.xpose.msra.mxu0 0
        %791 = vmatprep.subr.bf16.mxu0 0
        %792 = vmatpush1.bf16.xpose.msra.mxu0 0
        %793 = vmatprep.subr.bf16.mxu0 0
        %794 = vmatpush1.bf16.xpose.msra.mxu0 0
        %795 = vmatprep.subr.bf16.mxu0 0
        %796 = vmatpush1.bf16.xpose.msra.mxu0 0
        %797 = vmatprep.subr.bf16.mxu0 0
        %798 = vmatpush1.bf16.xpose.msra.mxu0 0
        %799 = vmatprep.subr.bf16.mxu0 0
        %800 = vmatpush1.bf16.xpose.msra.mxu0 0
        %801 = vmatprep.subr.bf16.mxu0 0
        %802 = vmatpush1.bf16.xpose.msra.mxu0 0
        %803 = vmatprep.subr.bf16.mxu0 0
        %804 = vmatpush1.bf16.xpose.msra.mxu0 0
        %805 = vmatprep.subr.bf16.mxu0 0
        %806 = vmatpush1.bf16.xpose.msra.mxu0 0
        %807 = vmatprep.mubr.bf16.mxu0 0
        %808 = vmatmul.mubr.bf16.gmra.mrb[0].mxu0 %v732
        %v809 = vpop.f32.mrb[0].mxu0
        %v810 = vadd.f32 0.0, %v809
        %v811 = vpop.f32.mrb[0].mxu0
        %v812 = vpop.f32.mrb[0].mxu0
        %v813 = vpop.f32.mrb[0].mxu0
        %814 = vdwg.mxu0
        %v815 = vpack.c.bf16 %v810, %v810
        %v816 = vmul.f32 %v597, %v769
        %v817 = vmul.f32 %v598, %v771
        %v819 = vsel %vm543, %v815, 0
        %v822 = vsel %vm547, %v599, 0
        %v825 = vsel %vm547, %v600, 0
        %827 = vmatprep.subr.bf16.mxu0 %v825
        %828 = vmatpush1.bf16.msra.mxu0 %v822
        %829 = vmatprep.subr.bf16.mxu0 0
        %830 = vmatpush1.bf16.msra.mxu0 0
        %831 = vmatprep.subr.bf16.mxu0 0
        %832 = vmatpush1.bf16.msra.mxu0 0
        %833 = vmatprep.subr.bf16.mxu0 0
        %834 = vmatpush1.bf16.msra.mxu0 0
        %835 = vmatprep.subr.bf16.mxu0 0
        %836 = vmatpush1.bf16.msra.mxu0 0
        %837 = vmatprep.subr.bf16.mxu0 0
        %838 = vmatpush1.bf16.msra.mxu0 0
        %839 = vmatprep.subr.bf16.mxu0 0
        %840 = vmatpush1.bf16.msra.mxu0 0
        %841 = vmatprep.subr.bf16.mxu0 0
        %842 = vmatpush1.bf16.msra.mxu0 0
        %843 = vmatprep.subr.bf16.mxu0 0
        %844 = vmatpush1.bf16.msra.mxu0 0
        %845 = vmatprep.subr.bf16.mxu0 0
        %846 = vmatpush1.bf16.msra.mxu0 0
        %847 = vmatprep.subr.bf16.mxu0 0
        %848 = vmatpush1.bf16.msra.mxu0 0
        %849 = vmatprep.subr.bf16.mxu0 0
        %850 = vmatpush1.bf16.msra.mxu0 0
        %851 = vmatprep.subr.bf16.mxu0 0
        %852 = vmatpush1.bf16.msra.mxu0 0
        %853 = vmatprep.subr.bf16.mxu0 0
        %854 = vmatpush1.bf16.msra.mxu0 0
        %855 = vmatprep.subr.bf16.mxu0 0
        %856 = vmatpush1.bf16.msra.mxu0 0
        %857 = vmatprep.subr.bf16.mxu0 0
        %858 = vmatpush1.bf16.msra.mxu0 0
        %859 = vmatprep.mubr.bf16.mxu0 0
        %860 = vmatmul.mubr.bf16.gmra.mrb[0].mxu0 %v819
        %v861 = vpop.f32.mrb[0].mxu0
        %v862 = vadd.f32 1e-06, %v861
        %v863 = vpop.f32.mrb[0].mxu0
        %v864 = vadd.f32 1e-06, %v863
        %v865 = vpop.f32.mrb[0].mxu0
        %v866 = vpop.f32.mrb[0].mxu0
        %867 = vdwg.mxu0
        %v868 = vrcp.pop %v862
        %v869 = vrcp.pop %v864
        %v870 = vmul.f32 %v816, %v868
        %v871 = vmul.f32 %v817, %v869
        %v872 = vpack.c.bf16 %v870, %v870
        %v873 = vpack.c.bf16 %v871, %v871
        %874 = vmatprep.subr.bf16.mxu0 %v416
        %875 = vmatpush1.bf16.xpose.msra.mxu0 %v415
        %876 = vmatprep.subr.bf16.mxu0 %v418
        %877 = vmatpush1.bf16.xpose.msra.mxu0 %v417
        %878 = vmatprep.subr.bf16.mxu0 0
        %879 = vmatpush1.bf16.xpose.msra.mxu0 0
        %880 = vmatprep.subr.bf16.mxu0 0
        %881 = vmatpush1.bf16.xpose.msra.mxu0 0
        %882 = vmatprep.subr.bf16.mxu0 0
        %883 = vmatpush1.bf16.xpose.msra.mxu0 0
        %884 = vmatprep.subr.bf16.mxu0 0
        %885 = vmatpush1.bf16.xpose.msra.mxu0 0
        %886 = vmatprep.subr.bf16.mxu0 0
        %887 = vmatpush1.bf16.xpose.msra.mxu0 0
        %888 = vmatprep.subr.bf16.mxu0 0
        %889 = vmatpush1.bf16.xpose.msra.mxu0 0
        %890 = vmatprep.subr.bf16.mxu0 0
        %891 = vmatpush1.bf16.xpose.msra.mxu0 0
        %892 = vmatprep.subr.bf16.mxu0 0
        %893 = vmatpush1.bf16.xpose.msra.mxu0 0
        %894 = vmatprep.subr.bf16.mxu0 0
        %895 = vmatpush1.bf16.xpose.msra.mxu0 0
        %896 = vmatprep.subr.bf16.mxu0 0
        %897 = vmatpush1.bf16.xpose.msra.mxu0 0
        %898 = vmatprep.subr.bf16.mxu0 0
        %899 = vmatpush1.bf16.xpose.msra.mxu0 0
        %900 = vmatprep.subr.bf16.mxu0 0
        %901 = vmatpush1.bf16.xpose.msra.mxu0 0
        %902 = vmatprep.subr.bf16.mxu0 0
        %903 = vmatpush1.bf16.xpose.msra.mxu0 0
        %904 = vmatprep.subr.bf16.mxu0 0
        %905 = vmatpush1.bf16.xpose.msra.mxu0 0
        %906 = vmatprep.mubr.bf16.mxu0 %v873
        %907 = vmatmul.mubr.bf16.gmra.mrb[0].mxu0 %v872
        %v908 = vpop.f32.mrb[0].mxu0
        %v909 = vadd.f32 0.0, %v908
        %v910 = vpop.f32.mrb[0].mxu0
        %v911 = vpop.f32.mrb[0].mxu0
        %v912 = vpop.f32.mrb[0].mxu0
        %913 = vdwg.mxu0
        %914 = vmatprep.subr.bf16.mxu0 %v873
        %915 = vmatpush1.bf16.xpose.msra.mxu0 %v872
        %916 = vmatprep.subr.bf16.mxu0 0
        %917 = vmatpush1.bf16.xpose.msra.mxu0 0
        %918 = vmatprep.subr.bf16.mxu0 0
        %919 = vmatpush1.bf16.xpose.msra.mxu0 0
        %920 = vmatprep.subr.bf16.mxu0 0
        %921 = vmatpush1.bf16.xpose.msra.mxu0 0
        %922 = vmatprep.subr.bf16.mxu0 0
        %923 = vmatpush1.bf16.xpose.msra.mxu0 0
        %924 = vmatprep.subr.bf16.mxu0 0
        %925 = vmatpush1.bf16.xpose.msra.mxu0 0
        %926 = vmatprep.subr.bf16.mxu0 0
        %927 = vmatpush1.bf16.xpose.msra.mxu0 0
        %928 = vmatprep.subr.bf16.mxu0 0
        %929 = vmatpush1.bf16.xpose.msra.mxu0 0
        %930 = vmatprep.subr.bf16.mxu0 0
        %931 = vmatpush1.bf16.xpose.msra.mxu0 0
        %932 = vmatprep.subr.bf16.mxu0 0
        %933 = vmatpush1.bf16.xpose.msra.mxu0 0
        %934 = vmatprep.subr.bf16.mxu0 0
        %935 = vmatpush1.bf16.xpose.msra.mxu0 0
        %936 = vmatprep.subr.bf16.mxu0 0
        %937 = vmatpush1.bf16.xpose.msra.mxu0 0
        %938 = vmatprep.subr.bf16.mxu0 0
        %939 = vmatpush1.bf16.xpose.msra.mxu0 0
        %940 = vmatprep.subr.bf16.mxu0 0
        %941 = vmatpush1.bf16.xpose.msra.mxu0 0
        %942 = vmatprep.subr.bf16.mxu0 0
        %943 = vmatpush1.bf16.xpose.msra.mxu0 0
        %944 = vmatprep.subr.bf16.mxu0 0
        %945 = vmatpush1.bf16.xpose.msra.mxu0 0
        %946 = vmatprep.mubr.bf16.mxu0 %v873
        %947 = vmatmul.mubr.bf16.gmra.mrb[0].mxu0 %v872
        %v948 = vpop.f32.mrb[0].mxu0
        %v949 = vadd.f32 0.0, %v948
        %v950 = vpop.f32.mrb[0].mxu0
        %v951 = vpop.f32.mrb[0].mxu0
        %v952 = vpop.f32.mrb[0].mxu0
        %953 = vdwg.mxu0
        %v954 = vpack.c.bf16 %v949, %v949
        %v955 = vmul.f32 %v729, %v909
        %v957 = vsel %vm543, %v954, 0
        %v959 = vsel %vm547, %v730, 0
        %961 = vmatprep.subr.bf16.mxu0 0
        %962 = vmatpush1.bf16.msra.mxu0 %v959
        %963 = vmatprep.subr.bf16.mxu0 0
        %964 = vmatpush1.bf16.msra.mxu0 0
        %965 = vmatprep.subr.bf16.mxu0 0
        %966 = vmatpush1.bf16.msra.mxu0 0
        %967 = vmatprep.subr.bf16.mxu0 0
        %968 = vmatpush1.bf16.msra.mxu0 0
        %969 = vmatprep.subr.bf16.mxu0 0
        %970 = vmatpush1.bf16.msra.mxu0 0
        %971 = vmatprep.subr.bf16.mxu0 0
        %972 = vmatpush1.bf16.msra.mxu0 0
        %973 = vmatprep.subr.bf16.mxu0 0
        %974 = vmatpush1.bf16.msra.mxu0 0
        %975 = vmatprep.subr.bf16.mxu0 0
        %976 = vmatpush1.bf16.msra.mxu0 0
        %977 = vmatprep.subr.bf16.mxu0 0
        %978 = vmatpush1.bf16.msra.mxu0 0
        %979 = vmatprep.subr.bf16.mxu0 0
        %980 = vmatpush1.bf16.msra.mxu0 0
        %981 = vmatprep.subr.bf16.mxu0 0
        %982 = vmatpush1.bf16.msra.mxu0 0
        %983 = vmatprep.subr.bf16.mxu0 0
        %984 = vmatpush1.bf16.msra.mxu0 0
        %985 = vmatprep.subr.bf16.mxu0 0
        %986 = vmatpush1.bf16.msra.mxu0 0
        %987 = vmatprep.subr.bf16.mxu0 0
        %988 = vmatpush1.bf16.msra.mxu0 0
        %989 = vmatprep.subr.bf16.mxu0 0
        %990 = vmatpush1.bf16.msra.mxu0 0
        %991 = vmatprep.subr.bf16.mxu0 0
        %992 = vmatpush1.bf16.msra.mxu0 0
        %993 = vmatprep.mubr.bf16.mxu0 0
        %994 = vmatmul.mubr.bf16.gmra.mrb[0].mxu0 %v957
        %v995 = vpop.f32.mrb[0].mxu0
        %v996 = vadd.f32 1e-06, %v995
        %v997 = vpop.f32.mrb[0].mxu0
        %v998 = vpop.f32.mrb[0].mxu0
        %v999 = vpop.f32.mrb[0].mxu0
        %1000 = vdwg.mxu0
        %v1001 = vrcp.pop %v996
        %v1002 = vmul.f32 %v955, %v1001
        %v1003 = vpack.c.bf16 %v1002, %v1002
        %v1005 = vsel %vm347, %v1003, 0
        %1007 = vmatprep.subr.bf16.mxu0 %v416
        %1008 = vmatpush1.bf16.msra.mxu0 %v415
        %1009 = vmatprep.subr.bf16.mxu0 %v418
        %1010 = vmatpush1.bf16.msra.mxu0 %v417
        %1011 = vmatprep.subr.bf16.mxu0 0
        %1012 = vmatpush1.bf16.msra.mxu0 0
        %1013 = vmatprep.subr.bf16.mxu0 0
        %1014 = vmatpush1.bf16.msra.mxu0 0
        %1015 = vmatprep.subr.bf16.mxu0 0
        %1016 = vmatpush1.bf16.msra.mxu0 0
        %1017 = vmatprep.subr.bf16.mxu0 0
        %1018 = vmatpush1.bf16.msra.mxu0 0
        %1019 = vmatprep.subr.bf16.mxu0 0
        %1020 = vmatpush1.bf16.msra.mxu0 0
        %1021 = vmatprep.subr.bf16.mxu0 0
        %1022 = vmatpush1.bf16.msra.mxu0 0
        %1023 = vmatprep.subr.bf16.mxu0 0
        %1024 = vmatpush1.bf16.msra.mxu0 0
        %1025 = vmatprep.subr.bf16.mxu0 0
        %1026 = vmatpush1.bf16.msra.mxu0 0
        %1027 = vmatprep.subr.bf16.mxu0 0
        %1028 = vmatpush1.bf16.msra.mxu0 0
        %1029 = vmatprep.subr.bf16.mxu0 0
        %1030 = vmatpush1.bf16.msra.mxu0 0
        %1031 = vmatprep.subr.bf16.mxu0 0
        %1032 = vmatpush1.bf16.msra.mxu0 0
        %1033 = vmatprep.subr.bf16.mxu0 0
        %1034 = vmatpush1.bf16.msra.mxu0 0
        %1035 = vmatprep.subr.bf16.mxu0 0
        %1036 = vmatpush1.bf16.msra.mxu0 0
        %1037 = vmatprep.subr.bf16.mxu0 0
        %1038 = vmatpush1.bf16.msra.mxu0 0
        %1039 = vmatprep.mubr.bf16.mxu0 0
        %1040 = vmatmul.mubr.bf16.gmra.mrb[0].mxu0 %v1005
        %v1041 = vpop.f32.mrb[0].mxu0
        %v1042 = vadd.f32 0.0, %v1041
        %v1043 = vpop.f32.mrb[0].mxu0
        %v1044 = vadd.f32 0.0, %v1043
        %v1045 = vpop.f32.mrb[0].mxu0
        %v1046 = vpop.f32.mrb[0].mxu0
        %1047 = vdwg.mxu0
        %1048 = vmatprep.subr.bf16.mxu0 0
        %1049 = vmatpush1.bf16.xpose.msra.mxu0 %v1005
        %1050 = vmatprep.subr.bf16.mxu0 0
        %1051 = vmatpush1.bf16.xpose.msra.mxu0 0
        %1052 = vmatprep.subr.bf16.mxu0 0
        %1053 = vmatpush1.bf16.xpose.msra.mxu0 0
        %1054 = vmatprep.subr.bf16.mxu0 0
        %1055 = vmatpush1.bf16.xpose.msra.mxu0 0
        %1056 = vmatprep.subr.bf16.mxu0 0
        %1057 = vmatpush1.bf16.xpose.msra.mxu0 0
        %1058 = vmatprep.subr.bf16.mxu0 0
        %1059 = vmatpush1.bf16.xpose.msra.mxu0 0
        %1060 = vmatprep.subr.bf16.mxu0 0
        %1061 = vmatpush1.bf16.xpose.msra.mxu0 0
        %1062 = vmatprep.subr.bf16.mxu0 0
        %1063 = vmatpush1.bf16.xpose.msra.mxu0 0
        %1064 = vmatprep.subr.bf16.mxu0 0
        %1065 = vmatpush1.bf16.xpose.msra.mxu0 0
        %1066 = vmatprep.subr.bf16.mxu0 0
        %1067 = vmatpush1.bf16.xpose.msra.mxu0 0
        %1068 = vmatprep.subr.bf16.mxu0 0
        %1069 = vmatpush1.bf16.xpose.msra.mxu0 0
        %1070 = vmatprep.subr.bf16.mxu0 0
        %1071 = vmatpush1.bf16.xpose.msra.mxu0 0
        %1072 = vmatprep.subr.bf16.mxu0 0
        %1073 = vmatpush1.bf16.xpose.msra.mxu0 0
        %1074 = vmatprep.subr.bf16.mxu0 0
        %1075 = vmatpush1.bf16.xpose.msra.mxu0 0
        %1076 = vmatprep.subr.bf16.mxu0 0
        %1077 = vmatpush1.bf16.xpose.msra.mxu0 0
        %1078 = vmatprep.subr.bf16.mxu0 0
        %1079 = vmatpush1.bf16.xpose.msra.mxu0 0
        %1080 = vmatprep.mubr.bf16.mxu0 0
        %1081 = vmatmul.mubr.bf16.gmra.mrb[0].mxu0 %v1005
        %v1082 = vpop.f32.mrb[0].mxu0
        %v1083 = vadd.f32 0.0, %v1082
        %v1084 = vpop.f32.mrb[0].mxu0
        %v1085 = vpop.f32.mrb[0].mxu0
        %v1086 = vpop.f32.mrb[0].mxu0
        %1087 = vdwg.mxu0
        %v1088 = vpack.c.bf16 %v1083, %v1083
        %v1089 = vmul.f32 %v870, %v1042
        %v1090 = vmul.f32 %v871, %v1044
        %v1092 = vsel %vm543, %v1088, 0
        %v1095 = vsel %vm547, %v872, 0
        %v1098 = vsel %vm547, %v873, 0
        %1100 = vmatprep.subr.bf16.mxu0 %v1098
        %1101 = vmatpush1.bf16.msra.mxu0 %v1095
        %1102 = vmatprep.subr.bf16.mxu0 0
        %1103 = vmatpush1.bf16.msra.mxu0 0
        %1104 = vmatprep.subr.bf16.mxu0 0
        %1105 = vmatpush1.bf16.msra.mxu0 0
        %1106 = vmatprep.subr.bf16.mxu0 0
        %1107 = vmatpush1.bf16.msra.mxu0 0
        %1108 = vmatprep.subr.bf16.mxu0 0
        %1109 = vmatpush1.bf16.msra.mxu0 0
        %1110 = vmatprep.subr.bf16.mxu0 0
        %1111 = vmatpush1.bf16.msra.mxu0 0
        %1112 = vmatprep.subr.bf16.mxu0 0
        %1113 = vmatpush1.bf16.msra.mxu0 0
        %1114 = vmatprep.subr.bf16.mxu0 0
        %1115 = vmatpush1.bf16.msra.mxu0 0
        %1116 = vmatprep.subr.bf16.mxu0 0
        %1117 = vmatpush1.bf16.msra.mxu0 0
        %1118 = vmatprep.subr.bf16.mxu0 0
        %1119 = vmatpush1.bf16.msra.mxu0 0
        %1120 = vmatprep.subr.bf16.mxu0 0
        %1121 = vmatpush1.bf16.msra.mxu0 0
        %1122 = vmatprep.subr.bf16.mxu0 0
        %1123 = vmatpush1.bf16.msra.mxu0 0
        %1124 = vmatprep.subr.bf16.mxu0 0
        %1125 = vmatpush1.bf16.msra.mxu0 0
        %1126 = vmatprep.subr.bf16.mxu0 0
        %1127 = vmatpush1.bf16.msra.mxu0 0
        %1128 = vmatprep.subr.bf16.mxu0 0
        %1129 = vmatpush1.bf16.msra.mxu0 0
        %1130 = vmatprep.subr.bf16.mxu0 0
        %1131 = vmatpush1.bf16.msra.mxu0 0
        %1132 = vmatprep.mubr.bf16.mxu0 0
        %1133 = vmatmul.mubr.bf16.gmra.mrb[0].mxu0 %v1092
        %v1134 = vpop.f32.mrb[0].mxu0
        %v1135 = vadd.f32 1e-06, %v1134
        %v1136 = vpop.f32.mrb[0].mxu0
        %v1137 = vadd.f32 1e-06, %v1136
        %v1138 = vpop.f32.mrb[0].mxu0
        %v1139 = vpop.f32.mrb[0].mxu0
        %1140 = vdwg.mxu0
        %v1141 = vrcp.pop %v1135
        %v1142 = vrcp.pop %v1137
        %v1143 = vmul.f32 %v1089, %v1141
        %v1144 = vmul.f32 %v1090, %v1142
        %v1145 = vpack.c.bf16 %v1143, %v1143
        %v1146 = vpack.c.bf16 %v1144, %v1144
        %1147 = vmatprep.subr.bf16.mxu0 %v416
        %1148 = vmatpush1.bf16.xpose.msra.mxu0 %v415
        %1149 = vmatprep.subr.bf16.mxu0 %v418
        %1150 = vmatpush1.bf16.xpose.msra.mxu0 %v417
        %1151 = vmatprep.subr.bf16.mxu0 0
        %1152 = vmatpush1.bf16.xpose.msra.mxu0 0
        %1153 = vmatprep.subr.bf16.mxu0 0
        %1154 = vmatpush1.bf16.xpose.msra.mxu0 0
        %1155 = vmatprep.subr.bf16.mxu0 0
        %1156 = vmatpush1.bf16.xpose.msra.mxu0 0
        %1157 = vmatprep.subr.bf16.mxu0 0
        %1158 = vmatpush1.bf16.xpose.msra.mxu0 0
        %1159 = vmatprep.subr.bf16.mxu0 0
        %1160 = vmatpush1.bf16.xpose.msra.mxu0 0
        %1161 = vmatprep.subr.bf16.mxu0 0
        %1162 = vmatpush1.bf16.xpose.msra.mxu0 0
        %1163 = vmatprep.subr.bf16.mxu0 0
        %1164 = vmatpush1.bf16.xpose.msra.mxu0 0
        %1165 = vmatprep.subr.bf16.mxu0 0
        %1166 = vmatpush1.bf16.xpose.msra.mxu0 0
        %1167 = vmatprep.subr.bf16.mxu0 0
        %1168 = vmatpush1.bf16.xpose.msra.mxu0 0
        %1169 = vmatprep.subr.bf16.mxu0 0
        %1170 = vmatpush1.bf16.xpose.msra.mxu0 0
        %1171 = vmatprep.subr.bf16.mxu0 0
        %1172 = vmatpush1.bf16.xpose.msra.mxu0 0
        %1173 = vmatprep.subr.bf16.mxu0 0
        %1174 = vmatpush1.bf16.xpose.msra.mxu0 0
        %1175 = vmatprep.subr.bf16.mxu0 0
        %1176 = vmatpush1.bf16.xpose.msra.mxu0 0
        %1177 = vmatprep.subr.bf16.mxu0 0
        %1178 = vmatpush1.bf16.xpose.msra.mxu0 0
        %1179 = vmatprep.mubr.bf16.mxu0 %v1146
        %1180 = vmatmul.mubr.bf16.gmra.mrb[0].mxu0 %v1145
        %v1181 = vpop.f32.mrb[0].mxu0
        %v1182 = vadd.f32 0.0, %v1181
        %v1183 = vpop.f32.mrb[0].mxu0
        %v1184 = vpop.f32.mrb[0].mxu0
        %v1185 = vpop.f32.mrb[0].mxu0
        %1186 = vdwg.mxu0
        %1187 = vmatprep.subr.bf16.mxu0 %v1146
        %1188 = vmatpush1.bf16.xpose.msra.mxu0 %v1145
        %1189 = vmatprep.subr.bf16.mxu0 0
        %1190 = vmatpush1.bf16.xpose.msra.mxu0 0
        %1191 = vmatprep.subr.bf16.mxu0 0
        %1192 = vmatpush1.bf16.xpose.msra.mxu0 0
        %1193 = vmatprep.subr.bf16.mxu0 0
        %1194 = vmatpush1.bf16.xpose.msra.mxu0 0
        %1195 = vmatprep.subr.bf16.mxu0 0
        %1196 = vmatpush1.bf16.xpose.msra.mxu0 0
        %1197 = vmatprep.subr.bf16.mxu0 0
        %1198 = vmatpush1.bf16.xpose.msra.mxu0 0
        %1199 = vmatprep.subr.bf16.mxu0 0
        %1200 = vmatpush1.bf16.xpose.msra.mxu0 0
        %1201 = vmatprep.subr.bf16.mxu0 0
        %1202 = vmatpush1.bf16.xpose.msra.mxu0 0
        %1203 = vmatprep.subr.bf16.mxu0 0
        %1204 = vmatpush1.bf16.xpose.msra.mxu0 0
        %1205 = vmatprep.subr.bf16.mxu0 0
        %1206 = vmatpush1.bf16.xpose.msra.mxu0 0
        %1207 = vmatprep.subr.bf16.mxu0 0
        %1208 = vmatpush1.bf16.xpose.msra.mxu0 0
        %1209 = vmatprep.subr.bf16.mxu0 0
        %1210 = vmatpush1.bf16.xpose.msra.mxu0 0
        %1211 = vmatprep.subr.bf16.mxu0 0
        %1212 = vmatpush1.bf16.xpose.msra.mxu0 0
        %1213 = vmatprep.subr.bf16.mxu0 0
        %1214 = vmatpush1.bf16.xpose.msra.mxu0 0
        %1215 = vmatprep.subr.bf16.mxu0 0
        %1216 = vmatpush1.bf16.xpose.msra.mxu0 0
        %1217 = vmatprep.subr.bf16.mxu0 0
        %1218 = vmatpush1.bf16.xpose.msra.mxu0 0
        %1219 = vmatprep.mubr.bf16.mxu0 %v1146
        %1220 = vmatmul.mubr.bf16.gmra.mrb[0].mxu0 %v1145
        %v1221 = vpop.f32.mrb[0].mxu0
        %v1222 = vadd.f32 0.0, %v1221
        %v1223 = vpop.f32.mrb[0].mxu0
        %v1224 = vpop.f32.mrb[0].mxu0
        %v1225 = vpop.f32.mrb[0].mxu0
        %1226 = vdwg.mxu0
        %v1227 = vpack.c.bf16 %v1222, %v1222
        %v1228 = vmul.f32 %v1002, %v1182
        %v1230 = vsel %vm543, %v1227, 0
        %v1232 = vsel %vm547, %v1003, 0
        %1234 = vmatprep.subr.bf16.mxu0 0
        %1235 = vmatpush1.bf16.msra.mxu0 %v1232
        %1236 = vmatprep.subr.bf16.mxu0 0
        %1237 = vmatpush1.bf16.msra.mxu0 0
        %1238 = vmatprep.subr.bf16.mxu0 0
        %1239 = vmatpush1.bf16.msra.mxu0 0
        %1240 = vmatprep.subr.bf16.mxu0 0
        %1241 = vmatpush1.bf16.msra.mxu0 0
        %1242 = vmatprep.subr.bf16.mxu0 0
        %1243 = vmatpush1.bf16.msra.mxu0 0
        %1244 = vmatprep.subr.bf16.mxu0 0
        %1245 = vmatpush1.bf16.msra.mxu0 0
        %1246 = vmatprep.subr.bf16.mxu0 0
        %1247 = vmatpush1.bf16.msra.mxu0 0
        %1248 = vmatprep.subr.bf16.mxu0 0
        %1249 = vmatpush1.bf16.msra.mxu0 0
        %1250 = vmatprep.subr.bf16.mxu0 0
        %1251 = vmatpush1.bf16.msra.mxu0 0
        %1252 = vmatprep.subr.bf16.mxu0 0
        %1253 = vmatpush1.bf16.msra.mxu0 0
        %1254 = vmatprep.subr.bf16.mxu0 0
        %1255 = vmatpush1.bf16.msra.mxu0 0
        %1256 = vmatprep.subr.bf16.mxu0 0
        %1257 = vmatpush1.bf16.msra.mxu0 0
        %1258 = vmatprep.subr.bf16.mxu0 0
        %1259 = vmatpush1.bf16.msra.mxu0 0
        %1260 = vmatprep.subr.bf16.mxu0 0
        %1261 = vmatpush1.bf16.msra.mxu0 0
        %1262 = vmatprep.subr.bf16.mxu0 0
        %1263 = vmatpush1.bf16.msra.mxu0 0
        %1264 = vmatprep.subr.bf16.mxu0 0
        %1265 = vmatpush1.bf16.msra.mxu0 0
        %1266 = vmatprep.mubr.bf16.mxu0 0
        %1267 = vmatmul.mubr.bf16.gmra.mrb[0].mxu0 %v1230
        %v1268 = vpop.f32.mrb[0].mxu0
        %v1269 = vadd.f32 1e-06, %v1268
        %v1270 = vpop.f32.mrb[0].mxu0
        %v1271 = vpop.f32.mrb[0].mxu0
        %v1272 = vpop.f32.mrb[0].mxu0
        %1273 = vdwg.mxu0
        %v1274 = vrcp.pop %v1269
        %v1275 = vmul.f32 %v1228, %v1274
        %v1276 = vpack.c.bf16 %v1275, %v1275
        %v1278 = vsel %vm347, %v1276, 0
        %1280 = vmatprep.subr.bf16.mxu0 %v416
        %1281 = vmatpush1.bf16.msra.mxu0 %v415
        %1282 = vmatprep.subr.bf16.mxu0 %v418
        %1283 = vmatpush1.bf16.msra.mxu0 %v417
        %1284 = vmatprep.subr.bf16.mxu0 0
        %1285 = vmatpush1.bf16.msra.mxu0 0
        %1286 = vmatprep.subr.bf16.mxu0 0
        %1287 = vmatpush1.bf16.msra.mxu0 0
        %1288 = vmatprep.subr.bf16.mxu0 0
        %1289 = vmatpush1.bf16.msra.mxu0 0
        %1290 = vmatprep.subr.bf16.mxu0 0
        %1291 = vmatpush1.bf16.msra.mxu0 0
        %1292 = vmatprep.subr.bf16.mxu0 0
        %1293 = vmatpush1.bf16.msra.mxu0 0
        %1294 = vmatprep.subr.bf16.mxu0 0
        %1295 = vmatpush1.bf16.msra.mxu0 0
        %1296 = vmatprep.subr.bf16.mxu0 0
        %1297 = vmatpush1.bf16.msra.mxu0 0
        %1298 = vmatprep.subr.bf16.mxu0 0
        %1299 = vmatpush1.bf16.msra.mxu0 0
        %1300 = vmatprep.subr.bf16.mxu0 0
        %1301 = vmatpush1.bf16.msra.mxu0 0
        %1302 = vmatprep.subr.bf16.mxu0 0
        %1303 = vmatpush1.bf16.msra.mxu0 0
        %1304 = vmatprep.subr.bf16.mxu0 0
        %1305 = vmatpush1.bf16.msra.mxu0 0
        %1306 = vmatprep.subr.bf16.mxu0 0
        %1307 = vmatpush1.bf16.msra.mxu0 0
        %1308 = vmatprep.subr.bf16.mxu0 0
        %1309 = vmatpush1.bf16.msra.mxu0 0
        %1310 = vmatprep.subr.bf16.mxu0 0
        %1311 = vmatpush1.bf16.msra.mxu0 0
        %1312 = vmatprep.mubr.bf16.mxu0 0
        %1313 = vmatmul.mubr.bf16.gmra.mrb[0].mxu0 %v1278
        %v1314 = vpop.f32.mrb[0].mxu0
        %v1315 = vadd.f32 0.0, %v1314
        %v1316 = vpop.f32.mrb[0].mxu0
        %v1317 = vadd.f32 0.0, %v1316
        %v1318 = vpop.f32.mrb[0].mxu0
        %v1319 = vpop.f32.mrb[0].mxu0
        %1320 = vdwg.mxu0
        %1321 = vmatprep.subr.bf16.mxu0 0
        %1322 = vmatpush1.bf16.xpose.msra.mxu0 %v1278
        %1323 = vmatprep.subr.bf16.mxu0 0
        %1324 = vmatpush1.bf16.xpose.msra.mxu0 0
        %1325 = vmatprep.subr.bf16.mxu0 0
        %1326 = vmatpush1.bf16.xpose.msra.mxu0 0
        %1327 = vmatprep.subr.bf16.mxu0 0
        %1328 = vmatpush1.bf16.xpose.msra.mxu0 0
        %1329 = vmatprep.subr.bf16.mxu0 0
        %1330 = vmatpush1.bf16.xpose.msra.mxu0 0
        %1331 = vmatprep.subr.bf16.mxu0 0
        %1332 = vmatpush1.bf16.xpose.msra.mxu0 0
        %1333 = vmatprep.subr.bf16.mxu0 0
        %1334 = vmatpush1.bf16.xpose.msra.mxu0 0
        %1335 = vmatprep.subr.bf16.mxu0 0
        %1336 = vmatpush1.bf16.xpose.msra.mxu0 0
        %1337 = vmatprep.subr.bf16.mxu0 0
        %1338 = vmatpush1.bf16.xpose.msra.mxu0 0
        %1339 = vmatprep.subr.bf16.mxu0 0
        %1340 = vmatpush1.bf16.xpose.msra.mxu0 0
        %1341 = vmatprep.subr.bf16.mxu0 0
        %1342 = vmatpush1.bf16.xpose.msra.mxu0 0
        %1343 = vmatprep.subr.bf16.mxu0 0
        %1344 = vmatpush1.bf16.xpose.msra.mxu0 0
        %1345 = vmatprep.subr.bf16.mxu0 0
        %1346 = vmatpush1.bf16.xpose.msra.mxu0 0
        %1347 = vmatprep.subr.bf16.mxu0 0
        %1348 = vmatpush1.bf16.xpose.msra.mxu0 0
        %1349 = vmatprep.subr.bf16.mxu0 0
        %1350 = vmatpush1.bf16.xpose.msra.mxu0 0
        %1351 = vmatprep.subr.bf16.mxu0 0
        %1352 = vmatpush1.bf16.xpose.msra.mxu0 0
        %1353 = vmatprep.mubr.bf16.mxu0 0
        %1354 = vmatmul.mubr.bf16.gmra.mrb[0].mxu0 %v1278
        %v1355 = vpop.f32.mrb[0].mxu0
        %v1356 = vadd.f32 0.0, %v1355
        %v1357 = vpop.f32.mrb[0].mxu0
        %v1358 = vpop.f32.mrb[0].mxu0
        %v1359 = vpop.f32.mrb[0].mxu0
        %1360 = vdwg.mxu0
        %v1361 = vpack.c.bf16 %v1356, %v1356
        %v1362 = vmul.f32 %v1143, %v1315
        %v1363 = vmul.f32 %v1144, %v1317
        %v1365 = vsel %vm543, %v1361, 0
        %v1368 = vsel %vm547, %v1145, 0
        %v1371 = vsel %vm547, %v1146, 0
        %1373 = vmatprep.subr.bf16.mxu0 %v1371
        %1374 = vmatpush1.bf16.msra.mxu0 %v1368
        %1375 = vmatprep.subr.bf16.mxu0 0
        %1376 = vmatpush1.bf16.msra.mxu0 0
        %1377 = vmatprep.subr.bf16.mxu0 0
        %1378 = vmatpush1.bf16.msra.mxu0 0
        %1379 = vmatprep.subr.bf16.mxu0 0
        %1380 = vmatpush1.bf16.msra.mxu0 0
        %1381 = vmatprep.subr.bf16.mxu0 0
        %1382 = vmatpush1.bf16.msra.mxu0 0
        %1383 = vmatprep.subr.bf16.mxu0 0
        %1384 = vmatpush1.bf16.msra.mxu0 0
        %1385 = vmatprep.subr.bf16.mxu0 0
        %1386 = vmatpush1.bf16.msra.mxu0 0
        %1387 = vmatprep.subr.bf16.mxu0 0
        %1388 = vmatpush1.bf16.msra.mxu0 0
        %1389 = vmatprep.subr.bf16.mxu0 0
        %1390 = vmatpush1.bf16.msra.mxu0 0
        %1391 = vmatprep.subr.bf16.mxu0 0
        %1392 = vmatpush1.bf16.msra.mxu0 0
        %1393 = vmatprep.subr.bf16.mxu0 0
        %1394 = vmatpush1.bf16.msra.mxu0 0
        %1395 = vmatprep.subr.bf16.mxu0 0
        %1396 = vmatpush1.bf16.msra.mxu0 0
        %1397 = vmatprep.subr.bf16.mxu0 0
        %1398 = vmatpush1.bf16.msra.mxu0 0
        %1399 = vmatprep.subr.bf16.mxu0 0
        %1400 = vmatpush1.bf16.msra.mxu0 0
        %1401 = vmatprep.subr.bf16.mxu0 0
        %1402 = vmatpush1.bf16.msra.mxu0 0
        %1403 = vmatprep.subr.bf16.mxu0 0
        %1404 = vmatpush1.bf16.msra.mxu0 0
        %1405 = vmatprep.mubr.bf16.mxu0 0
        %1406 = vmatmul.mubr.bf16.gmra.mrb[0].mxu0 %v1365
        %v1407 = vpop.f32.mrb[0].mxu0
        %v1408 = vadd.f32 1e-06, %v1407
        %v1409 = vpop.f32.mrb[0].mxu0
        %v1410 = vadd.f32 1e-06, %v1409
        %v1411 = vpop.f32.mrb[0].mxu0
        %v1412 = vpop.f32.mrb[0].mxu0
        %1413 = vdwg.mxu0
        %v1414 = vrcp.pop %v1408
        %v1415 = vrcp.pop %v1410
        %v1416 = vmul.f32 %v1362, %v1414
        %v1417 = vmul.f32 %v1363, %v1415
        %v1418 = vpack.c.bf16 %v1416, %v1416
        %v1419 = vpack.c.bf16 %v1417, %v1417
        %1420 = vmatprep.subr.bf16.mxu0 %v416
        %1421 = vmatpush1.bf16.xpose.msra.mxu0 %v415
        %1422 = vmatprep.subr.bf16.mxu0 %v418
        %1423 = vmatpush1.bf16.xpose.msra.mxu0 %v417
        %1424 = vmatprep.subr.bf16.mxu0 0
        %1425 = vmatpush1.bf16.xpose.msra.mxu0 0
        %1426 = vmatprep.subr.bf16.mxu0 0
        %1427 = vmatpush1.bf16.xpose.msra.mxu0 0
        %1428 = vmatprep.subr.bf16.mxu0 0
        %1429 = vmatpush1.bf16.xpose.msra.mxu0 0
        %1430 = vmatprep.subr.bf16.mxu0 0
        %1431 = vmatpush1.bf16.xpose.msra.mxu0 0
        %1432 = vmatprep.subr.bf16.mxu0 0
        %1433 = vmatpush1.bf16.xpose.msra.mxu0 0
        %1434 = vmatprep.subr.bf16.mxu0 0
        %1435 = vmatpush1.bf16.xpose.msra.mxu0 0
        %1436 = vmatprep.subr.bf16.mxu0 0
        %1437 = vmatpush1.bf16.xpose.msra.mxu0 0
        %1438 = vmatprep.subr.bf16.mxu0 0
        %1439 = vmatpush1.bf16.xpose.msra.mxu0 0
        %1440 = vmatprep.subr.bf16.mxu0 0
        %1441 = vmatpush1.bf16.xpose.msra.mxu0 0
        %1442 = vmatprep.subr.bf16.mxu0 0
        %1443 = vmatpush1.bf16.xpose.msra.mxu0 0
        %1444 = vmatprep.subr.bf16.mxu0 0
        %1445 = vmatpush1.bf16.xpose.msra.mxu0 0
        %1446 = vmatprep.subr.bf16.mxu0 0
        %1447 = vmatpush1.bf16.xpose.msra.mxu0 0
        %1448 = vmatprep.subr.bf16.mxu0 0
        %1449 = vmatpush1.bf16.xpose.msra.mxu0 0
        %1450 = vmatprep.subr.bf16.mxu0 0
        %1451 = vmatpush1.bf16.xpose.msra.mxu0 0
        %1452 = vmatprep.mubr.bf16.mxu0 %v1419
        %1453 = vmatmul.mubr.bf16.gmra.mrb[0].mxu0 %v1418
        %v1454 = vpop.f32.mrb[0].mxu0
        %v1455 = vadd.f32 0.0, %v1454
        %v1456 = vpop.f32.mrb[0].mxu0
        %v1457 = vpop.f32.mrb[0].mxu0
        %v1458 = vpop.f32.mrb[0].mxu0
        %1459 = vdwg.mxu0
        %1460 = vmatprep.subr.bf16.mxu0 %v1419
        %1461 = vmatpush1.bf16.xpose.msra.mxu0 %v1418
        %1462 = vmatprep.subr.bf16.mxu0 0
        %1463 = vmatpush1.bf16.xpose.msra.mxu0 0
        %1464 = vmatprep.subr.bf16.mxu0 0
        %1465 = vmatpush1.bf16.xpose.msra.mxu0 0
        %1466 = vmatprep.subr.bf16.mxu0 0
        %1467 = vmatpush1.bf16.xpose.msra.mxu0 0
        %1468 = vmatprep.subr.bf16.mxu0 0
        %1469 = vmatpush1.bf16.xpose.msra.mxu0 0
        %1470 = vmatprep.subr.bf16.mxu0 0
        %1471 = vmatpush1.bf16.xpose.msra.mxu0 0
        %1472 = vmatprep.subr.bf16.mxu0 0
        %1473 = vmatpush1.bf16.xpose.msra.mxu0 0
        %1474 = vmatprep.subr.bf16.mxu0 0
        %1475 = vmatpush1.bf16.xpose.msra.mxu0 0
        %1476 = vmatprep.subr.bf16.mxu0 0
        %1477 = vmatpush1.bf16.xpose.msra.mxu0 0
        %1478 = vmatprep.subr.bf16.mxu0 0
        %1479 = vmatpush1.bf16.xpose.msra.mxu0 0
        %1480 = vmatprep.subr.bf16.mxu0 0
        %1481 = vmatpush1.bf16.xpose.msra.mxu0 0
        %1482 = vmatprep.subr.bf16.mxu0 0
        %1483 = vmatpush1.bf16.xpose.msra.mxu0 0
        %1484 = vmatprep.subr.bf16.mxu0 0
        %1485 = vmatpush1.bf16.xpose.msra.mxu0 0
        %1486 = vmatprep.subr.bf16.mxu0 0
        %1487 = vmatpush1.bf16.xpose.msra.mxu0 0
        %1488 = vmatprep.subr.bf16.mxu0 0
        %1489 = vmatpush1.bf16.xpose.msra.mxu0 0
        %1490 = vmatprep.subr.bf16.mxu0 0
        %1491 = vmatpush1.bf16.xpose.msra.mxu0 0
        %1492 = vmatprep.mubr.bf16.mxu0 %v1419
        %1493 = vmatmul.mubr.bf16.gmra.mrb[0].mxu0 %v1418
        %v1494 = vpop.f32.mrb[0].mxu0
        %v1495 = vadd.f32 0.0, %v1494
        %v1496 = vpop.f32.mrb[0].mxu0
        %v1497 = vpop.f32.mrb[0].mxu0
        %v1498 = vpop.f32.mrb[0].mxu0
        %1499 = vdwg.mxu0
        %v1500 = vpack.c.bf16 %v1495, %v1495
        %v1501 = vmul.f32 %v1275, %v1455
        %v1503 = vsel %vm543, %v1500, 0
        %v1505 = vsel %vm547, %v1276, 0
        %1507 = vmatprep.subr.bf16.mxu0 0
        %1508 = vmatpush1.bf16.msra.mxu0 %v1505
        %1509 = vmatprep.subr.bf16.mxu0 0
        %1510 = vmatpush1.bf16.msra.mxu0 0
        %1511 = vmatprep.subr.bf16.mxu0 0
        %1512 = vmatpush1.bf16.msra.mxu0 0
        %1513 = vmatprep.subr.bf16.mxu0 0
        %1514 = vmatpush1.bf16.msra.mxu0 0
        %1515 = vmatprep.subr.bf16.mxu0 0
        %1516 = vmatpush1.bf16.msra.mxu0 0
        %1517 = vmatprep.subr.bf16.mxu0 0
        %1518 = vmatpush1.bf16.msra.mxu0 0
        %1519 = vmatprep.subr.bf16.mxu0 0
        %1520 = vmatpush1.bf16.msra.mxu0 0
        %1521 = vmatprep.subr.bf16.mxu0 0
        %1522 = vmatpush1.bf16.msra.mxu0 0
        %1523 = vmatprep.subr.bf16.mxu0 0
        %1524 = vmatpush1.bf16.msra.mxu0 0
        %1525 = vmatprep.subr.bf16.mxu0 0
        %1526 = vmatpush1.bf16.msra.mxu0 0
        %1527 = vmatprep.subr.bf16.mxu0 0
        %1528 = vmatpush1.bf16.msra.mxu0 0
        %1529 = vmatprep.subr.bf16.mxu0 0
        %1530 = vmatpush1.bf16.msra.mxu0 0
        %1531 = vmatprep.subr.bf16.mxu0 0
        %1532 = vmatpush1.bf16.msra.mxu0 0
        %1533 = vmatprep.subr.bf16.mxu0 0
        %1534 = vmatpush1.bf16.msra.mxu0 0
        %1535 = vmatprep.subr.bf16.mxu0 0
        %1536 = vmatpush1.bf16.msra.mxu0 0
        %1537 = vmatprep.subr.bf16.mxu0 0
        %1538 = vmatpush1.bf16.msra.mxu0 0
        %1539 = vmatprep.mubr.bf16.mxu0 0
        %1540 = vmatmul.mubr.bf16.gmra.mrb[0].mxu0 %v1503
        %v1541 = vpop.f32.mrb[0].mxu0
        %v1542 = vadd.f32 1e-06, %v1541
        %v1543 = vpop.f32.mrb[0].mxu0
        %v1544 = vpop.f32.mrb[0].mxu0
        %v1545 = vpop.f32.mrb[0].mxu0
        %1546 = vdwg.mxu0
        %v1547 = vrcp.pop %v1542
        %v1548 = vmul.f32 %v1501, %v1547
        %v1549 = vpack.c.bf16 %v1548, %v1548
        %v1551 = vsel %vm347, %v1549, 0
        %1553 = vmatprep.subr.bf16.mxu0 %v416
        %1554 = vmatpush1.bf16.msra.mxu0 %v415
        %1555 = vmatprep.subr.bf16.mxu0 %v418
        %1556 = vmatpush1.bf16.msra.mxu0 %v417
        %1557 = vmatprep.subr.bf16.mxu0 0
        %1558 = vmatpush1.bf16.msra.mxu0 0
        %1559 = vmatprep.subr.bf16.mxu0 0
        %1560 = vmatpush1.bf16.msra.mxu0 0
        %1561 = vmatprep.subr.bf16.mxu0 0
        %1562 = vmatpush1.bf16.msra.mxu0 0
        %1563 = vmatprep.subr.bf16.mxu0 0
        %1564 = vmatpush1.bf16.msra.mxu0 0
        %1565 = vmatprep.subr.bf16.mxu0 0
        %1566 = vmatpush1.bf16.msra.mxu0 0
        %1567 = vmatprep.subr.bf16.mxu0 0
        %1568 = vmatpush1.bf16.msra.mxu0 0
        %1569 = vmatprep.subr.bf16.mxu0 0
        %1570 = vmatpush1.bf16.msra.mxu0 0
        %1571 = vmatprep.subr.bf16.mxu0 0
        %1572 = vmatpush1.bf16.msra.mxu0 0
        %1573 = vmatprep.subr.bf16.mxu0 0
        %1574 = vmatpush1.bf16.msra.mxu0 0
        %1575 = vmatprep.subr.bf16.mxu0 0
        %1576 = vmatpush1.bf16.msra.mxu0 0
        %1577 = vmatprep.subr.bf16.mxu0 0
        %1578 = vmatpush1.bf16.msra.mxu0 0
        %1579 = vmatprep.subr.bf16.mxu0 0
        %1580 = vmatpush1.bf16.msra.mxu0 0
        %1581 = vmatprep.subr.bf16.mxu0 0
        %1582 = vmatpush1.bf16.msra.mxu0 0
        %1583 = vmatprep.subr.bf16.mxu0 0
        %1584 = vmatpush1.bf16.msra.mxu0 0
        %1585 = vmatprep.mubr.bf16.mxu0 0
        %1586 = vmatmul.mubr.bf16.gmra.mrb[0].mxu0 %v1551
        %v1587 = vpop.f32.mrb[0].mxu0
        %v1588 = vadd.f32 0.0, %v1587
        %v1589 = vpop.f32.mrb[0].mxu0
        %v1590 = vadd.f32 0.0, %v1589
        %v1591 = vpop.f32.mrb[0].mxu0
        %v1592 = vpop.f32.mrb[0].mxu0
        %1593 = vdwg.mxu0
        %1594 = vmatprep.subr.bf16.mxu0 0
        %1595 = vmatpush1.bf16.xpose.msra.mxu0 %v1551
        %1596 = vmatprep.subr.bf16.mxu0 0
        %1597 = vmatpush1.bf16.xpose.msra.mxu0 0
        %1598 = vmatprep.subr.bf16.mxu0 0
        %1599 = vmatpush1.bf16.xpose.msra.mxu0 0
        %1600 = vmatprep.subr.bf16.mxu0 0
        %1601 = vmatpush1.bf16.xpose.msra.mxu0 0
        %1602 = vmatprep.subr.bf16.mxu0 0
        %1603 = vmatpush1.bf16.xpose.msra.mxu0 0
        %1604 = vmatprep.subr.bf16.mxu0 0
        %1605 = vmatpush1.bf16.xpose.msra.mxu0 0
        %1606 = vmatprep.subr.bf16.mxu0 0
        %1607 = vmatpush1.bf16.xpose.msra.mxu0 0
        %1608 = vmatprep.subr.bf16.mxu0 0
        %1609 = vmatpush1.bf16.xpose.msra.mxu0 0
        %1610 = vmatprep.subr.bf16.mxu0 0
        %1611 = vmatpush1.bf16.xpose.msra.mxu0 0
        %1612 = vmatprep.subr.bf16.mxu0 0
        %1613 = vmatpush1.bf16.xpose.msra.mxu0 0
        %1614 = vmatprep.subr.bf16.mxu0 0
        %1615 = vmatpush1.bf16.xpose.msra.mxu0 0
        %1616 = vmatprep.subr.bf16.mxu0 0
        %1617 = vmatpush1.bf16.xpose.msra.mxu0 0
        %1618 = vmatprep.subr.bf16.mxu0 0
        %1619 = vmatpush1.bf16.xpose.msra.mxu0 0
        %1620 = vmatprep.subr.bf16.mxu0 0
        %1621 = vmatpush1.bf16.xpose.msra.mxu0 0
        %1622 = vmatprep.subr.bf16.mxu0 0
        %1623 = vmatpush1.bf16.xpose.msra.mxu0 0
        %1624 = vmatprep.subr.bf16.mxu0 0
        %1625 = vmatpush1.bf16.xpose.msra.mxu0 0
        %1626 = vmatprep.mubr.bf16.mxu0 0
        %1627 = vmatmul.mubr.bf16.gmra.mrb[0].mxu0 %v1551
        %v1628 = vpop.f32.mrb[0].mxu0
        %v1629 = vadd.f32 0.0, %v1628
        %v1630 = vpop.f32.mrb[0].mxu0
        %v1631 = vpop.f32.mrb[0].mxu0
        %v1632 = vpop.f32.mrb[0].mxu0
        %1633 = vdwg.mxu0
        %v1634 = vpack.c.bf16 %v1629, %v1629
        %v1635 = vmul.f32 %v1416, %v1588
        %v1636 = vmul.f32 %v1417, %v1590
        %v1638 = vsel %vm543, %v1634, 0
        %v1641 = vsel %vm547, %v1418, 0
        %v1644 = vsel %vm547, %v1419, 0
        %1646 = vmatprep.subr.bf16.mxu0 %v1644
        %1647 = vmatpush1.bf16.msra.mxu0 %v1641
        %1648 = vmatprep.subr.bf16.mxu0 0
        %1649 = vmatpush1.bf16.msra.mxu0 0
        %1650 = vmatprep.subr.bf16.mxu0 0
        %1651 = vmatpush1.bf16.msra.mxu0 0
        %1652 = vmatprep.subr.bf16.mxu0 0
        %1653 = vmatpush1.bf16.msra.mxu0 0
        %1654 = vmatprep.subr.bf16.mxu0 0
        %1655 = vmatpush1.bf16.msra.mxu0 0
        %1656 = vmatprep.subr.bf16.mxu0 0
        %1657 = vmatpush1.bf16.msra.mxu0 0
        %1658 = vmatprep.subr.bf16.mxu0 0
        %1659 = vmatpush1.bf16.msra.mxu0 0
        %1660 = vmatprep.subr.bf16.mxu0 0
        %1661 = vmatpush1.bf16.msra.mxu0 0
        %1662 = vmatprep.subr.bf16.mxu0 0
        %1663 = vmatpush1.bf16.msra.mxu0 0
        %1664 = vmatprep.subr.bf16.mxu0 0
        %1665 = vmatpush1.bf16.msra.mxu0 0
        %1666 = vmatprep.subr.bf16.mxu0 0
        %1667 = vmatpush1.bf16.msra.mxu0 0
        %1668 = vmatprep.subr.bf16.mxu0 0
        %1669 = vmatpush1.bf16.msra.mxu0 0
        %1670 = vmatprep.subr.bf16.mxu0 0
        %1671 = vmatpush1.bf16.msra.mxu0 0
        %1672 = vmatprep.subr.bf16.mxu0 0
        %1673 = vmatpush1.bf16.msra.mxu0 0
        %1674 = vmatprep.subr.bf16.mxu0 0
        %1675 = vmatpush1.bf16.msra.mxu0 0
        %1676 = vmatprep.subr.bf16.mxu0 0
        %1677 = vmatpush1.bf16.msra.mxu0 0
        %1678 = vmatprep.mubr.bf16.mxu0 0
        %1679 = vmatmul.mubr.bf16.gmra.mrb[0].mxu0 %v1638
        %v1680 = vpop.f32.mrb[0].mxu0
        %v1681 = vadd.f32 1e-06, %v1680
        %v1682 = vpop.f32.mrb[0].mxu0
        %v1683 = vadd.f32 1e-06, %v1682
        %v1684 = vpop.f32.mrb[0].mxu0
        %v1685 = vpop.f32.mrb[0].mxu0
        %1686 = vdwg.mxu0
        %v1687 = vrcp.pop %v1681
        %v1688 = vrcp.pop %v1683
        %v1689 = vmul.f32 %v1635, %v1687
        %v1690 = vmul.f32 %v1636, %v1688
        %v1691 = vpack.c.bf16 %v1689, %v1689
        %v1692 = vpack.c.bf16 %v1690, %v1690
        %1693 = vmatprep.subr.bf16.mxu0 %v416
        %1694 = vmatpush1.bf16.xpose.msra.mxu0 %v415
        %1695 = vmatprep.subr.bf16.mxu0 %v418
        %1696 = vmatpush1.bf16.xpose.msra.mxu0 %v417
        %1697 = vmatprep.subr.bf16.mxu0 0
        %1698 = vmatpush1.bf16.xpose.msra.mxu0 0
        %1699 = vmatprep.subr.bf16.mxu0 0
        %1700 = vmatpush1.bf16.xpose.msra.mxu0 0
        %1701 = vmatprep.subr.bf16.mxu0 0
        %1702 = vmatpush1.bf16.xpose.msra.mxu0 0
        %1703 = vmatprep.subr.bf16.mxu0 0
        %1704 = vmatpush1.bf16.xpose.msra.mxu0 0
        %1705 = vmatprep.subr.bf16.mxu0 0
        %1706 = vmatpush1.bf16.xpose.msra.mxu0 0
        %1707 = vmatprep.subr.bf16.mxu0 0
        %1708 = vmatpush1.bf16.xpose.msra.mxu0 0
        %1709 = vmatprep.subr.bf16.mxu0 0
        %1710 = vmatpush1.bf16.xpose.msra.mxu0 0
        %1711 = vmatprep.subr.bf16.mxu0 0
        %1712 = vmatpush1.bf16.xpose.msra.mxu0 0
        %1713 = vmatprep.subr.bf16.mxu0 0
        %1714 = vmatpush1.bf16.xpose.msra.mxu0 0
        %1715 = vmatprep.subr.bf16.mxu0 0
        %1716 = vmatpush1.bf16.xpose.msra.mxu0 0
        %1717 = vmatprep.subr.bf16.mxu0 0
        %1718 = vmatpush1.bf16.xpose.msra.mxu0 0
        %1719 = vmatprep.subr.bf16.mxu0 0
        %1720 = vmatpush1.bf16.xpose.msra.mxu0 0
        %1721 = vmatprep.subr.bf16.mxu0 0
        %1722 = vmatpush1.bf16.xpose.msra.mxu0 0
        %1723 = vmatprep.subr.bf16.mxu0 0
        %1724 = vmatpush1.bf16.xpose.msra.mxu0 0
        %1725 = vmatprep.mubr.bf16.mxu0 %v1692
        %1726 = vmatmul.mubr.bf16.gmra.mrb[0].mxu0 %v1691
        %v1727 = vpop.f32.mrb[0].mxu0
        %v1728 = vadd.f32 0.0, %v1727
        %v1729 = vpop.f32.mrb[0].mxu0
        %v1730 = vpop.f32.mrb[0].mxu0
        %v1731 = vpop.f32.mrb[0].mxu0
        %1732 = vdwg.mxu0
        %1733 = vmatprep.subr.bf16.mxu0 %v1692
        %1734 = vmatpush1.bf16.xpose.msra.mxu0 %v1691
        %1735 = vmatprep.subr.bf16.mxu0 0
        %1736 = vmatpush1.bf16.xpose.msra.mxu0 0
        %1737 = vmatprep.subr.bf16.mxu0 0
        %1738 = vmatpush1.bf16.xpose.msra.mxu0 0
        %1739 = vmatprep.subr.bf16.mxu0 0
        %1740 = vmatpush1.bf16.xpose.msra.mxu0 0
        %1741 = vmatprep.subr.bf16.mxu0 0
        %1742 = vmatpush1.bf16.xpose.msra.mxu0 0
        %1743 = vmatprep.subr.bf16.mxu0 0
        %1744 = vmatpush1.bf16.xpose.msra.mxu0 0
        %1745 = vmatprep.subr.bf16.mxu0 0
        %1746 = vmatpush1.bf16.xpose.msra.mxu0 0
        %1747 = vmatprep.subr.bf16.mxu0 0
        %1748 = vmatpush1.bf16.xpose.msra.mxu0 0
        %1749 = vmatprep.subr.bf16.mxu0 0
        %1750 = vmatpush1.bf16.xpose.msra.mxu0 0
        %1751 = vmatprep.subr.bf16.mxu0 0
        %1752 = vmatpush1.bf16.xpose.msra.mxu0 0
        %1753 = vmatprep.subr.bf16.mxu0 0
        %1754 = vmatpush1.bf16.xpose.msra.mxu0 0
        %1755 = vmatprep.subr.bf16.mxu0 0
        %1756 = vmatpush1.bf16.xpose.msra.mxu0 0
        %1757 = vmatprep.subr.bf16.mxu0 0
        %1758 = vmatpush1.bf16.xpose.msra.mxu0 0
        %1759 = vmatprep.subr.bf16.mxu0 0
        %1760 = vmatpush1.bf16.xpose.msra.mxu0 0
        %1761 = vmatprep.subr.bf16.mxu0 0
        %1762 = vmatpush1.bf16.xpose.msra.mxu0 0
        %1763 = vmatprep.subr.bf16.mxu0 0
        %1764 = vmatpush1.bf16.xpose.msra.mxu0 0
        %1765 = vmatprep.mubr.bf16.mxu0 %v1692
        %1766 = vmatmul.mubr.bf16.gmra.mrb[0].mxu0 %v1691
        %v1767 = vpop.f32.mrb[0].mxu0
        %v1768 = vadd.f32 0.0, %v1767
        %v1769 = vpop.f32.mrb[0].mxu0
        %v1770 = vpop.f32.mrb[0].mxu0
        %v1771 = vpop.f32.mrb[0].mxu0
        %1772 = vdwg.mxu0
        %v1773 = vpack.c.bf16 %v1768, %v1768
        %v1774 = vmul.f32 %v1548, %v1728
        %v1776 = vsel %vm543, %v1773, 0
        %v1778 = vsel %vm547, %v1549, 0
        %1780 = vmatprep.subr.bf16.mxu0 0
        %1781 = vmatpush1.bf16.msra.mxu0 %v1778
        %1782 = vmatprep.subr.bf16.mxu0 0
        %1783 = vmatpush1.bf16.msra.mxu0 0
        %1784 = vmatprep.subr.bf16.mxu0 0
        %1785 = vmatpush1.bf16.msra.mxu0 0
        %1786 = vmatprep.subr.bf16.mxu0 0
        %1787 = vmatpush1.bf16.msra.mxu0 0
        %1788 = vmatprep.subr.bf16.mxu0 0
        %1789 = vmatpush1.bf16.msra.mxu0 0
        %1790 = vmatprep.subr.bf16.mxu0 0
        %1791 = vmatpush1.bf16.msra.mxu0 0
        %1792 = vmatprep.subr.bf16.mxu0 0
        %1793 = vmatpush1.bf16.msra.mxu0 0
        %1794 = vmatprep.subr.bf16.mxu0 0
        %1795 = vmatpush1.bf16.msra.mxu0 0
        %1796 = vmatprep.subr.bf16.mxu0 0
        %1797 = vmatpush1.bf16.msra.mxu0 0
        %1798 = vmatprep.subr.bf16.mxu0 0
        %1799 = vmatpush1.bf16.msra.mxu0 0
        %1800 = vmatprep.subr.bf16.mxu0 0
        %1801 = vmatpush1.bf16.msra.mxu0 0
        %1802 = vmatprep.subr.bf16.mxu0 0
        %1803 = vmatpush1.bf16.msra.mxu0 0
        %1804 = vmatprep.subr.bf16.mxu0 0
        %1805 = vmatpush1.bf16.msra.mxu0 0
        %1806 = vmatprep.subr.bf16.mxu0 0
        %1807 = vmatpush1.bf16.msra.mxu0 0
        %1808 = vmatprep.subr.bf16.mxu0 0
        %1809 = vmatpush1.bf16.msra.mxu0 0
        %1810 = vmatprep.subr.bf16.mxu0 0
        %1811 = vmatpush1.bf16.msra.mxu0 0
        %1812 = vmatprep.mubr.bf16.mxu0 0
        %1813 = vmatmul.mubr.bf16.gmra.mrb[0].mxu0 %v1776
        %v1814 = vpop.f32.mrb[0].mxu0
        %v1815 = vadd.f32 1e-06, %v1814
        %v1816 = vpop.f32.mrb[0].mxu0
        %v1817 = vpop.f32.mrb[0].mxu0
        %v1818 = vpop.f32.mrb[0].mxu0
        %1819 = vdwg.mxu0
        %v1820 = vrcp.pop %v1815
        %v1821 = vmul.f32 %v1774, %v1820
        %v1822 = vpack.c.bf16 %v1821, %v1821
        %v1824 = vsel %vm347, %v1822, 0
        %1826 = vmatprep.subr.bf16.mxu0 %v416
        %1827 = vmatpush1.bf16.msra.mxu0 %v415
        %1828 = vmatprep.subr.bf16.mxu0 %v418
        %1829 = vmatpush1.bf16.msra.mxu0 %v417
        %1830 = vmatprep.subr.bf16.mxu0 0
        %1831 = vmatpush1.bf16.msra.mxu0 0
        %1832 = vmatprep.subr.bf16.mxu0 0
        %1833 = vmatpush1.bf16.msra.mxu0 0
        %1834 = vmatprep.subr.bf16.mxu0 0
        %1835 = vmatpush1.bf16.msra.mxu0 0
        %1836 = vmatprep.subr.bf16.mxu0 0
        %1837 = vmatpush1.bf16.msra.mxu0 0
        %1838 = vmatprep.subr.bf16.mxu0 0
        %1839 = vmatpush1.bf16.msra.mxu0 0
        %1840 = vmatprep.subr.bf16.mxu0 0
        %1841 = vmatpush1.bf16.msra.mxu0 0
        %1842 = vmatprep.subr.bf16.mxu0 0
        %1843 = vmatpush1.bf16.msra.mxu0 0
        %1844 = vmatprep.subr.bf16.mxu0 0
        %1845 = vmatpush1.bf16.msra.mxu0 0
        %1846 = vmatprep.subr.bf16.mxu0 0
        %1847 = vmatpush1.bf16.msra.mxu0 0
        %1848 = vmatprep.subr.bf16.mxu0 0
        %1849 = vmatpush1.bf16.msra.mxu0 0
        %1850 = vmatprep.subr.bf16.mxu0 0
        %1851 = vmatpush1.bf16.msra.mxu0 0
        %1852 = vmatprep.subr.bf16.mxu0 0
        %1853 = vmatpush1.bf16.msra.mxu0 0
        %1854 = vmatprep.subr.bf16.mxu0 0
        %1855 = vmatpush1.bf16.msra.mxu0 0
        %1856 = vmatprep.subr.bf16.mxu0 0
        %1857 = vmatpush1.bf16.msra.mxu0 0
        %1858 = vmatprep.mubr.bf16.mxu0 0
        %1859 = vmatmul.mubr.bf16.gmra.mrb[0].mxu0 %v1824
        %v1860 = vpop.f32.mrb[0].mxu0
        %v1861 = vadd.f32 0.0, %v1860
        %v1862 = vpop.f32.mrb[0].mxu0
        %v1863 = vadd.f32 0.0, %v1862
        %v1864 = vpop.f32.mrb[0].mxu0
        %v1865 = vpop.f32.mrb[0].mxu0
        %1866 = vdwg.mxu0
        %1867 = vmatprep.subr.bf16.mxu0 0
        %1868 = vmatpush1.bf16.xpose.msra.mxu0 %v1824
        %1869 = vmatprep.subr.bf16.mxu0 0
        %1870 = vmatpush1.bf16.xpose.msra.mxu0 0
        %1871 = vmatprep.subr.bf16.mxu0 0
        %1872 = vmatpush1.bf16.xpose.msra.mxu0 0
        %1873 = vmatprep.subr.bf16.mxu0 0
        %1874 = vmatpush1.bf16.xpose.msra.mxu0 0
        %1875 = vmatprep.subr.bf16.mxu0 0
        %1876 = vmatpush1.bf16.xpose.msra.mxu0 0
        %1877 = vmatprep.subr.bf16.mxu0 0
        %1878 = vmatpush1.bf16.xpose.msra.mxu0 0
        %1879 = vmatprep.subr.bf16.mxu0 0
        %1880 = vmatpush1.bf16.xpose.msra.mxu0 0
        %1881 = vmatprep.subr.bf16.mxu0 0
        %1882 = vmatpush1.bf16.xpose.msra.mxu0 0
        %1883 = vmatprep.subr.bf16.mxu0 0
        %1884 = vmatpush1.bf16.xpose.msra.mxu0 0
        %1885 = vmatprep.subr.bf16.mxu0 0
        %1886 = vmatpush1.bf16.xpose.msra.mxu0 0
        %1887 = vmatprep.subr.bf16.mxu0 0
        %1888 = vmatpush1.bf16.xpose.msra.mxu0 0
        %1889 = vmatprep.subr.bf16.mxu0 0
        %1890 = vmatpush1.bf16.xpose.msra.mxu0 0
        %1891 = vmatprep.subr.bf16.mxu0 0
        %1892 = vmatpush1.bf16.xpose.msra.mxu0 0
        %1893 = vmatprep.subr.bf16.mxu0 0
        %1894 = vmatpush1.bf16.xpose.msra.mxu0 0
        %1895 = vmatprep.subr.bf16.mxu0 0
        %1896 = vmatpush1.bf16.xpose.msra.mxu0 0
        %1897 = vmatprep.subr.bf16.mxu0 0
        %1898 = vmatpush1.bf16.xpose.msra.mxu0 0
        %1899 = vmatprep.mubr.bf16.mxu0 0
        %1900 = vmatmul.mubr.bf16.gmra.mrb[0].mxu0 %v1824
        %v1901 = vpop.f32.mrb[0].mxu0
        %v1902 = vadd.f32 0.0, %v1901
        %v1903 = vpop.f32.mrb[0].mxu0
        %v1904 = vpop.f32.mrb[0].mxu0
        %v1905 = vpop.f32.mrb[0].mxu0
        %1906 = vdwg.mxu0
        %v1907 = vpack.c.bf16 %v1902, %v1902
        %v1908 = vmul.f32 %v1689, %v1861
        %v1909 = vmul.f32 %v1690, %v1863
        %v1911 = vsel %vm543, %v1907, 0
        %v1914 = vsel %vm547, %v1691, 0
        %v1917 = vsel %vm547, %v1692, 0
        %1919 = vmatprep.subr.bf16.mxu0 %v1917
        %1920 = vmatpush1.bf16.msra.mxu0 %v1914
        %1921 = vmatprep.subr.bf16.mxu0 0
        %1922 = vmatpush1.bf16.msra.mxu0 0
        %1923 = vmatprep.subr.bf16.mxu0 0
        %1924 = vmatpush1.bf16.msra.mxu0 0
        %1925 = vmatprep.subr.bf16.mxu0 0
        %1926 = vmatpush1.bf16.msra.mxu0 0
        %1927 = vmatprep.subr.bf16.mxu0 0
        %1928 = vmatpush1.bf16.msra.mxu0 0
        %1929 = vmatprep.subr.bf16.mxu0 0
        %1930 = vmatpush1.bf16.msra.mxu0 0
        %1931 = vmatprep.subr.bf16.mxu0 0
        %1932 = vmatpush1.bf16.msra.mxu0 0
        %1933 = vmatprep.subr.bf16.mxu0 0
        %1934 = vmatpush1.bf16.msra.mxu0 0
        %1935 = vmatprep.subr.bf16.mxu0 0
        %1936 = vmatpush1.bf16.msra.mxu0 0
        %1937 = vmatprep.subr.bf16.mxu0 0
        %1938 = vmatpush1.bf16.msra.mxu0 0
        %1939 = vmatprep.subr.bf16.mxu0 0
        %1940 = vmatpush1.bf16.msra.mxu0 0
        %1941 = vmatprep.subr.bf16.mxu0 0
        %1942 = vmatpush1.bf16.msra.mxu0 0
        %1943 = vmatprep.subr.bf16.mxu0 0
        %1944 = vmatpush1.bf16.msra.mxu0 0
        %1945 = vmatprep.subr.bf16.mxu0 0
        %1946 = vmatpush1.bf16.msra.mxu0 0
        %1947 = vmatprep.subr.bf16.mxu0 0
        %1948 = vmatpush1.bf16.msra.mxu0 0
        %1949 = vmatprep.subr.bf16.mxu0 0
        %1950 = vmatpush1.bf16.msra.mxu0 0
        %1951 = vmatprep.mubr.bf16.mxu0 0
        %1952 = vmatmul.mubr.bf16.gmra.mrb[0].mxu0 %v1911
        %v1953 = vpop.f32.mrb[0].mxu0
        %v1954 = vadd.f32 1e-06, %v1953
        %v1955 = vpop.f32.mrb[0].mxu0
        %v1956 = vadd.f32 1e-06, %v1955
        %v1957 = vpop.f32.mrb[0].mxu0
        %v1958 = vpop.f32.mrb[0].mxu0
        %1959 = vdwg.mxu0
        %v1960 = vrcp.pop %v1954
        %v1961 = vrcp.pop %v1956
        %v1962 = vmul.f32 %v1908, %v1960
        %v1963 = vmul.f32 %v1909, %v1961
        %v1964 = vpack.c.bf16 %v1962, %v1962
        %v1965 = vpack.c.bf16 %v1963, %v1963
        %1966 = vmatprep.subr.bf16.mxu0 %v416
        %1967 = vmatpush1.bf16.xpose.msra.mxu0 %v415
        %1968 = vmatprep.subr.bf16.mxu0 %v418
        %1969 = vmatpush1.bf16.xpose.msra.mxu0 %v417
        %1970 = vmatprep.subr.bf16.mxu0 0
        %1971 = vmatpush1.bf16.xpose.msra.mxu0 0
        %1972 = vmatprep.subr.bf16.mxu0 0
        %1973 = vmatpush1.bf16.xpose.msra.mxu0 0
        %1974 = vmatprep.subr.bf16.mxu0 0
        %1975 = vmatpush1.bf16.xpose.msra.mxu0 0
        %1976 = vmatprep.subr.bf16.mxu0 0
        %1977 = vmatpush1.bf16.xpose.msra.mxu0 0
        %1978 = vmatprep.subr.bf16.mxu0 0
        %1979 = vmatpush1.bf16.xpose.msra.mxu0 0
        %1980 = vmatprep.subr.bf16.mxu0 0
        %1981 = vmatpush1.bf16.xpose.msra.mxu0 0
        %1982 = vmatprep.subr.bf16.mxu0 0
        %1983 = vmatpush1.bf16.xpose.msra.mxu0 0
        %1984 = vmatprep.subr.bf16.mxu0 0
        %1985 = vmatpush1.bf16.xpose.msra.mxu0 0
        %1986 = vmatprep.subr.bf16.mxu0 0
        %1987 = vmatpush1.bf16.xpose.msra.mxu0 0
        %1988 = vmatprep.subr.bf16.mxu0 0
        %1989 = vmatpush1.bf16.xpose.msra.mxu0 0
        %1990 = vmatprep.subr.bf16.mxu0 0
        %1991 = vmatpush1.bf16.xpose.msra.mxu0 0
        %1992 = vmatprep.subr.bf16.mxu0 0
        %1993 = vmatpush1.bf16.xpose.msra.mxu0 0
        %1994 = vmatprep.subr.bf16.mxu0 0
        %1995 = vmatpush1.bf16.xpose.msra.mxu0 0
        %1996 = vmatprep.subr.bf16.mxu0 0
        %1997 = vmatpush1.bf16.xpose.msra.mxu0 0
        %1998 = vmatprep.mubr.bf16.mxu0 %v1965
        %1999 = vmatmul.mubr.bf16.gmra.mrb[0].mxu0 %v1964
        %v2000 = vpop.f32.mrb[0].mxu0
        %v2001 = vadd.f32 0.0, %v2000
        %v2002 = vpop.f32.mrb[0].mxu0
        %v2003 = vpop.f32.mrb[0].mxu0
        %v2004 = vpop.f32.mrb[0].mxu0
        %2005 = vdwg.mxu0
        %2006 = vmatprep.subr.bf16.mxu0 %v1965
        %2007 = vmatpush1.bf16.xpose.msra.mxu0 %v1964
        %2008 = vmatprep.subr.bf16.mxu0 0
        %2009 = vmatpush1.bf16.xpose.msra.mxu0 0
        %2010 = vmatprep.subr.bf16.mxu0 0
        %2011 = vmatpush1.bf16.xpose.msra.mxu0 0
        %2012 = vmatprep.subr.bf16.mxu0 0
        %2013 = vmatpush1.bf16.xpose.msra.mxu0 0
        %2014 = vmatprep.subr.bf16.mxu0 0
        %2015 = vmatpush1.bf16.xpose.msra.mxu0 0
        %2016 = vmatprep.subr.bf16.mxu0 0
        %2017 = vmatpush1.bf16.xpose.msra.mxu0 0
        %2018 = vmatprep.subr.bf16.mxu0 0
        %2019 = vmatpush1.bf16.xpose.msra.mxu0 0
        %2020 = vmatprep.subr.bf16.mxu0 0
        %2021 = vmatpush1.bf16.xpose.msra.mxu0 0
        %2022 = vmatprep.subr.bf16.mxu0 0
        %2023 = vmatpush1.bf16.xpose.msra.mxu0 0
        %2024 = vmatprep.subr.bf16.mxu0 0
        %2025 = vmatpush1.bf16.xpose.msra.mxu0 0
        %2026 = vmatprep.subr.bf16.mxu0 0
        %2027 = vmatpush1.bf16.xpose.msra.mxu0 0
        %2028 = vmatprep.subr.bf16.mxu0 0
        %2029 = vmatpush1.bf16.xpose.msra.mxu0 0
        %2030 = vmatprep.subr.bf16.mxu0 0
        %2031 = vmatpush1.bf16.xpose.msra.mxu0 0
        %2032 = vmatprep.subr.bf16.mxu0 0
        %2033 = vmatpush1.bf16.xpose.msra.mxu0 0
        %2034 = vmatprep.subr.bf16.mxu0 0
        %2035 = vmatpush1.bf16.xpose.msra.mxu0 0
        %2036 = vmatprep.subr.bf16.mxu0 0
        %2037 = vmatpush1.bf16.xpose.msra.mxu0 0
        %2038 = vmatprep.mubr.bf16.mxu0 %v1965
        %2039 = vmatmul.mubr.bf16.gmra.mrb[0].mxu0 %v1964
        %v2040 = vpop.f32.mrb[0].mxu0
        %v2041 = vadd.f32 0.0, %v2040
        %v2042 = vpop.f32.mrb[0].mxu0
        %v2043 = vpop.f32.mrb[0].mxu0
        %v2044 = vpop.f32.mrb[0].mxu0
        %2045 = vdwg.mxu0
        %v2046 = vpack.c.bf16 %v2041, %v2041
        %v2047 = vmul.f32 %v1821, %v2001
        %v2049 = vsel %vm543, %v2046, 0
        %v2051 = vsel %vm547, %v1822, 0
        %2053 = vmatprep.subr.bf16.mxu0 0
        %2054 = vmatpush1.bf16.msra.mxu0 %v2051
        %2055 = vmatprep.subr.bf16.mxu0 0
        %2056 = vmatpush1.bf16.msra.mxu0 0
        %2057 = vmatprep.subr.bf16.mxu0 0
        %2058 = vmatpush1.bf16.msra.mxu0 0
        %2059 = vmatprep.subr.bf16.mxu0 0
        %2060 = vmatpush1.bf16.msra.mxu0 0
        %2061 = vmatprep.subr.bf16.mxu0 0
        %2062 = vmatpush1.bf16.msra.mxu0 0
        %2063 = vmatprep.subr.bf16.mxu0 0
        %2064 = vmatpush1.bf16.msra.mxu0 0
        %2065 = vmatprep.subr.bf16.mxu0 0
        %2066 = vmatpush1.bf16.msra.mxu0 0
        %2067 = vmatprep.subr.bf16.mxu0 0
        %2068 = vmatpush1.bf16.msra.mxu0 0
        %2069 = vmatprep.subr.bf16.mxu0 0
        %2070 = vmatpush1.bf16.msra.mxu0 0
        %2071 = vmatprep.subr.bf16.mxu0 0
        %2072 = vmatpush1.bf16.msra.mxu0 0
        %2073 = vmatprep.subr.bf16.mxu0 0
        %2074 = vmatpush1.bf16.msra.mxu0 0
        %2075 = vmatprep.subr.bf16.mxu0 0
        %2076 = vmatpush1.bf16.msra.mxu0 0
        %2077 = vmatprep.subr.bf16.mxu0 0
        %2078 = vmatpush1.bf16.msra.mxu0 0
        %2079 = vmatprep.subr.bf16.mxu0 0
        %2080 = vmatpush1.bf16.msra.mxu0 0
        %2081 = vmatprep.subr.bf16.mxu0 0
        %2082 = vmatpush1.bf16.msra.mxu0 0
        %2083 = vmatprep.subr.bf16.mxu0 0
        %2084 = vmatpush1.bf16.msra.mxu0 0
        %2085 = vmatprep.mubr.bf16.mxu0 0
        %2086 = vmatmul.mubr.bf16.gmra.mrb[0].mxu0 %v2049
        %v2087 = vpop.f32.mrb[0].mxu0
        %v2088 = vadd.f32 1e-06, %v2087
        %v2089 = vpop.f32.mrb[0].mxu0
        %v2090 = vpop.f32.mrb[0].mxu0
        %v2091 = vpop.f32.mrb[0].mxu0
        %2092 = vdwg.mxu0
        %v2093 = vrcp.pop %v2088
        %v2094 = vmul.f32 %v2047, %v2093
        %v2095 = vpack.c.bf16 %v2094, %v2094
        %v2097 = vsel %vm347, %v2095, 0
        %2099 = vmatprep.subr.bf16.mxu0 %v416
        %2100 = vmatpush1.bf16.msra.mxu0 %v415
        %2101 = vmatprep.subr.bf16.mxu0 %v418
        %2102 = vmatpush1.bf16.msra.mxu0 %v417
        %2103 = vmatprep.subr.bf16.mxu0 0
        %2104 = vmatpush1.bf16.msra.mxu0 0
        %2105 = vmatprep.subr.bf16.mxu0 0
        %2106 = vmatpush1.bf16.msra.mxu0 0
        %2107 = vmatprep.subr.bf16.mxu0 0
        %2108 = vmatpush1.bf16.msra.mxu0 0
        %2109 = vmatprep.subr.bf16.mxu0 0
        %2110 = vmatpush1.bf16.msra.mxu0 0
        %2111 = vmatprep.subr.bf16.mxu0 0
        %2112 = vmatpush1.bf16.msra.mxu0 0
        %2113 = vmatprep.subr.bf16.mxu0 0
        %2114 = vmatpush1.bf16.msra.mxu0 0
        %2115 = vmatprep.subr.bf16.mxu0 0
        %2116 = vmatpush1.bf16.msra.mxu0 0
        %2117 = vmatprep.subr.bf16.mxu0 0
        %2118 = vmatpush1.bf16.msra.mxu0 0
        %2119 = vmatprep.subr.bf16.mxu0 0
        %2120 = vmatpush1.bf16.msra.mxu0 0
        %2121 = vmatprep.subr.bf16.mxu0 0
        %2122 = vmatpush1.bf16.msra.mxu0 0
        %2123 = vmatprep.subr.bf16.mxu0 0
        %2124 = vmatpush1.bf16.msra.mxu0 0
        %2125 = vmatprep.subr.bf16.mxu0 0
        %2126 = vmatpush1.bf16.msra.mxu0 0
        %2127 = vmatprep.subr.bf16.mxu0 0
        %2128 = vmatpush1.bf16.msra.mxu0 0
        %2129 = vmatprep.subr.bf16.mxu0 0
        %2130 = vmatpush1.bf16.msra.mxu0 0
        %2131 = vmatprep.mubr.bf16.mxu0 0
        %2132 = vmatmul.mubr.bf16.gmra.mrb[0].mxu0 %v2097
        %v2133 = vpop.f32.mrb[0].mxu0
        %v2134 = vadd.f32 0.0, %v2133
        %v2135 = vpop.f32.mrb[0].mxu0
        %v2136 = vadd.f32 0.0, %v2135
        %v2137 = vpop.f32.mrb[0].mxu0
        %v2138 = vpop.f32.mrb[0].mxu0
        %2139 = vdwg.mxu0
        %2140 = vmatprep.subr.bf16.mxu0 0
        %2141 = vmatpush1.bf16.xpose.msra.mxu0 %v2097
        %2142 = vmatprep.subr.bf16.mxu0 0
        %2143 = vmatpush1.bf16.xpose.msra.mxu0 0
        %2144 = vmatprep.subr.bf16.mxu0 0
        %2145 = vmatpush1.bf16.xpose.msra.mxu0 0
        %2146 = vmatprep.subr.bf16.mxu0 0
        %2147 = vmatpush1.bf16.xpose.msra.mxu0 0
        %2148 = vmatprep.subr.bf16.mxu0 0
        %2149 = vmatpush1.bf16.xpose.msra.mxu0 0
        %2150 = vmatprep.subr.bf16.mxu0 0
        %2151 = vmatpush1.bf16.xpose.msra.mxu0 0
        %2152 = vmatprep.subr.bf16.mxu0 0
        %2153 = vmatpush1.bf16.xpose.msra.mxu0 0
        %2154 = vmatprep.subr.bf16.mxu0 0
        %2155 = vmatpush1.bf16.xpose.msra.mxu0 0
        %2156 = vmatprep.subr.bf16.mxu0 0
        %2157 = vmatpush1.bf16.xpose.msra.mxu0 0
        %2158 = vmatprep.subr.bf16.mxu0 0
        %2159 = vmatpush1.bf16.xpose.msra.mxu0 0
        %2160 = vmatprep.subr.bf16.mxu0 0
        %2161 = vmatpush1.bf16.xpose.msra.mxu0 0
        %2162 = vmatprep.subr.bf16.mxu0 0
        %2163 = vmatpush1.bf16.xpose.msra.mxu0 0
        %2164 = vmatprep.subr.bf16.mxu0 0
        %2165 = vmatpush1.bf16.xpose.msra.mxu0 0
        %2166 = vmatprep.subr.bf16.mxu0 0
        %2167 = vmatpush1.bf16.xpose.msra.mxu0 0
        %2168 = vmatprep.subr.bf16.mxu0 0
        %2169 = vmatpush1.bf16.xpose.msra.mxu0 0
        %2170 = vmatprep.subr.bf16.mxu0 0
        %2171 = vmatpush1.bf16.xpose.msra.mxu0 0
        %2172 = vmatprep.mubr.bf16.mxu0 0
        %2173 = vmatmul.mubr.bf16.gmra.mrb[0].mxu0 %v2097
        %v2174 = vpop.f32.mrb[0].mxu0
        %v2175 = vadd.f32 0.0, %v2174
        %v2176 = vpop.f32.mrb[0].mxu0
        %v2177 = vpop.f32.mrb[0].mxu0
        %v2178 = vpop.f32.mrb[0].mxu0
        %2179 = vdwg.mxu0
        %v2180 = vpack.c.bf16 %v2175, %v2175
        %v2181 = vmul.f32 %v1962, %v2134
        %v2182 = vmul.f32 %v1963, %v2136
        %v2184 = vsel %vm543, %v2180, 0
        %v2187 = vsel %vm547, %v1964, 0
        %v2190 = vsel %vm547, %v1965, 0
        %2192 = vmatprep.subr.bf16.mxu0 %v2190
        %2193 = vmatpush1.bf16.msra.mxu0 %v2187
        %2194 = vmatprep.subr.bf16.mxu0 0
        %2195 = vmatpush1.bf16.msra.mxu0 0
        %2196 = vmatprep.subr.bf16.mxu0 0
        %2197 = vmatpush1.bf16.msra.mxu0 0
        %2198 = vmatprep.subr.bf16.mxu0 0
        %2199 = vmatpush1.bf16.msra.mxu0 0
        %2200 = vmatprep.subr.bf16.mxu0 0
        %2201 = vmatpush1.bf16.msra.mxu0 0
        %2202 = vmatprep.subr.bf16.mxu0 0
        %2203 = vmatpush1.bf16.msra.mxu0 0
        %2204 = vmatprep.subr.bf16.mxu0 0
        %2205 = vmatpush1.bf16.msra.mxu0 0
        %2206 = vmatprep.subr.bf16.mxu0 0
        %2207 = vmatpush1.bf16.msra.mxu0 0
        %2208 = vmatprep.subr.bf16.mxu0 0
        %2209 = vmatpush1.bf16.msra.mxu0 0
        %2210 = vmatprep.subr.bf16.mxu0 0
        %2211 = vmatpush1.bf16.msra.mxu0 0
        %2212 = vmatprep.subr.bf16.mxu0 0
        %2213 = vmatpush1.bf16.msra.mxu0 0
        %2214 = vmatprep.subr.bf16.mxu0 0
        %2215 = vmatpush1.bf16.msra.mxu0 0
        %2216 = vmatprep.subr.bf16.mxu0 0
        %2217 = vmatpush1.bf16.msra.mxu0 0
        %2218 = vmatprep.subr.bf16.mxu0 0
        %2219 = vmatpush1.bf16.msra.mxu0 0
        %2220 = vmatprep.subr.bf16.mxu0 0
        %2221 = vmatpush1.bf16.msra.mxu0 0
        %2222 = vmatprep.subr.bf16.mxu0 0
        %2223 = vmatpush1.bf16.msra.mxu0 0
        %2224 = vmatprep.mubr.bf16.mxu0 0
        %2225 = vmatmul.mubr.bf16.gmra.mrb[0].mxu0 %v2184
        %v2226 = vpop.f32.mrb[0].mxu0
        %v2227 = vadd.f32 1e-06, %v2226
        %v2228 = vpop.f32.mrb[0].mxu0
        %v2229 = vadd.f32 1e-06, %v2228
        %v2230 = vpop.f32.mrb[0].mxu0
        %v2231 = vpop.f32.mrb[0].mxu0
        %2232 = vdwg.mxu0
        %v2233 = vrcp.pop %v2227
        %v2234 = vrcp.pop %v2229
        %v2235 = vmul.f32 %v2181, %v2233
        %v2236 = vmul.f32 %v2182, %v2234
        %v2237 = vpack.c.bf16 %v2235, %v2235
        %v2238 = vpack.c.bf16 %v2236, %v2236
        %v2243 = vunpack.c.l.b16 %v304
        %v2244 = vunpack.c.l.b16 %v305
        %v2245 = vunpack.c.l.b16 %v306
        %v2246 = vunpack.c.l.b16 %v307
        %v2247 = vpack.c.b16 %v2244, %v2243
        %v2248 = vpack.c.b16 %v2246, %v2245
        %v2250 = vsel %vm347, %v2247, 0
        %v2253 = vsel %vm347, %v2248, 0
        %2255 = vmatprep.subr.bf16.mxu0 0
        %2256 = vmatpush1.bf16.xpose.msra.mxu0 %v2097
        %2257 = vmatprep.subr.bf16.mxu0 0
        %2258 = vmatpush1.bf16.xpose.msra.mxu0 0
        %2259 = vmatprep.subr.bf16.mxu0 0
        %2260 = vmatpush1.bf16.xpose.msra.mxu0 0
        %2261 = vmatprep.subr.bf16.mxu0 0
        %2262 = vmatpush1.bf16.xpose.msra.mxu0 0
        %2263 = vmatprep.subr.bf16.mxu0 0
        %2264 = vmatpush1.bf16.xpose.msra.mxu0 0
        %2265 = vmatprep.subr.bf16.mxu0 0
        %2266 = vmatpush1.bf16.xpose.msra.mxu0 0
        %2267 = vmatprep.subr.bf16.mxu0 0
        %2268 = vmatpush1.bf16.xpose.msra.mxu0 0
        %2269 = vmatprep.subr.bf16.mxu0 0
        %2270 = vmatpush1.bf16.xpose.msra.mxu0 0
        %2271 = vmatprep.subr.bf16.mxu0 0
        %2272 = vmatpush1.bf16.xpose.msra.mxu0 0
        %2273 = vmatprep.subr.bf16.mxu0 0
        %2274 = vmatpush1.bf16.xpose.msra.mxu0 0
        %2275 = vmatprep.subr.bf16.mxu0 0
        %2276 = vmatpush1.bf16.xpose.msra.mxu0 0
        %2277 = vmatprep.subr.bf16.mxu0 0
        %2278 = vmatpush1.bf16.xpose.msra.mxu0 0
        %2279 = vmatprep.subr.bf16.mxu0 0
        %2280 = vmatpush1.bf16.xpose.msra.mxu0 0
        %2281 = vmatprep.subr.bf16.mxu0 0
        %2282 = vmatpush1.bf16.xpose.msra.mxu0 0
        %2283 = vmatprep.subr.bf16.mxu0 0
        %2284 = vmatpush1.bf16.xpose.msra.mxu0 0
        %2285 = vmatprep.subr.bf16.mxu0 0
        %2286 = vmatpush1.bf16.xpose.msra.mxu0 0
        %2287 = vmatprep.mubr.bf16.mxu0 0
        %2288 = vmatmul.mubr.bf16.gmra.mrb[0].mxu0 %v2250
        %v2289 = vpop.f32.mrb[0].mxu0
        %v2290 = vadd.f32 0.0, %v2289
        %v2291 = vpop.f32.mrb[0].mxu0
        %v2292 = vpop.f32.mrb[0].mxu0
        %v2293 = vadd.f32 0.0, %v2292
        %v2294 = vpop.f32.mrb[0].mxu0
        %2295 = vmatprep.mubr.bf16.mxu0 0
        %2296 = vmatmul.mubr.bf16.gmra.mrb[0].mxu0 %v2253
        %v2297 = vpop.f32.mrb[0].mxu0
        %v2298 = vadd.f32 0.0, %v2297
        %v2299 = vpop.f32.mrb[0].mxu0
        %v2300 = vpop.f32.mrb[0].mxu0
        %v2301 = vadd.f32 0.0, %v2300
        %v2302 = vpop.f32.mrb[0].mxu0
        %2303 = vdwg.mxu0
        %v2304 = vpack.c.bf16 %v2293, %v2290
        %v2305 = vpack.c.bf16 %v2301, %v2298
        %2307 = vset.pattern.permute.xlu0 0
        %2308 = vperm.xlu0 %2307, %v308
        %v2309 = vpop.permute.xlu0 %2308
        %2312 = vset.pattern.permute.xlu0 0
        %2313 = vperm.xlu0 %2312, %v309
        %v2314 = vpop.permute.xlu0 %2313
        %2317 = vset.pattern.permute.xlu0 0
        %2318 = vperm.xlu0 %2317, %v310
        %v2319 = vpop.permute.xlu0 %2318
        %2322 = vset.pattern.permute.xlu0 0
        %2323 = vperm.xlu0 %2322, %v311
        %v2324 = vpop.permute.xlu0 %2323
        %v2327 = vsel %vm543, %v2304, 0
        %v2330 = vsel %vm543, %v2305, 0
        %v2333 = vsel %vm547, %v2237, 0
        %v2336 = vsel %vm547, %v2238, 0
        %2338 = vmatprep.subr.bf16.mxu0 %v2336
        %2339 = vmatpush1.bf16.msra.mxu0 %v2333
        %2340 = vmatprep.subr.bf16.mxu0 0
        %2341 = vmatpush1.bf16.msra.mxu0 0
        %2342 = vmatprep.subr.bf16.mxu0 0
        %2343 = vmatpush1.bf16.msra.mxu0 0
        %2344 = vmatprep.subr.bf16.mxu0 0
        %2345 = vmatpush1.bf16.msra.mxu0 0
        %2346 = vmatprep.subr.bf16.mxu0 0
        %2347 = vmatpush1.bf16.msra.mxu0 0
        %2348 = vmatprep.subr.bf16.mxu0 0
        %2349 = vmatpush1.bf16.msra.mxu0 0
        %2350 = vmatprep.subr.bf16.mxu0 0
        %2351 = vmatpush1.bf16.msra.mxu0 0
        %2352 = vmatprep.subr.bf16.mxu0 0
        %2353 = vmatpush1.bf16.msra.mxu0 0
        %2354 = vmatprep.subr.bf16.mxu0 0
        %2355 = vmatpush1.bf16.msra.mxu0 0
        %2356 = vmatprep.subr.bf16.mxu0 0
        %2357 = vmatpush1.bf16.msra.mxu0 0
        %2358 = vmatprep.subr.bf16.mxu0 0
        %2359 = vmatpush1.bf16.msra.mxu0 0
        %2360 = vmatprep.subr.bf16.mxu0 0
        %2361 = vmatpush1.bf16.msra.mxu0 0
        %2362 = vmatprep.subr.bf16.mxu0 0
        %2363 = vmatpush1.bf16.msra.mxu0 0
        %2364 = vmatprep.subr.bf16.mxu0 0
        %2365 = vmatpush1.bf16.msra.mxu0 0
        %2366 = vmatprep.subr.bf16.mxu0 0
        %2367 = vmatpush1.bf16.msra.mxu0 0
        %2368 = vmatprep.subr.bf16.mxu0 0
        %2369 = vmatpush1.bf16.msra.mxu0 0
        %2370 = vmatprep.mubr.bf16.mxu0 0
        %2371 = vmatmul.mubr.bf16.gmra.mrb[0].mxu0 %v2327
        %v2372 = vpop.f32.mrb[0].mxu0
        %v2373 = vadd.f32 %v2309, %v2372
        %v2374 = vpop.f32.mrb[0].mxu0
        %v2375 = vadd.f32 %v2309, %v2374
        %v2376 = vpop.f32.mrb[0].mxu0
        %v2377 = vadd.f32 %v2314, %v2376
        %v2378 = vpop.f32.mrb[0].mxu0
        %v2379 = vadd.f32 %v2314, %v2378
        %2380 = vmatprep.mubr.bf16.mxu0 0
        %2381 = vmatmul.mubr.bf16.gmra.mrb[0].mxu0 %v2330
        %v2382 = vpop.f32.mrb[0].mxu0
        %v2383 = vadd.f32 %v2319, %v2382
        %v2384 = vpop.f32.mrb[0].mxu0
        %v2385 = vadd.f32 %v2319, %v2384
        %v2386 = vpop.f32.mrb[0].mxu0
        %v2387 = vadd.f32 %v2324, %v2386
        %v2388 = vpop.f32.mrb[0].mxu0
        %v2389 = vadd.f32 %v2324, %v2388
        %2390 = vdwg.mxu0
        %v2391 = vadd.f32 %v288, %v2373
        %v2392 = vadd.f32 %v289, %v2375
        %v2393 = vadd.f32 %v290, %v2377
        %v2394 = vadd.f32 %v291, %v2379
        %v2395 = vadd.f32 %v292, %v2383
        %v2396 = vadd.f32 %v293, %v2385
        %v2397 = vadd.f32 %v294, %v2387
        %v2398 = vadd.f32 %v295, %v2389
        %v2399 = vmax.f32 %v2391, 0.0
        %v2400 = vmax.f32 %v2392, 0.0
        %v2401 = vmax.f32 %v2393, 0.0
        %v2402 = vmax.f32 %v2394, 0.0
        %v2403 = vmax.f32 %v2395, 0.0
        %v2404 = vmax.f32 %v2396, 0.0
        %v2405 = vmax.f32 %v2397, 0.0
        %v2406 = vmax.f32 %v2398, 0.0
        %2407 = vst [vmem:[%s282] sm:$0xff] %v2399
        %2408 = vst [vmem:[%s282 + $0x8] sm:$0xff] %v2400
        %2409 = vst [vmem:[%s282 + $0x10] sm:$0xff] %v2401
        %2410 = vst [vmem:[%s282 + $0x18] sm:$0xff] %v2402
        %2411 = vst [vmem:[%s282 + $0x20] sm:$0xff] %v2403
        %2412 = vst [vmem:[%s282 + $0x28] sm:$0xff] %v2404
        %2413 = vst [vmem:[%s282 + $0x30] sm:$0xff] %v2405
        %2414 = vst [vmem:[%s282 + $0x38] sm:$0xff] %v2406
        %s2415 = sand.u32 %s167, 1
        %s2416 = scalar_lea.sflag [#allocation4], %s2415
        %s2417 = sand.u32 %s167, 1
        %s2418 = smul.addr %s2417, 64
        %s2419 = scalar_lea.vmem [#allocation5], %s2418
        // Predicated region
        $region49: #{tpu_custom_call.1} parent=43 // pred_check
          %p2420 = pneg %p177
        $region50: #{tpu_custom_call.1} parent=43 // pred_check_branch
          %2422 = sbr.rel (%p2420) target = $region52
        $region51: #{tpu_custom_call.1} parent=43 // pred_region
          %s2424 = ssub.s32 1024, 1024
          %2425 = vsyncadd %s2416, %s2424
          %s2426 = smul.addr %s23, 8
          %s2427 = smul.addr %s2426, 128
          %s2428 = scalar_lea.hbm %s6, %s2427
          %s2429 = sshll.u32 %s2419, 4
          %s2430 = int_to_ptr.vmem [resolvable:$true] %s2429
          %2435 = dma.vmem_to_hbm [thread:$0]  %s2430, 1024, %s2428, %s2416, 256, 256, 16
        $region52: #{tpu_custom_call.1} parent=43 // pred_fallthru
          _
      $region44: #{tpu_custom_call.1} parent=5 // pred_fallthru
        _
      %p2436 = scmp.le.s32.totalorder 2, %s18
      // Predicated region
      $region53: #{tpu_custom_call.1} parent=5 // pred_check
        %p2437 = pneg %p2436
      $region54: #{tpu_custom_call.1} parent=5 // pred_check_branch
        %2439 = sbr.rel (%p2437) target = $region56
      $region55: #{tpu_custom_call.1} parent=5 // pred_region
        %s2440 = ssub.s32 %s18, 2
        // Predicated region
        $region57: #{tpu_custom_call.1} parent=55 // pred_check
          %p2441 = pneg %p183
        $region58: #{tpu_custom_call.1} parent=55 // pred_check_branch
          %2443 = sbr.rel (%p2441) target = $region60
        $region59: #{tpu_custom_call.1} parent=55 // pred_region
          %s2444 = sand.u32 %s168, 1
          %s2445 = scalar_lea.sflag [#allocation4], %s2444
          %s2446 = sand.u32 %s168, 1
          %s2447 = smul.addr %s2446, 64
          %s2448 = scalar_lea.vmem [#allocation5], %s2447
          %2449 = dma.done %s2445, 1024
        $region60: #{tpu_custom_call.1} parent=55 // pred_fallthru
          _
      $region56: #{tpu_custom_call.1} parent=5 // pred_fallthru
        _
    $region6: #{tpu_custom_call.1} parent=1 // loop_footer
      %s22 = sadd.s32 1, %s18
    $region7: #{tpu_custom_call.1} parent=1 // loop_footer_branch
      %17 = sbr.rel target = $region3
    $region8: #{tpu_custom_call.1} parent=1 // loop_exit
      _
    %2450 = vsyncpa [#allocation3], 1
    %s2451 = scalar_lea.sflag [#allocation3], 1
    %2452 = vsyncpa %s2451, 1
    %2453 = vsyncpa [#allocation4], 1
    %s2454 = scalar_lea.sflag [#allocation4], 1
    %2455 = vsyncpa %s2454, 1

</llo_original>
